<compile_context>
chip_gen: v6e
topology: v6e:2x2x1
jax: 0.10.0
libtpu: 0.0.40
codegen_flags: <defaults>
</compile_context>

<pallas_src>
import math

import jax
import jax.numpy as jnp
from jax import lax
from jax.experimental import pallas as pl
from jax.experimental.pallas import tpu as pltpu

# ---------------- configuration (Nat2D(dim=32, num_heads=4, kernel_size=3)) ---
B, H, W, C = 2, 16, 16, 32
NUM_HEADS = 4
HEAD_DIM = C // NUM_HEADS
K = 3                      # neighborhood kernel size (odd, NATTEN semantics)
KK = K * K
SCALE = HEAD_DIM ** -0.5
HW = H * W
TQ = 128                   # query-tile rows per grid step
NEG_INF = jnp.float32(-1e9)


# ---------------- fused Pallas kernel -----------------------------------------
def fused_nat2d_kernel(x_ref, wqkv_ref, bqkv_ref, wproj_ref, bproj_ref,
                       bias_ref, o_ref):
    """One grid step = (query-tile qt, batch b).  Fully fused:
       qkv projection -> neighborhood attention (dense additive bias) -> proj.

       x_ref     : (HW, C)      all rows of this batch
       wqkv_ref  : (C, 3C)      q-columns already scaled by SCALE
       bqkv_ref  : (1, 3C)
       wproj_ref : (C, C)
       bproj_ref : (1, C)
       bias_ref  : (NH, TQ, HW) bf16 additive rel-pos bias (-1e9 off-window)
       o_ref     : (TQ, C)
    """
    qt = pl.program_id(0)
    row0 = pl.multiple_of(qt * TQ, TQ)

    w_qkv = wqkv_ref[...]                                   # (C, 3C)
    b_qkv = bqkv_ref[...]                                   # (1, 3C)
    x_all = x_ref[...]                                      # (HW, C)
    x_q = x_ref[pl.ds(row0, TQ), :]                         # (TQ, C)

    # q for this query tile only; k/v for the whole batch.
    q = jnp.dot(x_q, w_qkv[:, :C],
                preferred_element_type=jnp.float32) + b_qkv[:, :C]       # (TQ, C)
    kv = jnp.dot(x_all, w_qkv[:, C:],
                 preferred_element_type=jnp.float32) + b_qkv[:, C:]      # (HW, 2C)

    w_proj = wproj_ref[...]                                 # (C, C)
    acc = jnp.zeros((TQ, C), jnp.float32)
    for h in range(NUM_HEADS):
        d0 = h * HEAD_DIM
        q_h = q[:, d0:d0 + HEAD_DIM]                        # (TQ, D)
        k_h = kv[:, d0:d0 + HEAD_DIM]                       # (HW, D)
        v_h = kv[:, C + d0:C + d0 + HEAD_DIM]               # (HW, D)

        s = lax.dot_general(q_h, k_h, (((1,), (1,)), ((), ())),
                            preferred_element_type=jnp.float32)          # (TQ, HW)
        logits = s + bias_ref[h].astype(jnp.float32)
        m = jnp.max(logits, axis=-1, keepdims=True)
        p = jnp.exp(logits - m)
        denom = jnp.sum(p, axis=-1, keepdims=True)
        attn = p * pl.reciprocal(denom, approx=True)                     # softmax

        pv = jnp.dot(attn, v_h, preferred_element_type=jnp.float32)      # (TQ, D)
        # Fold the head-concat into the output projection:
        #   concat_h(pv_h) @ w_proj == sum_h pv_h @ w_proj[h*D:(h+1)*D, :]
        acc = acc + jnp.dot(pv, w_proj[d0:d0 + HEAD_DIM, :],
                            preferred_element_type=jnp.float32)

    o_ref[...] = (acc + bproj_ref[...]).astype(o_ref.dtype)


def nat2d_forward(x, params, bias_full_bf16):
    """x: (B, H, W, C) -> (B, H, W, C).  One fused pallas_call."""
    b, h, w, c = x.shape
    x2 = x.reshape(b, h * w, c)                             # free row-major view
    n_qt = HW // TQ
    out = pl.pallas_call(
        fused_nat2d_kernel,
        out_shape=jax.ShapeDtypeStruct((b, h * w, c), jnp.float32),
        grid=(n_qt, b),                                     # qt outermost: bias &
        in_specs=[                                          # weights revisit-skip
            pl.BlockSpec((None, HW, C), lambda qt, bb: (bb, 0, 0)),        # x rows
            pl.BlockSpec((C, 3 * C), lambda qt, bb: (0, 0)),               # w_qkv
            pl.BlockSpec((1, 3 * C), lambda qt, bb: (0, 0)),               # b_qkv
            pl.BlockSpec((C, C), lambda qt, bb: (0, 0)),                   # w_proj
            pl.BlockSpec((1, C), lambda qt, bb: (0, 0)),                   # b_proj
            pl.BlockSpec((NUM_HEADS, TQ, HW), lambda qt, bb: (0, qt, 0)),  # bias
        ],
        out_specs=pl.BlockSpec((None, TQ, C), lambda qt, bb: (bb, qt, 0)),
        compiler_params=pltpu.CompilerParams(
            dimension_semantics=("parallel", "parallel")),
    )(x2,
      params["w_qkv_scaled"], params["b_qkv_scaled"].reshape(1, 3 * C),
      params["w_proj"], params["b_proj"].reshape(1, C),
      bias_full_bf16)
    return out.reshape(b, h, w, c)


# ---------------- parameter / table setup (plain JAX glue) -------------------
def init_params(key):
    k1, k2, k3 = jax.random.split(key, 3)
    std_qkv = math.sqrt(2.0 / (C + 3 * C))        # xavier_normal_
    std_proj = math.sqrt(2.0 / (C + C))
    return dict(
        w_qkv=jax.random.normal(k1, (C, 3 * C), jnp.float32) * std_qkv,
        b_qkv=jnp.zeros((3 * C,), jnp.float32),
        w_proj=jax.random.normal(k2, (C, C), jnp.float32) * std_proj,
        b_proj=jnp.zeros((C,), jnp.float32),
        rpb=jax.random.truncated_normal(
            k3, -2.0, 2.0, (NUM_HEADS, 2 * K - 1, 2 * K - 1), jnp.float32) * 0.02,
    )


def prepare_params(params):
    """Fold the qk scale into the q-columns of the qkv projection (one-time)."""
    w_s = params["w_qkv"].at[:, :C].multiply(SCALE)
    b_s = params["b_qkv"].at[:C].multiply(SCALE)
    return dict(params, w_qkv_scaled=w_s, b_qkv_scaled=b_s)


def build_na_tables(rpb):
    """NATTEN-style clamped windows.

    Returns:
      bias_full : (NH, HW, HW) f32 additive bias (-1e9 off-window)
      bias_kk   : (NH, HW, KK) rel-pos bias table for the gathered reference
      nbr_flat  : (KK, HW)     flat neighbor indices for the gathered reference
    """
    n = K // 2
    ii = jnp.arange(H)
    jj = jnp.arange(W)
    kr = jnp.arange(K)
    sh = jnp.clip(ii - n, 0, H - K)                       # window start per row
    sw = jnp.clip(jj - n, 0, W - K)                       # window start per col

    # --- gathered formulation (reference only) ---
    nbr_row = sh[None, :] + kr[:, None]                   # (K, H)
    nbr_col = sw[None, :] + kr[:, None]                   # (K, W)
    nbr_flat = (nbr_row[:, None, :, None] * W
                + nbr_col[None, :, None, :]).reshape(KK, HW)           # (KK, HW)
    rel_h = sh[:, None] + kr[None, :] - ii[:, None] + (K - 1)          # (H, K)
    rel_w = sw[:, None] + kr[None, :] - jj[:, None] + (K - 1)          # (W, K)
    bias5 = rpb[:, rel_h[:, :, None, None], rel_w[None, None, :, :]]   # (NH,H,K,W,K)
    bias_kk = jnp.transpose(bias5, (0, 1, 3, 2, 4)).reshape(NUM_HEADS, HW, KK)

    # --- dense additive formulation (Pallas kernel) ---
    rr = jnp.arange(H)                                     # candidate neighbor rows
    cc = jnp.arange(W)                                     # candidate neighbor cols
    valid_r = (rr[None, :] >= sh[:, None]) & (rr[None, :] <= sh[:, None] + K - 1)
    valid_c = (cc[None, :] >= sw[:, None]) & (cc[None, :] <= sw[:, None] + K - 1)
    rel_r = jnp.clip(rr[None, :] - ii[:, None] + (K - 1), 0, 2 * K - 2)  # (H, H)
    rel_c = jnp.clip(cc[None, :] - jj[:, None] + (K - 1), 0, 2 * K - 2)  # (W, W)
    bias_dense = rpb[:, rel_r[:, :, None, None], rel_c[None, None, :, :]]  # (NH,i,r,j,c)
    valid = valid_r[:, :, None, None] & valid_c[None, None, :, :]          # (i,r,j,c)
    bias_full = jnp.where(valid[None], bias_dense, NEG_INF)
    bias_full = jnp.transpose(bias_full, (0, 1, 3, 2, 4)).reshape(NUM_HEADS, HW, HW)
    return bias_full, bias_kk, nbr_flat


# ---------------- pure-JAX reference (for a correctness check) ---------------
def nat2d_reference(x, params, bias_kk, nbr_flat):
    hp = jax.lax.Precision.HIGHEST
    qkv = jnp.dot(x.reshape(-1, C), params["w_qkv"], precision=hp) + params["b_qkv"]
    qkv = qkv.reshape(B, H, W, 3, NUM_HEADS, HEAD_DIM)
    qkv = jnp.transpose(qkv, (3, 0, 4, 1, 2, 5))
    q, k, v = qkv[0] * SCALE, qkv[1], qkv[2]
    q = q.reshape(B, NUM_HEADS, HW, HEAD_DIM)
    k = k.reshape(B, NUM_HEADS, HW, HEAD_DIM)
    v = v.reshape(B, NUM_HEADS, HW, HEAD_DIM)
    k_n = k[:, :, nbr_flat, :]                            # (B, NH, KK, HW, Dh)
    v_n = v[:, :, nbr_flat, :]
    logits = jnp.einsum("bnpd,bnkpd->bnpk", q, k_n, precision=hp) + bias_kk[None]
    attn = jax.nn.softmax(logits, axis=-1)
    o = jnp.einsum("bnpk,bnkpd->bnpd", attn, v_n, precision=hp)
    o = o.reshape(B, NUM_HEADS, H, W, HEAD_DIM)
    o = jnp.transpose(o, (0, 2, 3, 1, 4)).reshape(B, H, W, C)
    o = jnp.dot(o.reshape(-1, C), params["w_proj"], precision=hp) + params["b_proj"]
    return o.reshape(B, H, W, C)


if __name__ == "__main__":
    key = jax.random.PRNGKey(0)
    kx, kp = jax.random.split(key)
    x = jax.random.normal(kx, (B, H, W, C), jnp.float32)
    params = init_params(kp)
    params = prepare_params(params)
    bias_full, bias_kk, nbr_flat = build_na_tables(params["rpb"])
    bias_full_bf16 = bias_full.astype(jnp.bfloat16)       # halves bias DMA traffic

    out = nat2d_forward(x, params, bias_full_bf16)
    out = jax.block_until_ready(out)

    assert out.shape == (B, H, W, C)
    assert bool(jnp.all(jnp.isfinite(out)))
    ref = nat2d_reference(x, params, bias_kk, nbr_flat)
    max_err = float(jnp.max(jnp.abs(out - ref)))
    # Tolerance covers bf16 bias quantization + approx EUP reciprocal vs f32 ref.
    assert max_err < 2e-3, f"max abs error vs reference: {max_err}"

    print("KERNEL_OK")
</pallas_src>

<mosaic_0001>
module attributes {stable_mosaic.version = 11 : i64} {
  func.func @fused_nat2d_kernel(%arg0: i32, %arg1: i32, %arg2: memref<1x256x32xf32, #tpu.memory_space<vmem>>, %arg3: memref<32x96xf32, #tpu.memory_space<vmem>>, %arg4: memref<1x96xf32, #tpu.memory_space<vmem>>, %arg5: memref<32x32xf32, #tpu.memory_space<vmem>>, %arg6: memref<1x32xf32, #tpu.memory_space<vmem>>, %arg7: memref<4x128x256xbf16, #tpu.memory_space<vmem>>, %arg8: memref<1x128x32xf32, #tpu.memory_space<vmem>>) attributes {dimension_semantics = [#tpu.dimension_semantics<parallel>, #tpu.dimension_semantics<parallel>], iteration_bounds = array<i64: 2, 2>, scalar_prefetch = 0 : i64, scratch_operands = 0 : i64, tpu.core_type = #tpu.core_type<tc>, window_params = [{transform_indices = @transform_0, window_bounds = array<i64: 1, 256, 32>}, {pipeline_mode = #tpu.pipeline_mode<synchronous>, transform_indices = @transform_1, window_bounds = array<i64: 32, 96>}, {pipeline_mode = #tpu.pipeline_mode<synchronous>, transform_indices = @transform_2, window_bounds = array<i64: 1, 96>}, {pipeline_mode = #tpu.pipeline_mode<synchronous>, transform_indices = @transform_3, window_bounds = array<i64: 32, 32>}, {pipeline_mode = #tpu.pipeline_mode<synchronous>, transform_indices = @transform_4, window_bounds = array<i64: 1, 32>}, {transform_indices = @transform_5, window_bounds = array<i64: 4, 128, 256>}, {transform_indices = @transform_6, window_bounds = array<i64: 1, 128, 32>}]} {
    %c128_i32 = arith.constant 128 : i32
    %0 = arith.muli %arg0, %c128_i32 : i32
    %1 = tpu.assume_multiple %0, 128 : i32
    %c0 = arith.constant 0 : index
    %c0_0 = arith.constant 0 : index
    %2 = vector.load %arg3[%c0, %c0_0] : memref<32x96xf32, #tpu.memory_space<vmem>>, vector<32x96xf32>
    %c0_1 = arith.constant 0 : index
    %c0_2 = arith.constant 0 : index
    %3 = vector.load %arg4[%c0_1, %c0_2] : memref<1x96xf32, #tpu.memory_space<vmem>>, vector<1x96xf32>
    %c0_3 = arith.constant 0 : index
    %c0_4 = arith.constant 0 : index
    %c0_5 = arith.constant 0 : index
    %4 = vector.load %arg2[%c0_3, %c0_4, %c0_5] : memref<1x256x32xf32, #tpu.memory_space<vmem>>, vector<1x256x32xf32>
    %5 = vector.shape_cast %4 : vector<1x256x32xf32> to vector<256x32xf32>
    %c0_6 = arith.constant 0 : index
    %6 = arith.index_cast %1 : i32 to index
    %c0_7 = arith.constant 0 : index
    %7 = vector.load %arg2[%c0_6, %6, %c0_7] : memref<1x256x32xf32, #tpu.memory_space<vmem>>, vector<1x128x32xf32>
    %8 = vector.shape_cast %7 : vector<1x128x32xf32> to vector<128x32xf32>
    %9 = vector.extract_strided_slice %2 {offsets = [0, 0], sizes = [32, 32], strides = [1, 1]} : vector<32x96xf32> to vector<32x32xf32>
    %cst = arith.constant dense<0.000000e+00> : vector<128x32xf32>
    %10 = tpu.matmul %8, %9, %cst {dimension_numbers = #tpu.dot_dimension_numbers<[1], [0], [0], [1], [0, 0, 1, 1], [], []>} : vector<128x32xf32>, vector<32x32xf32>, vector<128x32xf32> -> vector<128x32xf32>
    %11 = vector.extract_strided_slice %3 {offsets = [0, 0], sizes = [1, 32], strides = [1, 1]} : vector<1x96xf32> to vector<1x32xf32>
    %12 = vector.broadcast %11 : vector<1x32xf32> to vector<128x32xf32>
    %13 = arith.addf %10, %12 : vector<128x32xf32>
    %14 = vector.extract_strided_slice %2 {offsets = [0, 32], sizes = [32, 64], strides = [1, 1]} : vector<32x96xf32> to vector<32x64xf32>
    %cst_8 = arith.constant dense<0.000000e+00> : vector<256x64xf32>
    %15 = tpu.matmul %5, %14, %cst_8 {dimension_numbers = #tpu.dot_dimension_numbers<[1], [0], [0], [1], [0, 0, 1, 1], [], []>} : vector<256x32xf32>, vector<32x64xf32>, vector<256x64xf32> -> vector<256x64xf32>
    %16 = vector.extract_strided_slice %3 {offsets = [0, 32], sizes = [1, 64], strides = [1, 1]} : vector<1x96xf32> to vector<1x64xf32>
    %17 = vector.broadcast %16 : vector<1x64xf32> to vector<256x64xf32>
    %18 = arith.addf %15, %17 : vector<256x64xf32>
    %c0_9 = arith.constant 0 : index
    %c0_10 = arith.constant 0 : index
    %19 = vector.load %arg5[%c0_9, %c0_10] : memref<32x32xf32, #tpu.memory_space<vmem>>, vector<32x32xf32>
    %cst_11 = arith.constant 0.000000e+00 : f32
    %20 = vector.broadcast %cst_11 : f32 to vector<128x32xf32>
    %21 = vector.extract_strided_slice %13 {offsets = [0, 0], sizes = [128, 8], strides = [1, 1]} : vector<128x32xf32> to vector<128x8xf32>
    %22 = vector.extract_strided_slice %18 {offsets = [0, 0], sizes = [256, 8], strides = [1, 1]} : vector<256x64xf32> to vector<256x8xf32>
    %23 = vector.extract_strided_slice %18 {offsets = [0, 32], sizes = [256, 8], strides = [1, 1]} : vector<256x64xf32> to vector<256x8xf32>
    %cst_12 = arith.constant dense<0.000000e+00> : vector<128x256xf32>
    %24 = tpu.matmul %21, %22, %cst_12 {dimension_numbers = #tpu.dot_dimension_numbers<[1], [1], [0], [0], [0, 0, 1, 0], [], []>} : vector<128x8xf32>, vector<256x8xf32>, vector<128x256xf32> -> vector<128x256xf32>
    %c0_13 = arith.constant 0 : index
    %c0_14 = arith.constant 0 : index
    %c0_15 = arith.constant 0 : index
    %25 = vector.load %arg7[%c0_13, %c0_14, %c0_15] : memref<4x128x256xbf16, #tpu.memory_space<vmem>>, vector<1x128x256xbf16>
    %26 = vector.shape_cast %25 : vector<1x128x256xbf16> to vector<128x256xbf16>
    %27 = arith.extf %26 : vector<128x256xbf16> to vector<128x256xf32>
    %28 = arith.addf %24, %27 : vector<128x256xf32>
    %cst_16 = arith.constant dense<0xFF800000> : vector<128xf32>
    %29 = vector.multi_reduction <maximumf>, %28, %cst_16 [1] : vector<128x256xf32> to vector<128xf32>
    %30 = vector.shape_cast %29 : vector<128xf32> to vector<128x1xf32>
    %31 = vector.broadcast %30 : vector<128x1xf32> to vector<128x256xf32>
    %32 = arith.subf %28, %31 : vector<128x256xf32>
    %33 = math.exp %32 : vector<128x256xf32>
    %cst_17 = arith.constant dense<0.000000e+00> : vector<128xf32>
    %34 = vector.multi_reduction <add>, %33, %cst_17 [1] : vector<128x256xf32> to vector<128xf32>
    %35 = vector.shape_cast %34 : vector<128xf32> to vector<128x1xf32>
    %36 = tpu.reciprocal %35 {approx = true} : vector<128x1xf32> -> vector<128x1xf32>
    %37 = vector.broadcast %36 : vector<128x1xf32> to vector<128x256xf32>
    %38 = arith.mulf %33, %37 : vector<128x256xf32>
    %cst_18 = arith.constant dense<0.000000e+00> : vector<128x8xf32>
    %39 = tpu.matmul %38, %23, %cst_18 {dimension_numbers = #tpu.dot_dimension_numbers<[1], [0], [0], [1], [0, 0, 1, 1], [], []>} : vector<128x256xf32>, vector<256x8xf32>, vector<128x8xf32> -> vector<128x8xf32>
    %40 = vector.extract_strided_slice %19 {offsets = [0, 0], sizes = [8, 32], strides = [1, 1]} : vector<32x32xf32> to vector<8x32xf32>
    %cst_19 = arith.constant dense<0.000000e+00> : vector<128x32xf32>
    %41 = tpu.matmul %39, %40, %cst_19 {dimension_numbers = #tpu.dot_dimension_numbers<[1], [0], [0], [1], [0, 0, 1, 1], [], []>} : vector<128x8xf32>, vector<8x32xf32>, vector<128x32xf32> -> vector<128x32xf32>
    %42 = arith.addf %20, %41 : vector<128x32xf32>
    %43 = vector.extract_strided_slice %13 {offsets = [0, 8], sizes = [128, 8], strides = [1, 1]} : vector<128x32xf32> to vector<128x8xf32>
    %44 = vector.extract_strided_slice %18 {offsets = [0, 8], sizes = [256, 8], strides = [1, 1]} : vector<256x64xf32> to vector<256x8xf32>
    %45 = vector.extract_strided_slice %18 {offsets = [0, 40], sizes = [256, 8], strides = [1, 1]} : vector<256x64xf32> to vector<256x8xf32>
    %cst_20 = arith.constant dense<0.000000e+00> : vector<128x256xf32>
    %46 = tpu.matmul %43, %44, %cst_20 {dimension_numbers = #tpu.dot_dimension_numbers<[1], [1], [0], [0], [0, 0, 1, 0], [], []>} : vector<128x8xf32>, vector<256x8xf32>, vector<128x256xf32> -> vector<128x256xf32>
    %c1 = arith.constant 1 : index
    %c0_21 = arith.constant 0 : index
    %c0_22 = arith.constant 0 : index
    %47 = vector.load %arg7[%c1, %c0_21, %c0_22] : memref<4x128x256xbf16, #tpu.memory_space<vmem>>, vector<1x128x256xbf16>
    %48 = vector.shape_cast %47 : vector<1x128x256xbf16> to vector<128x256xbf16>
    %49 = arith.extf %48 : vector<128x256xbf16> to vector<128x256xf32>
    %50 = arith.addf %46, %49 : vector<128x256xf32>
    %cst_23 = arith.constant dense<0xFF800000> : vector<128xf32>
    %51 = vector.multi_reduction <maximumf>, %50, %cst_23 [1] : vector<128x256xf32> to vector<128xf32>
    %52 = vector.shape_cast %51 : vector<128xf32> to vector<128x1xf32>
    %53 = vector.broadcast %52 : vector<128x1xf32> to vector<128x256xf32>
    %54 = arith.subf %50, %53 : vector<128x256xf32>
    %55 = math.exp %54 : vector<128x256xf32>
    %cst_24 = arith.constant dense<0.000000e+00> : vector<128xf32>
    %56 = vector.multi_reduction <add>, %55, %cst_24 [1] : vector<128x256xf32> to vector<128xf32>
    %57 = vector.shape_cast %56 : vector<128xf32> to vector<128x1xf32>
    %58 = tpu.reciprocal %57 {approx = true} : vector<128x1xf32> -> vector<128x1xf32>
    %59 = vector.broadcast %58 : vector<128x1xf32> to vector<128x256xf32>
    %60 = arith.mulf %55, %59 : vector<128x256xf32>
    %cst_25 = arith.constant dense<0.000000e+00> : vector<128x8xf32>
    %61 = tpu.matmul %60, %45, %cst_25 {dimension_numbers = #tpu.dot_dimension_numbers<[1], [0], [0], [1], [0, 0, 1, 1], [], []>} : vector<128x256xf32>, vector<256x8xf32>, vector<128x8xf32> -> vector<128x8xf32>
    %62 = vector.extract_strided_slice %19 {offsets = [8, 0], sizes = [8, 32], strides = [1, 1]} : vector<32x32xf32> to vector<8x32xf32>
    %cst_26 = arith.constant dense<0.000000e+00> : vector<128x32xf32>
    %63 = tpu.matmul %61, %62, %cst_26 {dimension_numbers = #tpu.dot_dimension_numbers<[1], [0], [0], [1], [0, 0, 1, 1], [], []>} : vector<128x8xf32>, vector<8x32xf32>, vector<128x32xf32> -> vector<128x32xf32>
    %64 = arith.addf %42, %63 : vector<128x32xf32>
    %65 = vector.extract_strided_slice %13 {offsets = [0, 16], sizes = [128, 8], strides = [1, 1]} : vector<128x32xf32> to vector<128x8xf32>
    %66 = vector.extract_strided_slice %18 {offsets = [0, 16], sizes = [256, 8], strides = [1, 1]} : vector<256x64xf32> to vector<256x8xf32>
    %67 = vector.extract_strided_slice %18 {offsets = [0, 48], sizes = [256, 8], strides = [1, 1]} : vector<256x64xf32> to vector<256x8xf32>
    %cst_27 = arith.constant dense<0.000000e+00> : vector<128x256xf32>
    %68 = tpu.matmul %65, %66, %cst_27 {dimension_numbers = #tpu.dot_dimension_numbers<[1], [1], [0], [0], [0, 0, 1, 0], [], []>} : vector<128x8xf32>, vector<256x8xf32>, vector<128x256xf32> -> vector<128x256xf32>
    %c2 = arith.constant 2 : index
    %c0_28 = arith.constant 0 : index
    %c0_29 = arith.constant 0 : index
    %69 = vector.load %arg7[%c2, %c0_28, %c0_29] : memref<4x128x256xbf16, #tpu.memory_space<vmem>>, vector<1x128x256xbf16>
    %70 = vector.shape_cast %69 : vector<1x128x256xbf16> to vector<128x256xbf16>
    %71 = arith.extf %70 : vector<128x256xbf16> to vector<128x256xf32>
    %72 = arith.addf %68, %71 : vector<128x256xf32>
    %cst_30 = arith.constant dense<0xFF800000> : vector<128xf32>
    %73 = vector.multi_reduction <maximumf>, %72, %cst_30 [1] : vector<128x256xf32> to vector<128xf32>
    %74 = vector.shape_cast %73 : vector<128xf32> to vector<128x1xf32>
    %75 = vector.broadcast %74 : vector<128x1xf32> to vector<128x256xf32>
    %76 = arith.subf %72, %75 : vector<128x256xf32>
    %77 = math.exp %76 : vector<128x256xf32>
    %cst_31 = arith.constant dense<0.000000e+00> : vector<128xf32>
    %78 = vector.multi_reduction <add>, %77, %cst_31 [1] : vector<128x256xf32> to vector<128xf32>
    %79 = vector.shape_cast %78 : vector<128xf32> to vector<128x1xf32>
    %80 = tpu.reciprocal %79 {approx = true} : vector<128x1xf32> -> vector<128x1xf32>
    %81 = vector.broadcast %80 : vector<128x1xf32> to vector<128x256xf32>
    %82 = arith.mulf %77, %81 : vector<128x256xf32>
    %cst_32 = arith.constant dense<0.000000e+00> : vector<128x8xf32>
    %83 = tpu.matmul %82, %67, %cst_32 {dimension_numbers = #tpu.dot_dimension_numbers<[1], [0], [0], [1], [0, 0, 1, 1], [], []>} : vector<128x256xf32>, vector<256x8xf32>, vector<128x8xf32> -> vector<128x8xf32>
    %84 = vector.extract_strided_slice %19 {offsets = [16, 0], sizes = [8, 32], strides = [1, 1]} : vector<32x32xf32> to vector<8x32xf32>
    %cst_33 = arith.constant dense<0.000000e+00> : vector<128x32xf32>
    %85 = tpu.matmul %83, %84, %cst_33 {dimension_numbers = #tpu.dot_dimension_numbers<[1], [0], [0], [1], [0, 0, 1, 1], [], []>} : vector<128x8xf32>, vector<8x32xf32>, vector<128x32xf32> -> vector<128x32xf32>
    %86 = arith.addf %64, %85 : vector<128x32xf32>
    %87 = vector.extract_strided_slice %13 {offsets = [0, 24], sizes = [128, 8], strides = [1, 1]} : vector<128x32xf32> to vector<128x8xf32>
    %88 = vector.extract_strided_slice %18 {offsets = [0, 24], sizes = [256, 8], strides = [1, 1]} : vector<256x64xf32> to vector<256x8xf32>
    %89 = vector.extract_strided_slice %18 {offsets = [0, 56], sizes = [256, 8], strides = [1, 1]} : vector<256x64xf32> to vector<256x8xf32>
    %cst_34 = arith.constant dense<0.000000e+00> : vector<128x256xf32>
    %90 = tpu.matmul %87, %88, %cst_34 {dimension_numbers = #tpu.dot_dimension_numbers<[1], [1], [0], [0], [0, 0, 1, 0], [], []>} : vector<128x8xf32>, vector<256x8xf32>, vector<128x256xf32> -> vector<128x256xf32>
    %c3 = arith.constant 3 : index
    %c0_35 = arith.constant 0 : index
    %c0_36 = arith.constant 0 : index
    %91 = vector.load %arg7[%c3, %c0_35, %c0_36] : memref<4x128x256xbf16, #tpu.memory_space<vmem>>, vector<1x128x256xbf16>
    %92 = vector.shape_cast %91 : vector<1x128x256xbf16> to vector<128x256xbf16>
    %93 = arith.extf %92 : vector<128x256xbf16> to vector<128x256xf32>
    %94 = arith.addf %90, %93 : vector<128x256xf32>
    %cst_37 = arith.constant dense<0xFF800000> : vector<128xf32>
    %95 = vector.multi_reduction <maximumf>, %94, %cst_37 [1] : vector<128x256xf32> to vector<128xf32>
    %96 = vector.shape_cast %95 : vector<128xf32> to vector<128x1xf32>
    %97 = vector.broadcast %96 : vector<128x1xf32> to vector<128x256xf32>
    %98 = arith.subf %94, %97 : vector<128x256xf32>
    %99 = math.exp %98 : vector<128x256xf32>
    %cst_38 = arith.constant dense<0.000000e+00> : vector<128xf32>
    %100 = vector.multi_reduction <add>, %99, %cst_38 [1] : vector<128x256xf32> to vector<128xf32>
    %101 = vector.shape_cast %100 : vector<128xf32> to vector<128x1xf32>
    %102 = tpu.reciprocal %101 {approx = true} : vector<128x1xf32> -> vector<128x1xf32>
    %103 = vector.broadcast %102 : vector<128x1xf32> to vector<128x256xf32>
    %104 = arith.mulf %99, %103 : vector<128x256xf32>
    %cst_39 = arith.constant dense<0.000000e+00> : vector<128x8xf32>
    %105 = tpu.matmul %104, %89, %cst_39 {dimension_numbers = #tpu.dot_dimension_numbers<[1], [0], [0], [1], [0, 0, 1, 1], [], []>} : vector<128x256xf32>, vector<256x8xf32>, vector<128x8xf32> -> vector<128x8xf32>
    %106 = vector.extract_strided_slice %19 {offsets = [24, 0], sizes = [8, 32], strides = [1, 1]} : vector<32x32xf32> to vector<8x32xf32>
    %cst_40 = arith.constant dense<0.000000e+00> : vector<128x32xf32>
    %107 = tpu.matmul %105, %106, %cst_40 {dimension_numbers = #tpu.dot_dimension_numbers<[1], [0], [0], [1], [0, 0, 1, 1], [], []>} : vector<128x8xf32>, vector<8x32xf32>, vector<128x32xf32> -> vector<128x32xf32>
    %108 = arith.addf %86, %107 : vector<128x32xf32>
    %c0_41 = arith.constant 0 : index
    %c0_42 = arith.constant 0 : index
    %109 = vector.load %arg6[%c0_41, %c0_42] : memref<1x32xf32, #tpu.memory_space<vmem>>, vector<1x32xf32>
    %110 = vector.broadcast %109 : vector<1x32xf32> to vector<128x32xf32>
    %111 = arith.addf %108, %110 : vector<128x32xf32>
    %c0_43 = arith.constant 0 : index
    %c0_44 = arith.constant 0 : index
    %c0_45 = arith.constant 0 : index
    %112 = vector.load %arg8[%c0_43, %c0_44, %c0_45] : memref<1x128x32xf32, #tpu.memory_space<vmem>>, vector<1x128x32xf32>
    %113 = vector.shape_cast %112 : vector<1x128x32xf32> to vector<128x32xf32>
    %114 = vector.shape_cast %111 : vector<128x32xf32> to vector<1x128x32xf32>
    tpu.vector_store %arg8[%c0_43, %c0_44, %c0_45], %114 {strides = array<i32>} : memref<1x128x32xf32, #tpu.memory_space<vmem>>, vector<1x128x32xf32>,
    return
  }
  func.func @transform_0(%arg0: i32, %arg1: i32) -> (i32, i32, i32) {
    %c0_i32 = arith.constant 0 : i32
    %c0_i32_0 = arith.constant 0 : i32
    %c0_i32_1 = arith.constant 0 : i32
    return %arg1, %c0_i32, %c0_i32_0 : i32, i32, i32
  }
  func.func @transform_1(%arg0: i32, %arg1: i32) -> (i32, i32) {
    %c0_i32 = arith.constant 0 : i32
    %c0_i32_0 = arith.constant 0 : i32
    %c0_i32_1 = arith.constant 0 : i32
    return %c0_i32, %c0_i32_0 : i32, i32
  }
  func.func @transform_2(%arg0: i32, %arg1: i32) -> (i32, i32) {
    %c0_i32 = arith.constant 0 : i32
    %c0_i32_0 = arith.constant 0 : i32
    %c0_i32_1 = arith.constant 0 : i32
    return %c0_i32, %c0_i32_0 : i32, i32
  }
  func.func @transform_3(%arg0: i32, %arg1: i32) -> (i32, i32) {
    %c0_i32 = arith.constant 0 : i32
    %c0_i32_0 = arith.constant 0 : i32
    %c0_i32_1 = arith.constant 0 : i32
    return %c0_i32, %c0_i32_0 : i32, i32
  }
  func.func @transform_4(%arg0: i32, %arg1: i32) -> (i32, i32) {
    %c0_i32 = arith.constant 0 : i32
    %c0_i32_0 = arith.constant 0 : i32
    %c0_i32_1 = arith.constant 0 : i32
    return %c0_i32, %c0_i32_0 : i32, i32
  }
  func.func @transform_5(%arg0: i32, %arg1: i32) -> (i32, i32, i32) {
    %c0_i32 = arith.constant 0 : i32
    %c0_i32_0 = arith.constant 0 : i32
    %c0_i32_1 = arith.constant 0 : i32
    return %c0_i32, %arg0, %c0_i32_0 : i32, i32, i32
  }
  func.func @transform_6(%arg0: i32, %arg1: i32) -> (i32, i32, i32) {
    %c0_i32 = arith.constant 0 : i32
    %c0_i32_0 = arith.constant 0 : i32
    return %arg1, %arg0, %c0_i32 : i32, i32, i32
  }
}

</mosaic_0001>

<llo_original>
// kernel: tpu_custom_call.1
$region0: #{tpu_custom_call.1}
  #allocation0 [shape = 'u32[]', space=smem, size = 0x4, offset = 0x4, fixed_abs, tag = 'smem constant byte address 0x4 - core index']
  #allocation1 [shape = 'u32[144,128]{1,0:T(1,128)}', space=vmem, size = 0x12000, scoped, tag = 'internal scratch']
  #allocation4 [shape = 's32[]', space=sflag, size = 0x4, offset = 0, fixed_abs, tag = 'sflag constant byte address 0x0 - dummy sync flag']
  %s0 = inlined_call_operand.vmem [shape: f32[2,256,32], index: 0, kind: input, shape index: {}]
  %s1 = inlined_call_operand.vmem [shape: f32[32,96], index: 1, kind: input, shape index: {}]
  %s2 = inlined_call_operand.vmem [shape: f32[1,96], index: 2, kind: input, shape index: {}]
  %s3 = inlined_call_operand.vmem [shape: f32[32,32], index: 3, kind: input, shape index: {}]
  %s4 = inlined_call_operand.vmem [shape: f32[1,32], index: 4, kind: input, shape index: {}]
  %s5 = inlined_call_operand.hbm [shape: bf16[4,256,256], index: 5, kind: input, shape index: {}]
  %s6 = inlined_call_operand.vmem [shape: f32[2,256,32], index: 6, kind: output, shape index: {}]
  %s7 = sld [smem:[#allocation0]]
  $region61: #{tpu_custom_call.1} parent=0
    _
  %s9 = ssub.s32 1, %s7
  %s10 = scalar_select 0, %s9, %s7
  $region1: #{tpu_custom_call.1} parent=0
    #allocation2 [shape = 'u8[524288]{0}', space=vmem, size = 0x80000, scoped, tag = 'input window, operand 5']
    #allocation3 [shape = 's32[2]{0}', space=sflag, size = 0x8, scoped, tag = 'scoped memory for tpu_custom_call.1']
    %11 = vsyncpa [#allocation3], 0
    %s12 = scalar_lea.sflag [#allocation3], 1
    %13 = vsyncpa %s12, 0
    loop: start=0, step=1, limit=6
    $region2: #{tpu_custom_call.1} parent=1 // loop_pre_header
      _
    $region3: #{tpu_custom_call.1} parent=1 // loop_header
      %s15 = sphi 0, %s19
      %p16 = scmp.ge.s32.totalorder %s15, 6
      %s22 = sphi 0, %s34
      %s23 = sphi 0, %s30
      %s24 = sphi 0, %s22
      %s25 = sphi 0, %s23
      %s26 = sphi 0, %s24
      %s27 = sphi 0, %s25
      %s37 = sphi 0, %s39
      %s40 = sphi 0, %s37
      %s41 = sphi 0, %s40
      %s57 = sphi 0, %s41
      %s61 = sphi 0, %s61
      %s63 = sphi 0, %s61
      %s64 = sphi 0, %s63
      %s78 = sphi 0, %s64
      %s82 = sphi 0, %s82
      %s84 = sphi 0, %s82
      %s85 = sphi 0, %s84
      %s99 = sphi 0, %s85
      %s103 = sphi 0, %s103
      %s105 = sphi 0, %s103
      %s106 = sphi 0, %s105
      %s120 = sphi 0, %s106
      %s124 = sphi 0, %s124
      %s126 = sphi 0, %s124
      %s127 = sphi 0, %s126
      %s141 = sphi 0, %s127
      %s147 = sphi 0, %s149
      %s150 = sphi 0, %s147
      %s151 = sphi 0, %s150
      %s167 = sphi 0, %s151
      %s175 = sphi 0, %s177
      %s178 = sphi 0, %s175
      %s179 = sphi 0, %s178
      %s195 = sphi 0, %s179
    $region4: #{tpu_custom_call.1} parent=1 // loop_header_branch
      %18 = sbr.rel (%p16) target = $region8
    $region5: #{tpu_custom_call.1} parent=1 // loop_body
      %s20 = ssub.s32 %s15, 1
      %s21 = ssub.s32 %s15, 2
      %s28 = sadd.s32 1, %s23
      %p29 = scmp.ge.s32.totalorder %s28, 2
      %s30 = scalar_select %p29, 0, %s28
      %s31 = sadd.s32 1, %s22
      %s32 = scalar_select %p29, %s31, %s22
      %p33 = scmp.ge.s32.totalorder %s32, 2
      %s34 = scalar_select %p33, 0, %s32
      %s35 = ssub.s32 %s23, %s30
      %p36 = scmp.eq.s32.totalorder %s35, 0
      %s38 = sadd.s32 %s37, 1
      %s39 = scalar_select %p36, %s37, %s38
      %p42 = pneg %p36
      %p43 = scmp.eq.s32.totalorder %s15, 3
      %p44 = por %p42, %p43
      %p45 = scmp.ne.s32.totalorder %s37, %s40
      %p46 = scmp.eq.s32.totalorder %s15, 0
      %p47 = por %p45, %p46
      %p48 = scmp.ne.s32.totalorder %s37, %s40
      %p49 = scmp.eq.s32.totalorder %s20, 3
      %p50 = por %p48, %p49
      %p51 = scmp.ne.s32.totalorder %s40, %s41
      %p52 = scmp.eq.s32.totalorder %s20, 0
      %p53 = por %p51, %p52
      %p54 = scmp.ne.s32.totalorder %s40, %s41
      %p55 = scmp.eq.s32.totalorder %s21, 3
      %p56 = por %p54, %p55
      %p58 = scmp.ne.s32.totalorder %s41, %s57
      %p59 = scmp.eq.s32.totalorder %s21, 0
      %p60 = por %p58, %p59
      %s62 = sadd.s32 %s61, 1
      %p65 = scmp.eq.s32.totalorder %s15, 3
      %p66 = scmp.ne.s32.totalorder %s61, %s63
      %p67 = scmp.eq.s32.totalorder %s15, 0
      %p68 = por %p66, %p67
      %p69 = scmp.ne.s32.totalorder %s61, %s63
      %p70 = scmp.eq.s32.totalorder %s20, 3
      %p71 = por %p69, %p70
      %p72 = scmp.ne.s32.totalorder %s63, %s64
      %p73 = scmp.eq.s32.totalorder %s20, 0
      %p74 = por %p72, %p73
      %p75 = scmp.ne.s32.totalorder %s63, %s64
      %p76 = scmp.eq.s32.totalorder %s21, 3
      %p77 = por %p75, %p76
      %p79 = scmp.ne.s32.totalorder %s64, %s78
      %p80 = scmp.eq.s32.totalorder %s21, 0
      %p81 = por %p79, %p80
      %s83 = sadd.s32 %s82, 1
      %p86 = scmp.eq.s32.totalorder %s15, 3
      %p87 = scmp.ne.s32.totalorder %s82, %s84
      %p88 = scmp.eq.s32.totalorder %s15, 0
      %p89 = por %p87, %p88
      %p90 = scmp.ne.s32.totalorder %s82, %s84
      %p91 = scmp.eq.s32.totalorder %s20, 3
      %p92 = por %p90, %p91
      %p93 = scmp.ne.s32.totalorder %s84, %s85
      %p94 = scmp.eq.s32.totalorder %s20, 0
      %p95 = por %p93, %p94
      %p96 = scmp.ne.s32.totalorder %s84, %s85
      %p97 = scmp.eq.s32.totalorder %s21, 3
      %p98 = por %p96, %p97
      %p100 = scmp.ne.s32.totalorder %s85, %s99
      %p101 = scmp.eq.s32.totalorder %s21, 0
      %p102 = por %p100, %p101
      %s104 = sadd.s32 %s103, 1
      %p107 = scmp.eq.s32.totalorder %s15, 3
      %p108 = scmp.ne.s32.totalorder %s103, %s105
      %p109 = scmp.eq.s32.totalorder %s15, 0
      %p110 = por %p108, %p109
      %p111 = scmp.ne.s32.totalorder %s103, %s105
      %p112 = scmp.eq.s32.totalorder %s20, 3
      %p113 = por %p111, %p112
      %p114 = scmp.ne.s32.totalorder %s105, %s106
      %p115 = scmp.eq.s32.totalorder %s20, 0
      %p116 = por %p114, %p115
      %p117 = scmp.ne.s32.totalorder %s105, %s106
      %p118 = scmp.eq.s32.totalorder %s21, 3
      %p119 = por %p117, %p118
      %p121 = scmp.ne.s32.totalorder %s106, %s120
      %p122 = scmp.eq.s32.totalorder %s21, 0
      %p123 = por %p121, %p122
      %s125 = sadd.s32 %s124, 1
      %p128 = scmp.eq.s32.totalorder %s15, 3
      %p129 = scmp.ne.s32.totalorder %s124, %s126
      %p130 = scmp.eq.s32.totalorder %s15, 0
      %p131 = por %p129, %p130
      %p132 = scmp.ne.s32.totalorder %s124, %s126
      %p133 = scmp.eq.s32.totalorder %s20, 3
      %p134 = por %p132, %p133
      %p135 = scmp.ne.s32.totalorder %s126, %s127
      %p136 = scmp.eq.s32.totalorder %s20, 0
      %p137 = por %p135, %p136
      %p138 = scmp.ne.s32.totalorder %s126, %s127
      %p139 = scmp.eq.s32.totalorder %s21, 3
      %p140 = por %p138, %p139
      %p142 = scmp.ne.s32.totalorder %s127, %s141
      %p143 = scmp.eq.s32.totalorder %s21, 0
      %p144 = por %p142, %p143
      %s145 = ssub.s32 %s22, %s34
      %p146 = scmp.eq.s32.totalorder %s145, 0
      %s148 = sadd.s32 %s147, 1
      %s149 = scalar_select %p146, %s147, %s148
      %p152 = pneg %p146
      %p153 = scmp.eq.s32.totalorder %s15, 3
      %p154 = por %p152, %p153
      %p155 = scmp.ne.s32.totalorder %s147, %s150
      %p156 = scmp.eq.s32.totalorder %s15, 0
      %p157 = por %p155, %p156
      %p158 = scmp.ne.s32.totalorder %s147, %s150
      %p159 = scmp.eq.s32.totalorder %s20, 3
      %p160 = por %p158, %p159
      %p161 = scmp.ne.s32.totalorder %s150, %s151
      %p162 = scmp.eq.s32.totalorder %s20, 0
      %p163 = por %p161, %p162
      %p164 = scmp.ne.s32.totalorder %s150, %s151
      %p165 = scmp.eq.s32.totalorder %s21, 3
      %p166 = por %p164, %p165
      %p168 = scmp.ne.s32.totalorder %s151, %s167
      %p169 = scmp.eq.s32.totalorder %s21, 0
      %p170 = por %p168, %p169
      %s171 = ssub.s32 %s23, %s30
      %s172 = ssub.s32 %s22, %s34
      %s173 = sor.u32 %s171, %s172
      %p174 = scmp.eq.s32.totalorder %s173, 0
      %s176 = sadd.s32 %s175, 1
      %s177 = scalar_select %p174, %s175, %s176
      %p180 = pneg %p174
      %p181 = scmp.eq.s32.totalorder %s15, 3
      %p182 = por %p180, %p181
      %p183 = scmp.ne.s32.totalorder %s175, %s178
      %p184 = scmp.eq.s32.totalorder %s15, 0
      %p185 = por %p183, %p184
      %p186 = scmp.ne.s32.totalorder %s175, %s178
      %p187 = scmp.eq.s32.totalorder %s20, 3
      %p188 = por %p186, %p187
      %p189 = scmp.ne.s32.totalorder %s178, %s179
      %p190 = scmp.eq.s32.totalorder %s20, 0
      %p191 = por %p189, %p190
      %p192 = scmp.ne.s32.totalorder %s178, %s179
      %p193 = scmp.eq.s32.totalorder %s21, 3
      %p194 = por %p192, %p193
      %p196 = scmp.ne.s32.totalorder %s179, %s195
      %p197 = scmp.eq.s32.totalorder %s21, 0
      %p198 = por %p196, %p197
      %p199 = scmp.le.s32.totalorder 1, %s15
      %p200 = scmp.lt.s32.totalorder %s15, 5
      %p201 = pnand %p199, %p200
      %p202 = pneg %p201
      // Predicated region
      $region9: #{tpu_custom_call.1} parent=5 // pred_check
        _
      $region10: #{tpu_custom_call.1} parent=5 // pred_check_branch
        %204 = sbr.rel (%p201) target = $region12
      $region11: #{tpu_custom_call.1} parent=5 // pred_region
        %s205 = ssub.s32 %s15, 1
        // Predicated region
        $region13: #{tpu_custom_call.1} parent=11 // pred_check
          %p206 = pneg %p74
        $region14: #{tpu_custom_call.1} parent=11 // pred_check_branch
          %208 = sbr.rel (%p206) target = $region16
        $region15: #{tpu_custom_call.1} parent=11 // pred_region
          _
        $region16: #{tpu_custom_call.1} parent=11 // pred_fallthru
          _
        // Predicated region
        $region17: #{tpu_custom_call.1} parent=11 // pred_check
          %p209 = pneg %p95
        $region18: #{tpu_custom_call.1} parent=11 // pred_check_branch
          %211 = sbr.rel (%p209) target = $region20
        $region19: #{tpu_custom_call.1} parent=11 // pred_region
          _
        $region20: #{tpu_custom_call.1} parent=11 // pred_fallthru
          _
        // Predicated region
        $region21: #{tpu_custom_call.1} parent=11 // pred_check
          %p212 = pneg %p116
        $region22: #{tpu_custom_call.1} parent=11 // pred_check_branch
          %214 = sbr.rel (%p212) target = $region24
        $region23: #{tpu_custom_call.1} parent=11 // pred_region
          _
        $region24: #{tpu_custom_call.1} parent=11 // pred_fallthru
          _
        // Predicated region
        $region25: #{tpu_custom_call.1} parent=11 // pred_check
          %p215 = pneg %p137
        $region26: #{tpu_custom_call.1} parent=11 // pred_check_branch
          %217 = sbr.rel (%p215) target = $region28
        $region27: #{tpu_custom_call.1} parent=11 // pred_region
          _
        $region28: #{tpu_custom_call.1} parent=11 // pred_fallthru
          _
      $region12: #{tpu_custom_call.1} parent=5 // pred_fallthru
        _
      %p218 = scmp.lt.s32.totalorder %s15, 4
      // Predicated region
      $region29: #{tpu_custom_call.1} parent=5 // pred_check
        %p219 = pneg %p218
      $region30: #{tpu_custom_call.1} parent=5 // pred_check_branch
        %221 = sbr.rel (%p219) target = $region32
      $region31: #{tpu_custom_call.1} parent=5 // pred_region
        // Predicated region
        $region33: #{tpu_custom_call.1} parent=31 // pred_check
          %p222 = pneg %p47
        $region34: #{tpu_custom_call.1} parent=31 // pred_check_branch
          %224 = sbr.rel (%p222) target = $region36
        $region35: #{tpu_custom_call.1} parent=31 // pred_region
          %p225 = scmp.lt.s32.totalorder %s23, 1
          %s226 = scalar_select %p225, %s23, 1
          %s227 = smul.addr %s226, 32
          %s228 = smul.addr %s227, 8
          %s229 = scalar_lea.vmem %s0, %s228
        $region36: #{tpu_custom_call.1} parent=31 // pred_fallthru
          _
        // Predicated region
        $region37: #{tpu_custom_call.1} parent=31 // pred_check
          %p230 = pneg %p157
        $region38: #{tpu_custom_call.1} parent=31 // pred_check_branch
          %232 = sbr.rel (%p230) target = $region40
        $region39: #{tpu_custom_call.1} parent=31 // pred_region
          #allocation5 [shape = 'u32[6]{0}', space=smem, size = 0x18, scoped, tag = 'DMA stride descriptor']
          %s233 = sand.u32 %s147, 1
          %s234 = scalar_lea.sflag [#allocation3], %s233
          %s235 = sand.u32 %s147, 1
          %s236 = smul.addr %s235, 512
          %s237 = scalar_lea.vmem [#allocation2], %s236
          %s238 = smul.u32 16, %s22
          %s240 = ssub.s32 8192, 8192
          %241 = vsyncadd %s234, %s240
          %s242 = smul.addr %s238, 2
          %s243 = smul.addr %s242, 64
          %s244 = scalar_lea.hbm %s5, %s243
          %s246 = sshll.u32 1, 14
          %s247 = sxor.u32 4294967295, %s246
          %s249 = sld [smem:[#allocation0]]
          %s250 = sadd.s32 2, %s249
          %s252 = sshll.u32 7, 26
          %s253 = sxor.u32 4294967295, %s252
          %s254 = sand.u32 0, %s253
          %s255 = sshll.u32 %s250, 26
          %s256 = sor.u32 %s254, %s255
          %s257 = sshll.u32 %s237, 4
          %s258 = int_to_ptr.vmem [resolvable:$true] %s257
          %264 = sst [smem:[#allocation5]] 4096
          %s265 = scalar_lea.smem [#allocation5], 1
          %266 = sst [smem:[%s265]] 2048
          %s267 = scalar_lea.smem [#allocation5], 2
          %268 = sst [smem:[%s267]] 16
          %s269 = scalar_lea.smem [#allocation5], 3
          %270 = sst [smem:[%s269]] 128
          %s271 = scalar_lea.smem [#allocation5], 4
          %272 = sst [smem:[%s271]] 128
          %s273 = scalar_lea.smem [#allocation5], 5
          %274 = sst [smem:[%s273]] 8
          %276 = dma.general %s244, 8192, %s258, %s234, 131072, [#allocation5], %s256, 0
        $region40: #{tpu_custom_call.1} parent=31 // pred_fallthru
          _
      $region32: #{tpu_custom_call.1} parent=5 // pred_fallthru
        _
      %p277 = scmp.le.s32.totalorder 1, %s15
      %p278 = scmp.lt.s32.totalorder %s15, 5
      %p279 = pnand %p277, %p278
      %p280 = pneg %p279
      // Predicated region
      $region41: #{tpu_custom_call.1} parent=5 // pred_check
        _
      $region42: #{tpu_custom_call.1} parent=5 // pred_check_branch
        %282 = sbr.rel (%p279) target = $region44
      $region43: #{tpu_custom_call.1} parent=5 // pred_region
        %s283 = ssub.s32 %s15, 1
        %s284 = sand.u32 %s150, 1
        %s285 = scalar_lea.sflag [#allocation3], %s284
        %s286 = sand.u32 %s150, 1
        %s287 = smul.addr %s286, 512
        %s288 = scalar_lea.vmem [#allocation2], %s287
        // Predicated region
        $region45: #{tpu_custom_call.1} parent=43 // pred_check
          %p289 = pneg %p163
        $region46: #{tpu_custom_call.1} parent=43 // pred_check_branch
          %291 = sbr.rel (%p289) target = $region48
        $region47: #{tpu_custom_call.1} parent=43 // pred_region
          %292 = dma.done %s285, 8192
        $region48: #{tpu_custom_call.1} parent=43 // pred_fallthru
          _
        %p293 = scmp.lt.s32.totalorder %s25, 1
        %s294 = scalar_select %p293, %s25, 1
        %s295 = smul.addr %s294, 32
        %s296 = smul.addr %s295, 8
        %s297 = scalar_lea.vmem %s0, %s296
        %p298 = pneg %p53
        %p299 = pneg %p50
        %p300 = pneg %p74
        %p301 = pneg %p71
        %p302 = pneg %p95
        %p303 = pneg %p92
        %p304 = pneg %p116
        %p305 = pneg %p113
        %p306 = pneg %p137
        %p307 = pneg %p134
        %s308 = sand.u32 %s150, 1
        %s309 = scalar_lea.sflag [#allocation3], %s308
        %s310 = sand.u32 %s150, 1
        %s311 = smul.addr %s310, 512
        %s312 = scalar_lea.vmem [#allocation2], %s311
        %p313 = pneg %p163
        %p314 = pneg %p160
        %p315 = pneg %p191
        %p316 = pneg %p188
        %s317 = smul.u32 16, %s24
        %p318 = scmp.lt.s32.totalorder %s25, 1
        %s319 = scalar_select %p318, %s25, 1
        %p320 = scmp.lt.s32.totalorder %s317, 31
        %s321 = scalar_select %p320, %s317, 31
        %s322 = smul.addr %s319, 32
        %s323 = sadd.s32 %s321, %s322
        %s324 = smul.addr %s323, 8
        %s325 = scalar_lea.vmem %s6, %s324
        %p326 = scmp.lt.s32.totalorder %s25, 1
        %s327 = scalar_select %p326, %s25, 1
        %s328 = smul.addr %s327, 32
        %s329 = smul.addr %s328, 8
        %s330 = scalar_lea.vmem %s0, %s329
        %s331 = smul.u32 16, %s24
        %s332 = smul.u32 16, %s24
        %p333 = scmp.lt.s32.totalorder %s25, 1
        %s334 = scalar_select %p333, %s25, 1
        %p335 = scmp.lt.s32.totalorder %s332, 31
        %s336 = scalar_select %p335, %s332, 31
        %s337 = smul.addr %s334, 32
        %s338 = sadd.s32 %s336, %s337
        %s339 = smul.addr %s338, 8
        %s340 = scalar_lea.vmem %s6, %s339
        %s341 = smul.u32 16, %s24
        %s342 = smul.u32 %s24, 128
        %v343 = vld [vmem:[%s1] sm:$0xff]
        %v344 = vld [vmem:[%s1 + $0x8] sm:$0xff]
        %v345 = vld [vmem:[%s1 + $0x10] sm:$0xff]
        %v346 = vld [vmem:[%s1 + $0x18] sm:$0xff]
        %v347 = vld [vmem:[%s2] sm:$0x1]
        %v348 = vld [vmem:[%s330] sm:$0xff]
        %v349 = vld [vmem:[%s330 + $0x8] sm:$0xff]
        %v350 = vld [vmem:[%s330 + $0x10] sm:$0xff]
        %v351 = vld [vmem:[%s330 + $0x18] sm:$0xff]
        %v352 = vld [vmem:[%s330 + $0x20] sm:$0xff]
        %v353 = vld [vmem:[%s330 + $0x28] sm:$0xff]
        %v354 = vld [vmem:[%s330 + $0x30] sm:$0xff]
        %v355 = vld [vmem:[%s330 + $0x38] sm:$0xff]
        %v356 = vld [vmem:[%s330 + $0x40] sm:$0xff]
        %v357 = vld [vmem:[%s330 + $0x48] sm:$0xff]
        %v358 = vld [vmem:[%s330 + $0x50] sm:$0xff]
        %v359 = vld [vmem:[%s330 + $0x58] sm:$0xff]
        %v360 = vld [vmem:[%s330 + $0x60] sm:$0xff]
        %v361 = vld [vmem:[%s330 + $0x68] sm:$0xff]
        %v362 = vld [vmem:[%s330 + $0x70] sm:$0xff]
        %v363 = vld [vmem:[%s330 + $0x78] sm:$0xff]
        %v364 = vld [vmem:[%s330 + $0x80] sm:$0xff]
        %v365 = vld [vmem:[%s330 + $0x88] sm:$0xff]
        %v366 = vld [vmem:[%s330 + $0x90] sm:$0xff]
        %v367 = vld [vmem:[%s330 + $0x98] sm:$0xff]
        %v368 = vld [vmem:[%s330 + $0xa0] sm:$0xff]
        %v369 = vld [vmem:[%s330 + $0xa8] sm:$0xff]
        %v370 = vld [vmem:[%s330 + $0xb0] sm:$0xff]
        %v371 = vld [vmem:[%s330 + $0xb8] sm:$0xff]
        %v372 = vld [vmem:[%s330 + $0xc0] sm:$0xff]
        %v373 = vld [vmem:[%s330 + $0xc8] sm:$0xff]
        %v374 = vld [vmem:[%s330 + $0xd0] sm:$0xff]
        %v375 = vld [vmem:[%s330 + $0xd8] sm:$0xff]
        %v376 = vld [vmem:[%s330 + $0xe0] sm:$0xff]
        %v377 = vld [vmem:[%s330 + $0xe8] sm:$0xff]
        %v378 = vld [vmem:[%s330 + $0xf0] sm:$0xff]
        %v379 = vld [vmem:[%s330 + $0xf8] sm:$0xff]
        %s380 = scalar_lea.vmem %s330, %s342
        %v381 = vld [vmem:[%s380] sm:$0xff]
        %v382 = vld [vmem:[%s380 + $0x8] sm:$0xff]
        %v383 = vld [vmem:[%s380 + $0x10] sm:$0xff]
        %v384 = vld [vmem:[%s380 + $0x18] sm:$0xff]
        %v385 = vld [vmem:[%s380 + $0x20] sm:$0xff]
        %v386 = vld [vmem:[%s380 + $0x28] sm:$0xff]
        %v387 = vld [vmem:[%s380 + $0x30] sm:$0xff]
        %v388 = vld [vmem:[%s380 + $0x38] sm:$0xff]
        %v389 = vld [vmem:[%s380 + $0x40] sm:$0xff]
        %v390 = vld [vmem:[%s380 + $0x48] sm:$0xff]
        %v391 = vld [vmem:[%s380 + $0x50] sm:$0xff]
        %v392 = vld [vmem:[%s380 + $0x58] sm:$0xff]
        %v393 = vld [vmem:[%s380 + $0x60] sm:$0xff]
        %v394 = vld [vmem:[%s380 + $0x68] sm:$0xff]
        %v395 = vld [vmem:[%s380 + $0x70] sm:$0xff]
        %v396 = vld [vmem:[%s380 + $0x78] sm:$0xff]
        %v398 = vlaneseq
        %v399 = vshrl.u32 %v398, 7
        %v400 = vsub.s32 0, %v399
        %v401 = vrot.slane %v347, %v400
        %vm403 = vcmask 261120
        %v405 = vsel %vm403, %v381, 0
        %v408 = vsel %vm403, %v382, 0
        %v411 = vsel %vm403, %v383, 0
        %v414 = vsel %vm403, %v384, 0
        %v417 = vsel %vm403, %v385, 0
        %v420 = vsel %vm403, %v386, 0
        %v423 = vsel %vm403, %v387, 0
        %v426 = vsel %vm403, %v388, 0
        %v429 = vsel %vm403, %v389, 0
        %v432 = vsel %vm403, %v390, 0
        %v435 = vsel %vm403, %v391, 0
        %v438 = vsel %vm403, %v392, 0
        %v441 = vsel %vm403, %v393, 0
        %v444 = vsel %vm403, %v394, 0
        %v447 = vsel %vm403, %v395, 0
        %v450 = vsel %vm403, %v396, 0
        %452 = vmatprep.subr.mxu0 0.0
        %453 = vmatpush1.msra.mxu0 0.0
        %454 = vmatprep.subr.mxu0 0.0
        %455 = vmatpush1.msra.mxu0 0.0
        %456 = vmatprep.subr.mxu0 0.0
        %457 = vmatpush1.msra.mxu0 0.0
        %458 = vmatprep.subr.mxu0 0.0
        %459 = vmatpush1.msra.mxu0 0.0
        %460 = vmatprep.subr.mxu0 0.0
        %461 = vmatpush1.msra.mxu0 0.0
        %462 = vmatprep.subr.mxu0 0.0
        %463 = vmatpush1.msra.mxu0 0.0
        %464 = vmatprep.subr.mxu0 0.0
        %465 = vmatpush1.msra.mxu0 0.0
        %466 = vmatprep.subr.mxu0 0.0
        %467 = vmatpush1.msra.mxu0 0.0
        %468 = vmatprep.subr.mxu0 0.0
        %469 = vmatpush1.msra.mxu0 0.0
        %470 = vmatprep.subr.mxu0 0.0
        %471 = vmatpush1.msra.mxu0 0.0
        %472 = vmatprep.subr.mxu0 0.0
        %473 = vmatpush1.msra.mxu0 0.0
        %474 = vmatprep.subr.mxu0 0.0
        %475 = vmatpush1.msra.mxu0 0.0
        %476 = vmatprep.subr.mxu0 0.0
        %477 = vmatpush1.msra.mxu0 %v346
        %478 = vmatprep.subr.mxu0 0.0
        %479 = vmatpush1.msra.mxu0 %v345
        %480 = vmatprep.subr.mxu0 0.0
        %481 = vmatpush1.msra.mxu0 %v344
        %482 = vmatprep.subr.mxu0 0.0
        %483 = vmatpush1.msra.mxu0 %v343
        %484 = vmatprep.subr.mxu0 0.0
        %485 = vmatpush2.msra.mxu0 0.0
        %486 = vmatprep.subr.mxu0 0.0
        %487 = vmatpush2.msra.mxu0 0.0
        %488 = vmatprep.subr.mxu0 0.0
        %489 = vmatpush2.msra.mxu0 0.0
        %490 = vmatprep.subr.mxu0 0.0
        %491 = vmatpush2.msra.mxu0 0.0
        %492 = vmatprep.subr.mxu0 0.0
        %493 = vmatpush2.msra.mxu0 0.0
        %494 = vmatprep.subr.mxu0 0.0
        %495 = vmatpush2.msra.mxu0 0.0
        %496 = vmatprep.subr.mxu0 0.0
        %497 = vmatpush2.msra.mxu0 0.0
        %498 = vmatprep.subr.mxu0 0.0
        %499 = vmatpush2.msra.mxu0 0.0
        %500 = vmatprep.subr.mxu0 0.0
        %501 = vmatpush2.msra.mxu0 0.0
        %502 = vmatprep.subr.mxu0 0.0
        %503 = vmatpush2.msra.mxu0 0.0
        %504 = vmatprep.subr.mxu0 0.0
        %505 = vmatpush2.msra.mxu0 0.0
        %506 = vmatprep.subr.mxu0 0.0
        %507 = vmatpush2.msra.mxu0 0.0
        %508 = vmatprep.subr.mxu0 0.0
        %509 = vmatpush2.msra.mxu0 0.0
        %510 = vmatprep.subr.mxu0 0.0
        %511 = vmatpush2.msra.mxu0 0.0
        %512 = vmatprep.subr.mxu0 0.0
        %513 = vmatpush2.msra.mxu0 0.0
        %514 = vmatprep.subr.mxu0 0.0
        %515 = vmatpush2.msra.mxu0 0.0
        %516 = vmatprep.mubr.f32.mxu0 0.0
        %517 = vmatmul.mubr.f32.gmra.mxu0 %v405
        %v518 = vpop.f32.mrf.mxu0
        %v519 = vadd.f32 %v401, %v518
        %v520 = vpop.f32.mrf.mxu0
        %521 = vmatprep.mubr.f32.mxu0 0.0
        %522 = vmatmul.mubr.f32.gmra.mxu0 %v408
        %v523 = vpop.f32.mrf.mxu0
        %v524 = vadd.f32 %v401, %v523
        %v525 = vpop.f32.mrf.mxu0
        %526 = vmatprep.mubr.f32.mxu0 0.0
        %527 = vmatmul.mubr.f32.gmra.mxu0 %v411
        %v528 = vpop.f32.mrf.mxu0
        %v529 = vadd.f32 %v401, %v528
        %v530 = vpop.f32.mrf.mxu0
        %531 = vmatprep.mubr.f32.mxu0 0.0
        %532 = vmatmul.mubr.f32.gmra.mxu0 %v414
        %v533 = vpop.f32.mrf.mxu0
        %v534 = vadd.f32 %v401, %v533
        %v535 = vpop.f32.mrf.mxu0
        %536 = vmatprep.mubr.f32.mxu0 0.0
        %537 = vmatmul.mubr.f32.gmra.mxu0 %v417
        %v538 = vpop.f32.mrf.mxu0
        %v539 = vadd.f32 %v401, %v538
        %v540 = vpop.f32.mrf.mxu0
        %541 = vmatprep.mubr.f32.mxu0 0.0
        %542 = vmatmul.mubr.f32.gmra.mxu0 %v420
        %v543 = vpop.f32.mrf.mxu0
        %v544 = vadd.f32 %v401, %v543
        %v545 = vpop.f32.mrf.mxu0
        %546 = vmatprep.mubr.f32.mxu0 0.0
        %547 = vmatmul.mubr.f32.gmra.mxu0 %v423
        %v548 = vpop.f32.mrf.mxu0
        %v549 = vadd.f32 %v401, %v548
        %v550 = vpop.f32.mrf.mxu0
        %551 = vmatprep.mubr.f32.mxu0 0.0
        %552 = vmatmul.mubr.f32.gmra.mxu0 %v426
        %v553 = vpop.f32.mrf.mxu0
        %v554 = vadd.f32 %v401, %v553
        %v555 = vpop.f32.mrf.mxu0
        %556 = vmatprep.mubr.f32.mxu0 0.0
        %557 = vmatmul.mubr.f32.gmra.mxu0 %v429
        %v558 = vpop.f32.mrf.mxu0
        %v559 = vadd.f32 %v401, %v558
        %v560 = vpop.f32.mrf.mxu0
        %561 = vmatprep.mubr.f32.mxu0 0.0
        %562 = vmatmul.mubr.f32.gmra.mxu0 %v432
        %v563 = vpop.f32.mrf.mxu0
        %v564 = vadd.f32 %v401, %v563
        %v565 = vpop.f32.mrf.mxu0
        %566 = vmatprep.mubr.f32.mxu0 0.0
        %567 = vmatmul.mubr.f32.gmra.mxu0 %v435
        %v568 = vpop.f32.mrf.mxu0
        %v569 = vadd.f32 %v401, %v568
        %v570 = vpop.f32.mrf.mxu0
        %571 = vmatprep.mubr.f32.mxu0 0.0
        %572 = vmatmul.mubr.f32.gmra.mxu0 %v438
        %v573 = vpop.f32.mrf.mxu0
        %v574 = vadd.f32 %v401, %v573
        %v575 = vpop.f32.mrf.mxu0
        %576 = vmatprep.mubr.f32.mxu0 0.0
        %577 = vmatmul.mubr.f32.gmra.mxu0 %v441
        %v578 = vpop.f32.mrf.mxu0
        %v579 = vadd.f32 %v401, %v578
        %v580 = vpop.f32.mrf.mxu0
        %581 = vmatprep.mubr.f32.mxu0 0.0
        %582 = vmatmul.mubr.f32.gmra.mxu0 %v444
        %v583 = vpop.f32.mrf.mxu0
        %v584 = vadd.f32 %v401, %v583
        %v585 = vpop.f32.mrf.mxu0
        %586 = vmatprep.mubr.f32.mxu0 0.0
        %587 = vmatmul.mubr.f32.gmra.mxu0 %v447
        %v588 = vpop.f32.mrf.mxu0
        %v589 = vadd.f32 %v401, %v588
        %v590 = vpop.f32.mrf.mxu0
        %591 = vmatprep.mubr.f32.mxu0 0.0
        %592 = vmatmul.mubr.f32.gmra.mxu0 %v450
        %v593 = vpop.f32.mrf.mxu0
        %v594 = vadd.f32 %v401, %v593
        %v595 = vpop.f32.mrf.mxu0
        %596 = vdwg.mxu0
        %601 = vrot.lane.b32.xlu0 %v343, 96
        %v602 = vpop.permute.xlu0 %601
        %603 = vrot.lane.b32.xlu0 %v344, 96
        %v604 = vpop.permute.xlu0 %603
        %605 = vrot.lane.b32.xlu0 %v345, 96
        %v606 = vpop.permute.xlu0 %605
        %607 = vrot.lane.b32.xlu0 %v346, 96
        %v608 = vpop.permute.xlu0 %607
        %613 = vrot.lane.b32.xlu0 %v401, 96
        %v614 = vpop.permute.xlu0 %613
        %v617 = vsel %vm403, %v348, 0
        %v620 = vsel %vm403, %v349, 0
        %v623 = vsel %vm403, %v350, 0
        %v626 = vsel %vm403, %v351, 0
        %v629 = vsel %vm403, %v352, 0
        %v632 = vsel %vm403, %v353, 0
        %v635 = vsel %vm403, %v354, 0
        %v638 = vsel %vm403, %v355, 0
        %v641 = vsel %vm403, %v356, 0
        %v644 = vsel %vm403, %v357, 0
        %v647 = vsel %vm403, %v358, 0
        %v650 = vsel %vm403, %v359, 0
        %v653 = vsel %vm403, %v360, 0
        %v656 = vsel %vm403, %v361, 0
        %v659 = vsel %vm403, %v362, 0
        %v662 = vsel %vm403, %v363, 0
        %v665 = vsel %vm403, %v364, 0
        %v668 = vsel %vm403, %v365, 0
        %v671 = vsel %vm403, %v366, 0
        %v674 = vsel %vm403, %v367, 0
        %v677 = vsel %vm403, %v368, 0
        %v680 = vsel %vm403, %v369, 0
        %v683 = vsel %vm403, %v370, 0
        %v686 = vsel %vm403, %v371, 0
        %v689 = vsel %vm403, %v372, 0
        %v692 = vsel %vm403, %v373, 0
        %v695 = vsel %vm403, %v374, 0
        %v698 = vsel %vm403, %v375, 0
        %v701 = vsel %vm403, %v376, 0
        %v704 = vsel %vm403, %v377, 0
        %v707 = vsel %vm403, %v378, 0
        %v710 = vsel %vm403, %v379, 0
        %712 = vmatprep.subr.mxu0 0.0
        %713 = vmatpush1.msra.mxu0 0.0
        %714 = vmatprep.subr.mxu0 0.0
        %715 = vmatpush1.msra.mxu0 0.0
        %716 = vmatprep.subr.mxu0 0.0
        %717 = vmatpush1.msra.mxu0 0.0
        %718 = vmatprep.subr.mxu0 0.0
        %719 = vmatpush1.msra.mxu0 0.0
        %720 = vmatprep.subr.mxu0 0.0
        %721 = vmatpush1.msra.mxu0 0.0
        %722 = vmatprep.subr.mxu0 0.0
        %723 = vmatpush1.msra.mxu0 0.0
        %724 = vmatprep.subr.mxu0 0.0
        %725 = vmatpush1.msra.mxu0 0.0
        %726 = vmatprep.subr.mxu0 0.0
        %727 = vmatpush1.msra.mxu0 0.0
        %728 = vmatprep.subr.mxu0 0.0
        %729 = vmatpush1.msra.mxu0 0.0
        %730 = vmatprep.subr.mxu0 0.0
        %731 = vmatpush1.msra.mxu0 0.0
        %732 = vmatprep.subr.mxu0 0.0
        %733 = vmatpush1.msra.mxu0 0.0
        %734 = vmatprep.subr.mxu0 0.0
        %735 = vmatpush1.msra.mxu0 0.0
        %736 = vmatprep.subr.mxu0 0.0
        %737 = vmatpush1.msra.mxu0 %v608
        %738 = vmatprep.subr.mxu0 0.0
        %739 = vmatpush1.msra.mxu0 %v606
        %740 = vmatprep.subr.mxu0 0.0
        %741 = vmatpush1.msra.mxu0 %v604
        %742 = vmatprep.subr.mxu0 0.0
        %743 = vmatpush1.msra.mxu0 %v602
        %744 = vmatprep.subr.mxu0 0.0
        %745 = vmatpush2.msra.mxu0 0.0
        %746 = vmatprep.subr.mxu0 0.0
        %747 = vmatpush2.msra.mxu0 0.0
        %748 = vmatprep.subr.mxu0 0.0
        %749 = vmatpush2.msra.mxu0 0.0
        %750 = vmatprep.subr.mxu0 0.0
        %751 = vmatpush2.msra.mxu0 0.0
        %752 = vmatprep.subr.mxu0 0.0
        %753 = vmatpush2.msra.mxu0 0.0
        %754 = vmatprep.subr.mxu0 0.0
        %755 = vmatpush2.msra.mxu0 0.0
        %756 = vmatprep.subr.mxu0 0.0
        %757 = vmatpush2.msra.mxu0 0.0
        %758 = vmatprep.subr.mxu0 0.0
        %759 = vmatpush2.msra.mxu0 0.0
        %760 = vmatprep.subr.mxu0 0.0
        %761 = vmatpush2.msra.mxu0 0.0
        %762 = vmatprep.subr.mxu0 0.0
        %763 = vmatpush2.msra.mxu0 0.0
        %764 = vmatprep.subr.mxu0 0.0
        %765 = vmatpush2.msra.mxu0 0.0
        %766 = vmatprep.subr.mxu0 0.0
        %767 = vmatpush2.msra.mxu0 0.0
        %768 = vmatprep.subr.mxu0 0.0
        %769 = vmatpush2.msra.mxu0 0.0
        %770 = vmatprep.subr.mxu0 0.0
        %771 = vmatpush2.msra.mxu0 0.0
        %772 = vmatprep.subr.mxu0 0.0
        %773 = vmatpush2.msra.mxu0 0.0
        %774 = vmatprep.subr.mxu0 0.0
        %775 = vmatpush2.msra.mxu0 0.0
        %776 = vmatprep.mubr.f32.mxu0 0.0
        %777 = vmatmul.mubr.f32.gmra.mxu0 %v617
        %v778 = vpop.f32.mrf.mxu0
        %v779 = vadd.f32 %v614, %v778
        %v780 = vpop.f32.mrf.mxu0
        %781 = vmatprep.mubr.f32.mxu0 0.0
        %782 = vmatmul.mubr.f32.gmra.mxu0 %v620
        %v783 = vpop.f32.mrf.mxu0
        %v784 = vadd.f32 %v614, %v783
        %v785 = vpop.f32.mrf.mxu0
        %786 = vmatprep.mubr.f32.mxu0 0.0
        %787 = vmatmul.mubr.f32.gmra.mxu0 %v623
        %v788 = vpop.f32.mrf.mxu0
        %v789 = vadd.f32 %v614, %v788
        %v790 = vpop.f32.mrf.mxu0
        %791 = vmatprep.mubr.f32.mxu0 0.0
        %792 = vmatmul.mubr.f32.gmra.mxu0 %v626
        %v793 = vpop.f32.mrf.mxu0
        %v794 = vadd.f32 %v614, %v793
        %v795 = vpop.f32.mrf.mxu0
        %796 = vmatprep.mubr.f32.mxu0 0.0
        %797 = vmatmul.mubr.f32.gmra.mxu0 %v629
        %v798 = vpop.f32.mrf.mxu0
        %v799 = vadd.f32 %v614, %v798
        %v800 = vpop.f32.mrf.mxu0
        %801 = vmatprep.mubr.f32.mxu0 0.0
        %802 = vmatmul.mubr.f32.gmra.mxu0 %v632
        %v803 = vpop.f32.mrf.mxu0
        %v804 = vadd.f32 %v614, %v803
        %v805 = vpop.f32.mrf.mxu0
        %806 = vmatprep.mubr.f32.mxu0 0.0
        %807 = vmatmul.mubr.f32.gmra.mxu0 %v635
        %v808 = vpop.f32.mrf.mxu0
        %v809 = vadd.f32 %v614, %v808
        %v810 = vpop.f32.mrf.mxu0
        %811 = vmatprep.mubr.f32.mxu0 0.0
        %812 = vmatmul.mubr.f32.gmra.mxu0 %v638
        %v813 = vpop.f32.mrf.mxu0
        %v814 = vadd.f32 %v614, %v813
        %v815 = vpop.f32.mrf.mxu0
        %816 = vmatprep.mubr.f32.mxu0 0.0
        %817 = vmatmul.mubr.f32.gmra.mxu0 %v641
        %v818 = vpop.f32.mrf.mxu0
        %v819 = vadd.f32 %v614, %v818
        %v820 = vpop.f32.mrf.mxu0
        %821 = vmatprep.mubr.f32.mxu0 0.0
        %822 = vmatmul.mubr.f32.gmra.mxu0 %v644
        %v823 = vpop.f32.mrf.mxu0
        %v824 = vadd.f32 %v614, %v823
        %v825 = vpop.f32.mrf.mxu0
        %826 = vmatprep.mubr.f32.mxu0 0.0
        %827 = vmatmul.mubr.f32.gmra.mxu0 %v647
        %v828 = vpop.f32.mrf.mxu0
        %v829 = vadd.f32 %v614, %v828
        %v830 = vpop.f32.mrf.mxu0
        %831 = vmatprep.mubr.f32.mxu0 0.0
        %832 = vmatmul.mubr.f32.gmra.mxu0 %v650
        %v833 = vpop.f32.mrf.mxu0
        %v834 = vadd.f32 %v614, %v833
        %v835 = vpop.f32.mrf.mxu0
        %836 = vmatprep.mubr.f32.mxu0 0.0
        %837 = vmatmul.mubr.f32.gmra.mxu0 %v653
        %v838 = vpop.f32.mrf.mxu0
        %v839 = vadd.f32 %v614, %v838
        %v840 = vpop.f32.mrf.mxu0
        %841 = vmatprep.mubr.f32.mxu0 0.0
        %842 = vmatmul.mubr.f32.gmra.mxu0 %v656
        %v843 = vpop.f32.mrf.mxu0
        %v844 = vadd.f32 %v614, %v843
        %v845 = vpop.f32.mrf.mxu0
        %846 = vmatprep.mubr.f32.mxu0 0.0
        %847 = vmatmul.mubr.f32.gmra.mxu0 %v659
        %v848 = vpop.f32.mrf.mxu0
        %v849 = vadd.f32 %v614, %v848
        %v850 = vpop.f32.mrf.mxu0
        %851 = vmatprep.mubr.f32.mxu0 0.0
        %852 = vmatmul.mubr.f32.gmra.mxu0 %v662
        %v853 = vpop.f32.mrf.mxu0
        %v854 = vadd.f32 %v614, %v853
        %v855 = vpop.f32.mrf.mxu0
        %856 = vmatprep.mubr.f32.mxu0 0.0
        %857 = vmatmul.mubr.f32.gmra.mxu0 %v665
        %v858 = vpop.f32.mrf.mxu0
        %v859 = vadd.f32 %v614, %v858
        %v860 = vpop.f32.mrf.mxu0
        %861 = vmatprep.mubr.f32.mxu0 0.0
        %862 = vmatmul.mubr.f32.gmra.mxu0 %v668
        %v863 = vpop.f32.mrf.mxu0
        %v864 = vadd.f32 %v614, %v863
        %v865 = vpop.f32.mrf.mxu0
        %866 = vmatprep.mubr.f32.mxu0 0.0
        %867 = vmatmul.mubr.f32.gmra.mxu0 %v671
        %v868 = vpop.f32.mrf.mxu0
        %v869 = vadd.f32 %v614, %v868
        %v870 = vpop.f32.mrf.mxu0
        %871 = vmatprep.mubr.f32.mxu0 0.0
        %872 = vmatmul.mubr.f32.gmra.mxu0 %v674
        %v873 = vpop.f32.mrf.mxu0
        %v874 = vadd.f32 %v614, %v873
        %v875 = vpop.f32.mrf.mxu0
        %876 = vmatprep.mubr.f32.mxu0 0.0
        %877 = vmatmul.mubr.f32.gmra.mxu0 %v677
        %v878 = vpop.f32.mrf.mxu0
        %v879 = vadd.f32 %v614, %v878
        %v880 = vpop.f32.mrf.mxu0
        %881 = vmatprep.mubr.f32.mxu0 0.0
        %882 = vmatmul.mubr.f32.gmra.mxu0 %v680
        %v883 = vpop.f32.mrf.mxu0
        %v884 = vadd.f32 %v614, %v883
        %v885 = vpop.f32.mrf.mxu0
        %886 = vmatprep.mubr.f32.mxu0 0.0
        %887 = vmatmul.mubr.f32.gmra.mxu0 %v683
        %v888 = vpop.f32.mrf.mxu0
        %v889 = vadd.f32 %v614, %v888
        %v890 = vpop.f32.mrf.mxu0
        %891 = vmatprep.mubr.f32.mxu0 0.0
        %892 = vmatmul.mubr.f32.gmra.mxu0 %v686
        %v893 = vpop.f32.mrf.mxu0
        %v894 = vadd.f32 %v614, %v893
        %v895 = vpop.f32.mrf.mxu0
        %896 = vmatprep.mubr.f32.mxu0 0.0
        %897 = vmatmul.mubr.f32.gmra.mxu0 %v689
        %v898 = vpop.f32.mrf.mxu0
        %v899 = vadd.f32 %v614, %v898
        %v900 = vpop.f32.mrf.mxu0
        %901 = vmatprep.mubr.f32.mxu0 0.0
        %902 = vmatmul.mubr.f32.gmra.mxu0 %v692
        %v903 = vpop.f32.mrf.mxu0
        %v904 = vadd.f32 %v614, %v903
        %v905 = vpop.f32.mrf.mxu0
        %906 = vmatprep.mubr.f32.mxu0 0.0
        %907 = vmatmul.mubr.f32.gmra.mxu0 %v695
        %v908 = vpop.f32.mrf.mxu0
        %v909 = vadd.f32 %v614, %v908
        %v910 = vpop.f32.mrf.mxu0
        %911 = vmatprep.mubr.f32.mxu0 0.0
        %912 = vmatmul.mubr.f32.gmra.mxu0 %v698
        %v913 = vpop.f32.mrf.mxu0
        %v914 = vadd.f32 %v614, %v913
        %v915 = vpop.f32.mrf.mxu0
        %916 = vmatprep.mubr.f32.mxu0 0.0
        %917 = vmatmul.mubr.f32.gmra.mxu0 %v701
        %v918 = vpop.f32.mrf.mxu0
        %v919 = vadd.f32 %v614, %v918
        %v920 = vpop.f32.mrf.mxu0
        %921 = vmatprep.mubr.f32.mxu0 0.0
        %922 = vmatmul.mubr.f32.gmra.mxu0 %v704
        %v923 = vpop.f32.mrf.mxu0
        %v924 = vadd.f32 %v614, %v923
        %v925 = vpop.f32.mrf.mxu0
        %926 = vmatprep.mubr.f32.mxu0 0.0
        %927 = vmatmul.mubr.f32.gmra.mxu0 %v707
        %v928 = vpop.f32.mrf.mxu0
        %v929 = vadd.f32 %v614, %v928
        %v930 = vpop.f32.mrf.mxu0
        %931 = vmatprep.mubr.f32.mxu0 0.0
        %932 = vmatmul.mubr.f32.gmra.mxu0 %v710
        %v933 = vpop.f32.mrf.mxu0
        %v934 = vadd.f32 %v614, %v933
        %v935 = vpop.f32.mrf.mxu0
        %936 = vdwg.mxu0
        %v937 = vld [vmem:[%s3] sm:$0xff]
        %v938 = vld [vmem:[%s3 + $0x8] sm:$0xff]
        %v939 = vld [vmem:[%s3 + $0x10] sm:$0xff]
        %v940 = vld [vmem:[%s3 + $0x18] sm:$0xff]
        %v941 = vld [vmem:[%s288] sm:$0xff]
        %v942 = vld [vmem:[%s288 + $0x8] sm:$0xff]
        %v943 = vld [vmem:[%s288 + $0x10] sm:$0xff]
        %v944 = vld [vmem:[%s288 + $0x18] sm:$0xff]
        %v945 = vld [vmem:[%s288 + $0x20] sm:$0xff]
        %v946 = vld [vmem:[%s288 + $0x28] sm:$0xff]
        %v947 = vld [vmem:[%s288 + $0x30] sm:$0xff]
        %v948 = vld [vmem:[%s288 + $0x38] sm:$0xff]
        %v949 = vld [vmem:[%s288 + $0x40] sm:$0xff]
        %v950 = vld [vmem:[%s288 + $0x48] sm:$0xff]
        %v951 = vld [vmem:[%s288 + $0x50] sm:$0xff]
        %v952 = vld [vmem:[%s288 + $0x58] sm:$0xff]
        %v953 = vld [vmem:[%s288 + $0x60] sm:$0xff]
        %v954 = vld [vmem:[%s288 + $0x68] sm:$0xff]
        %v955 = vld [vmem:[%s288 + $0x70] sm:$0xff]
        %v956 = vld [vmem:[%s288 + $0x78] sm:$0xff]
        %v957 = vunpack.c.l.bf16 %v941
        %v958 = vunpack.c.h.bf16 %v941
        %v959 = vunpack.c.l.bf16 %v942
        %v960 = vunpack.c.h.bf16 %v942
        %v961 = vunpack.c.l.bf16 %v943
        %v962 = vunpack.c.h.bf16 %v943
        %v963 = vunpack.c.l.bf16 %v944
        %v964 = vunpack.c.h.bf16 %v944
        %v965 = vunpack.c.l.bf16 %v945
        %v966 = vunpack.c.h.bf16 %v945
        %v967 = vunpack.c.l.bf16 %v946
        %v968 = vunpack.c.h.bf16 %v946
        %v969 = vunpack.c.l.bf16 %v947
        %v970 = vunpack.c.h.bf16 %v947
        %v971 = vunpack.c.l.bf16 %v948
        %v972 = vunpack.c.h.bf16 %v948
        %v973 = vunpack.c.l.bf16 %v949
        %v974 = vunpack.c.h.bf16 %v949
        %v975 = vunpack.c.l.bf16 %v950
        %v976 = vunpack.c.h.bf16 %v950
        %v977 = vunpack.c.l.bf16 %v951
        %v978 = vunpack.c.h.bf16 %v951
        %v979 = vunpack.c.l.bf16 %v952
        %v980 = vunpack.c.h.bf16 %v952
        %v981 = vunpack.c.l.bf16 %v953
        %v982 = vunpack.c.h.bf16 %v953
        %v983 = vunpack.c.l.bf16 %v954
        %v984 = vunpack.c.h.bf16 %v954
        %v985 = vunpack.c.l.bf16 %v955
        %v986 = vunpack.c.h.bf16 %v955
        %v987 = vunpack.c.l.bf16 %v956
        %v988 = vunpack.c.h.bf16 %v956
        %vm989 = vcmask 64512
        %v991 = vsel %vm989, %v519, 0
        %v994 = vsel %vm989, %v524, 0
        %v997 = vsel %vm989, %v529, 0
        %v1000 = vsel %vm989, %v534, 0
        %v1003 = vsel %vm989, %v539, 0
        %v1006 = vsel %vm989, %v544, 0
        %v1009 = vsel %vm989, %v549, 0
        %v1012 = vsel %vm989, %v554, 0
        %v1015 = vsel %vm989, %v559, 0
        %v1018 = vsel %vm989, %v564, 0
        %v1021 = vsel %vm989, %v569, 0
        %v1024 = vsel %vm989, %v574, 0
        %v1027 = vsel %vm989, %v579, 0
        %v1030 = vsel %vm989, %v584, 0
        %v1033 = vsel %vm989, %v589, 0
        %v1036 = vsel %vm989, %v594, 0
        %v1039 = vsel %vm989, %v779, 0
        %v1042 = vsel %vm989, %v784, 0
        %v1045 = vsel %vm989, %v789, 0
        %v1048 = vsel %vm989, %v794, 0
        %v1051 = vsel %vm989, %v799, 0
        %v1054 = vsel %vm989, %v804, 0
        %v1057 = vsel %vm989, %v809, 0
        %v1060 = vsel %vm989, %v814, 0
        %v1063 = vsel %vm989, %v819, 0
        %v1066 = vsel %vm989, %v824, 0
        %v1069 = vsel %vm989, %v829, 0
        %v1072 = vsel %vm989, %v834, 0
        %v1075 = vsel %vm989, %v839, 0
        %v1078 = vsel %vm989, %v844, 0
        %v1081 = vsel %vm989, %v849, 0
        %v1084 = vsel %vm989, %v854, 0
        %v1087 = vsel %vm989, %v859, 0
        %v1090 = vsel %vm989, %v864, 0
        %v1093 = vsel %vm989, %v869, 0
        %v1096 = vsel %vm989, %v874, 0
        %v1099 = vsel %vm989, %v879, 0
        %v1102 = vsel %vm989, %v884, 0
        %v1105 = vsel %vm989, %v889, 0
        %v1108 = vsel %vm989, %v894, 0
        %v1111 = vsel %vm989, %v899, 0
        %v1114 = vsel %vm989, %v904, 0
        %v1117 = vsel %vm989, %v909, 0
        %v1120 = vsel %vm989, %v914, 0
        %v1123 = vsel %vm989, %v919, 0
        %v1126 = vsel %vm989, %v924, 0
        %v1129 = vsel %vm989, %v929, 0
        %v1132 = vsel %vm989, %v934, 0
        %1134 = vmatprep.subr.mxu0 0.0
        %1135 = vmatpush1.xpose.msra.mxu0 %v1084
        %1136 = vmatprep.subr.mxu0 0.0
        %1137 = vmatpush1.xpose.msra.mxu0 %v1081
        %1138 = vmatprep.subr.mxu0 0.0
        %1139 = vmatpush1.xpose.msra.mxu0 %v1078
        %1140 = vmatprep.subr.mxu0 0.0
        %1141 = vmatpush1.xpose.msra.mxu0 %v1075
        %1142 = vmatprep.subr.mxu0 0.0
        %1143 = vmatpush1.xpose.msra.mxu0 %v1072
        %1144 = vmatprep.subr.mxu0 0.0
        %1145 = vmatpush1.xpose.msra.mxu0 %v1069
        %1146 = vmatprep.subr.mxu0 0.0
        %1147 = vmatpush1.xpose.msra.mxu0 %v1066
        %1148 = vmatprep.subr.mxu0 0.0
        %1149 = vmatpush1.xpose.msra.mxu0 %v1063
        %1150 = vmatprep.subr.mxu0 0.0
        %1151 = vmatpush1.xpose.msra.mxu0 %v1060
        %1152 = vmatprep.subr.mxu0 0.0
        %1153 = vmatpush1.xpose.msra.mxu0 %v1057
        %1154 = vmatprep.subr.mxu0 0.0
        %1155 = vmatpush1.xpose.msra.mxu0 %v1054
        %1156 = vmatprep.subr.mxu0 0.0
        %1157 = vmatpush1.xpose.msra.mxu0 %v1051
        %1158 = vmatprep.subr.mxu0 0.0
        %1159 = vmatpush1.xpose.msra.mxu0 %v1048
        %1160 = vmatprep.subr.mxu0 0.0
        %1161 = vmatpush1.xpose.msra.mxu0 %v1045
        %1162 = vmatprep.subr.mxu0 0.0
        %1163 = vmatpush1.xpose.msra.mxu0 %v1042
        %1164 = vmatprep.subr.mxu0 0.0
        %1165 = vmatpush1.xpose.msra.mxu0 %v1039
        %1166 = vmatprep.subr.mxu0 0.0
        %1167 = vmatpush2.xpose.msra.mxu0 %v1132
        %1168 = vmatprep.subr.mxu0 0.0
        %1169 = vmatpush2.xpose.msra.mxu0 %v1129
        %1170 = vmatprep.subr.mxu0 0.0
        %1171 = vmatpush2.xpose.msra.mxu0 %v1126
        %1172 = vmatprep.subr.mxu0 0.0
        %1173 = vmatpush2.xpose.msra.mxu0 %v1123
        %1174 = vmatprep.subr.mxu0 0.0
        %1175 = vmatpush2.xpose.msra.mxu0 %v1120
        %1176 = vmatprep.subr.mxu0 0.0
        %1177 = vmatpush2.xpose.msra.mxu0 %v1117
        %1178 = vmatprep.subr.mxu0 0.0
        %1179 = vmatpush2.xpose.msra.mxu0 %v1114
        %1180 = vmatprep.subr.mxu0 0.0
        %1181 = vmatpush2.xpose.msra.mxu0 %v1111
        %1182 = vmatprep.subr.mxu0 0.0
        %1183 = vmatpush2.xpose.msra.mxu0 %v1108
        %1184 = vmatprep.subr.mxu0 0.0
        %1185 = vmatpush2.xpose.msra.mxu0 %v1105
        %1186 = vmatprep.subr.mxu0 0.0
        %1187 = vmatpush2.xpose.msra.mxu0 %v1102
        %1188 = vmatprep.subr.mxu0 0.0
        %1189 = vmatpush2.xpose.msra.mxu0 %v1099
        %1190 = vmatprep.subr.mxu0 0.0
        %1191 = vmatpush2.xpose.msra.mxu0 %v1096
        %1192 = vmatprep.subr.mxu0 0.0
        %1193 = vmatpush2.xpose.msra.mxu0 %v1093
        %1194 = vmatprep.subr.mxu0 0.0
        %1195 = vmatpush2.xpose.msra.mxu0 %v1090
        %1196 = vmatprep.subr.mxu0 0.0
        %1197 = vmatpush2.xpose.msra.mxu0 %v1087
        %1198 = vmatprep.mubr.f32.mxu0 0.0
        %1199 = vmatmul.mubr.f32.gmra.mxu0 %v991
        %v1200 = vpop.f32.mrf.mxu0
        %v1201 = vadd.f32 %v957, %v1200
        %v1202 = vpop.f32.mrf.mxu0
        %v1203 = vadd.f32 %v958, %v1202
        %1204 = vmatprep.mubr.f32.mxu0 0.0
        %1205 = vmatmul.mubr.f32.gmra.mxu0 %v994
        %v1206 = vpop.f32.mrf.mxu0
        %v1207 = vadd.f32 %v959, %v1206
        %v1208 = vpop.f32.mrf.mxu0
        %v1209 = vadd.f32 %v960, %v1208
        %1210 = vmatprep.mubr.f32.mxu0 0.0
        %1211 = vmatmul.mubr.f32.gmra.mxu0 %v997
        %v1212 = vpop.f32.mrf.mxu0
        %v1213 = vadd.f32 %v961, %v1212
        %v1214 = vpop.f32.mrf.mxu0
        %v1215 = vadd.f32 %v962, %v1214
        %1216 = vmatprep.mubr.f32.mxu0 0.0
        %1217 = vmatmul.mubr.f32.gmra.mxu0 %v1000
        %v1218 = vpop.f32.mrf.mxu0
        %v1219 = vadd.f32 %v963, %v1218
        %v1220 = vpop.f32.mrf.mxu0
        %v1221 = vadd.f32 %v964, %v1220
        %1222 = vmatprep.mubr.f32.mxu0 0.0
        %1223 = vmatmul.mubr.f32.gmra.mxu0 %v1003
        %v1224 = vpop.f32.mrf.mxu0
        %v1225 = vadd.f32 %v965, %v1224
        %v1226 = vpop.f32.mrf.mxu0
        %v1227 = vadd.f32 %v966, %v1226
        %1228 = vmatprep.mubr.f32.mxu0 0.0
        %1229 = vmatmul.mubr.f32.gmra.mxu0 %v1006
        %v1230 = vpop.f32.mrf.mxu0
        %v1231 = vadd.f32 %v967, %v1230
        %v1232 = vpop.f32.mrf.mxu0
        %v1233 = vadd.f32 %v968, %v1232
        %1234 = vmatprep.mubr.f32.mxu0 0.0
        %1235 = vmatmul.mubr.f32.gmra.mxu0 %v1009
        %v1236 = vpop.f32.mrf.mxu0
        %v1237 = vadd.f32 %v969, %v1236
        %v1238 = vpop.f32.mrf.mxu0
        %v1239 = vadd.f32 %v970, %v1238
        %1240 = vmatprep.mubr.f32.mxu0 0.0
        %1241 = vmatmul.mubr.f32.gmra.mxu0 %v1012
        %v1242 = vpop.f32.mrf.mxu0
        %v1243 = vadd.f32 %v971, %v1242
        %v1244 = vpop.f32.mrf.mxu0
        %v1245 = vadd.f32 %v972, %v1244
        %1246 = vmatprep.mubr.f32.mxu0 0.0
        %1247 = vmatmul.mubr.f32.gmra.mxu0 %v1015
        %v1248 = vpop.f32.mrf.mxu0
        %v1249 = vadd.f32 %v973, %v1248
        %v1250 = vpop.f32.mrf.mxu0
        %v1251 = vadd.f32 %v974, %v1250
        %1252 = vmatprep.mubr.f32.mxu0 0.0
        %1253 = vmatmul.mubr.f32.gmra.mxu0 %v1018
        %v1254 = vpop.f32.mrf.mxu0
        %v1255 = vadd.f32 %v975, %v1254
        %v1256 = vpop.f32.mrf.mxu0
        %v1257 = vadd.f32 %v976, %v1256
        %1258 = vmatprep.mubr.f32.mxu0 0.0
        %1259 = vmatmul.mubr.f32.gmra.mxu0 %v1021
        %v1260 = vpop.f32.mrf.mxu0
        %v1261 = vadd.f32 %v977, %v1260
        %v1262 = vpop.f32.mrf.mxu0
        %v1263 = vadd.f32 %v978, %v1262
        %1264 = vmatprep.mubr.f32.mxu0 0.0
        %1265 = vmatmul.mubr.f32.gmra.mxu0 %v1024
        %v1266 = vpop.f32.mrf.mxu0
        %v1267 = vadd.f32 %v979, %v1266
        %v1268 = vpop.f32.mrf.mxu0
        %v1269 = vadd.f32 %v980, %v1268
        %1270 = vmatprep.mubr.f32.mxu0 0.0
        %1271 = vmatmul.mubr.f32.gmra.mxu0 %v1027
        %v1272 = vpop.f32.mrf.mxu0
        %v1273 = vadd.f32 %v981, %v1272
        %v1274 = vpop.f32.mrf.mxu0
        %v1275 = vadd.f32 %v982, %v1274
        %1276 = vmatprep.mubr.f32.mxu0 0.0
        %1277 = vmatmul.mubr.f32.gmra.mxu0 %v1030
        %v1278 = vpop.f32.mrf.mxu0
        %v1279 = vadd.f32 %v983, %v1278
        %v1280 = vpop.f32.mrf.mxu0
        %v1281 = vadd.f32 %v984, %v1280
        %1282 = vmatprep.mubr.f32.mxu0 0.0
        %1283 = vmatmul.mubr.f32.gmra.mxu0 %v1033
        %v1284 = vpop.f32.mrf.mxu0
        %v1285 = vadd.f32 %v985, %v1284
        %v1286 = vpop.f32.mrf.mxu0
        %v1287 = vadd.f32 %v986, %v1286
        %1288 = vmatprep.mubr.f32.mxu0 0.0
        %1289 = vmatmul.mubr.f32.gmra.mxu0 %v1036
        %v1290 = vpop.f32.mrf.mxu0
        %v1291 = vadd.f32 %v987, %v1290
        %v1292 = vpop.f32.mrf.mxu0
        %v1293 = vadd.f32 %v988, %v1292
        %1294 = vdwg.mxu0
        %v1295 = vmax.f32 %v1201, %v1203
        %1296 = vmax.xlane.f32.xlu0 %v1295
        %v1297 = vpop.xlane.xlu0 %1296
        %v1298 = vmax.f32 %v1207, %v1209
        %1299 = vmax.xlane.f32.xlu0 %v1298
        %v1300 = vpop.xlane.xlu0 %1299
        %v1301 = vmax.f32 %v1213, %v1215
        %1302 = vmax.xlane.f32.xlu0 %v1301
        %v1303 = vpop.xlane.xlu0 %1302
        %v1304 = vmax.f32 %v1219, %v1221
        %1305 = vmax.xlane.f32.xlu0 %v1304
        %v1306 = vpop.xlane.xlu0 %1305
        %v1307 = vmax.f32 %v1225, %v1227
        %1308 = vmax.xlane.f32.xlu0 %v1307
        %v1309 = vpop.xlane.xlu0 %1308
        %v1310 = vmax.f32 %v1231, %v1233
        %1311 = vmax.xlane.f32.xlu0 %v1310
        %v1312 = vpop.xlane.xlu0 %1311
        %v1313 = vmax.f32 %v1237, %v1239
        %1314 = vmax.xlane.f32.xlu0 %v1313
        %v1315 = vpop.xlane.xlu0 %1314
        %v1316 = vmax.f32 %v1243, %v1245
        %1317 = vmax.xlane.f32.xlu0 %v1316
        %v1318 = vpop.xlane.xlu0 %1317
        %v1319 = vmax.f32 %v1249, %v1251
        %1320 = vmax.xlane.f32.xlu0 %v1319
        %v1321 = vpop.xlane.xlu0 %1320
        %v1322 = vmax.f32 %v1255, %v1257
        %1323 = vmax.xlane.f32.xlu0 %v1322
        %v1324 = vpop.xlane.xlu0 %1323
        %v1325 = vmax.f32 %v1261, %v1263
        %1326 = vmax.xlane.f32.xlu0 %v1325
        %v1327 = vpop.xlane.xlu0 %1326
        %v1328 = vmax.f32 %v1267, %v1269
        %1329 = vmax.xlane.f32.xlu0 %v1328
        %v1330 = vpop.xlane.xlu0 %1329
        %v1331 = vmax.f32 %v1273, %v1275
        %1332 = vmax.xlane.f32.xlu0 %v1331
        %v1333 = vpop.xlane.xlu0 %1332
        %v1334 = vmax.f32 %v1279, %v1281
        %1335 = vmax.xlane.f32.xlu0 %v1334
        %v1336 = vpop.xlane.xlu0 %1335
        %v1337 = vmax.f32 %v1285, %v1287
        %1338 = vmax.xlane.f32.xlu0 %v1337
        %v1339 = vpop.xlane.xlu0 %1338
        %v1340 = vmax.f32 %v1291, %v1293
        %1341 = vmax.xlane.f32.xlu0 %v1340
        %v1342 = vpop.xlane.xlu0 %1341
        %v1343 = vsub.f32 %v1201, %v1297
        %v1344 = vsub.f32 %v1203, %v1297
        %v1345 = vsub.f32 %v1207, %v1300
        %v1346 = vsub.f32 %v1209, %v1300
        %v1347 = vsub.f32 %v1213, %v1303
        %v1348 = vsub.f32 %v1215, %v1303
        %v1349 = vsub.f32 %v1219, %v1306
        %v1350 = vsub.f32 %v1221, %v1306
        %v1351 = vsub.f32 %v1225, %v1309
        %v1352 = vsub.f32 %v1227, %v1309
        %v1353 = vsub.f32 %v1231, %v1312
        %v1354 = vsub.f32 %v1233, %v1312
        %v1355 = vsub.f32 %v1237, %v1315
        %v1356 = vsub.f32 %v1239, %v1315
        %v1357 = vsub.f32 %v1243, %v1318
        %v1358 = vsub.f32 %v1245, %v1318
        %v1359 = vsub.f32 %v1249, %v1321
        %v1360 = vsub.f32 %v1251, %v1321
        %v1361 = vsub.f32 %v1255, %v1324
        %v1362 = vsub.f32 %v1257, %v1324
        %v1363 = vsub.f32 %v1261, %v1327
        %v1364 = vsub.f32 %v1263, %v1327
        %v1365 = vsub.f32 %v1267, %v1330
        %v1366 = vsub.f32 %v1269, %v1330
        %v1367 = vsub.f32 %v1273, %v1333
        %v1368 = vsub.f32 %v1275, %v1333
        %v1369 = vsub.f32 %v1279, %v1336
        %v1370 = vsub.f32 %v1281, %v1336
        %v1371 = vsub.f32 %v1285, %v1339
        %v1372 = vsub.f32 %v1287, %v1339
        %v1373 = vsub.f32 %v1291, %v1342
        %v1374 = vsub.f32 %v1293, %v1342
        %v1375 = vmul.f32 %v1343, 1.442695
        %v1376 = vpow.pop %v1375
        %v1377 = vmul.f32 %v1344, 1.442695
        %v1378 = vpow.pop %v1377
        %v1379 = vmul.f32 %v1345, 1.442695
        %v1380 = vpow.pop %v1379
        %v1381 = vmul.f32 %v1346, 1.442695
        %v1382 = vpow.pop %v1381
        %v1383 = vmul.f32 %v1347, 1.442695
        %v1384 = vpow.pop %v1383
        %v1385 = vmul.f32 %v1348, 1.442695
        %v1386 = vpow.pop %v1385
        %v1387 = vmul.f32 %v1349, 1.442695
        %v1388 = vpow.pop %v1387
        %v1389 = vmul.f32 %v1350, 1.442695
        %v1390 = vpow.pop %v1389
        %v1391 = vmul.f32 %v1351, 1.442695
        %v1392 = vpow.pop %v1391
        %v1393 = vmul.f32 %v1352, 1.442695
        %v1394 = vpow.pop %v1393
        %v1395 = vmul.f32 %v1353, 1.442695
        %v1396 = vpow.pop %v1395
        %v1397 = vmul.f32 %v1354, 1.442695
        %v1398 = vpow.pop %v1397
        %v1399 = vmul.f32 %v1355, 1.442695
        %v1400 = vpow.pop %v1399
        %v1401 = vmul.f32 %v1356, 1.442695
        %v1402 = vpow.pop %v1401
        %v1403 = vmul.f32 %v1357, 1.442695
        %v1404 = vpow.pop %v1403
        %v1405 = vmul.f32 %v1358, 1.442695
        %v1406 = vpow.pop %v1405
        %v1407 = vmul.f32 %v1359, 1.442695
        %v1408 = vpow.pop %v1407
        %v1409 = vmul.f32 %v1360, 1.442695
        %v1410 = vpow.pop %v1409
        %v1411 = vmul.f32 %v1361, 1.442695
        %v1412 = vpow.pop %v1411
        %v1413 = vmul.f32 %v1362, 1.442695
        %v1414 = vpow.pop %v1413
        %v1415 = vmul.f32 %v1363, 1.442695
        %v1416 = vpow.pop %v1415
        %v1417 = vmul.f32 %v1364, 1.442695
        %v1418 = vpow.pop %v1417
        %v1419 = vmul.f32 %v1365, 1.442695
        %v1420 = vpow.pop %v1419
        %v1421 = vmul.f32 %v1366, 1.442695
        %v1422 = vpow.pop %v1421
        %v1423 = vmul.f32 %v1367, 1.442695
        %v1424 = vpow.pop %v1423
        %v1425 = vmul.f32 %v1368, 1.442695
        %v1426 = vpow.pop %v1425
        %v1427 = vmul.f32 %v1369, 1.442695
        %v1428 = vpow.pop %v1427
        %v1429 = vmul.f32 %v1370, 1.442695
        %v1430 = vpow.pop %v1429
        %v1431 = vmul.f32 %v1371, 1.442695
        %v1432 = vpow.pop %v1431
        %v1433 = vmul.f32 %v1372, 1.442695
        %v1434 = vpow.pop %v1433
        %v1435 = vmul.f32 %v1373, 1.442695
        %v1436 = vpow.pop %v1435
        %v1437 = vmul.f32 %v1374, 1.442695
        %v1438 = vpow.pop %v1437
        %v1439 = vadd.f32 %v1376, %v1378
        %1440 = vadd.xlane.f32.xlu0 %v1439
        %v1441 = vpop.xlane.xlu0 %1440
        %v1442 = vadd.f32 %v1380, %v1382
        %1443 = vadd.xlane.f32.xlu0 %v1442
        %v1444 = vpop.xlane.xlu0 %1443
        %v1445 = vadd.f32 %v1384, %v1386
        %1446 = vadd.xlane.f32.xlu0 %v1445
        %v1447 = vpop.xlane.xlu0 %1446
        %v1448 = vadd.f32 %v1388, %v1390
        %1449 = vadd.xlane.f32.xlu0 %v1448
        %v1450 = vpop.xlane.xlu0 %1449
        %v1451 = vadd.f32 %v1392, %v1394
        %1452 = vadd.xlane.f32.xlu0 %v1451
        %v1453 = vpop.xlane.xlu0 %1452
        %v1454 = vadd.f32 %v1396, %v1398
        %1455 = vadd.xlane.f32.xlu0 %v1454
        %v1456 = vpop.xlane.xlu0 %1455
        %v1457 = vadd.f32 %v1400, %v1402
        %1458 = vadd.xlane.f32.xlu0 %v1457
        %v1459 = vpop.xlane.xlu0 %1458
        %v1460 = vadd.f32 %v1404, %v1406
        %1461 = vadd.xlane.f32.xlu0 %v1460
        %v1462 = vpop.xlane.xlu0 %1461
        %v1463 = vadd.f32 %v1408, %v1410
        %1464 = vadd.xlane.f32.xlu0 %v1463
        %v1465 = vpop.xlane.xlu0 %1464
        %v1466 = vadd.f32 %v1412, %v1414
        %1467 = vadd.xlane.f32.xlu0 %v1466
        %v1468 = vpop.xlane.xlu0 %1467
        %v1469 = vadd.f32 %v1416, %v1418
        %1470 = vadd.xlane.f32.xlu0 %v1469
        %v1471 = vpop.xlane.xlu0 %1470
        %v1472 = vadd.f32 %v1420, %v1422
        %1473 = vadd.xlane.f32.xlu0 %v1472
        %v1474 = vpop.xlane.xlu0 %1473
        %v1475 = vadd.f32 %v1424, %v1426
        %1476 = vadd.xlane.f32.xlu0 %v1475
        %v1477 = vpop.xlane.xlu0 %1476
        %v1478 = vadd.f32 %v1428, %v1430
        %1479 = vadd.xlane.f32.xlu0 %v1478
        %v1480 = vpop.xlane.xlu0 %1479
        %v1481 = vadd.f32 %v1432, %v1434
        %1482 = vadd.xlane.f32.xlu0 %v1481
        %v1483 = vpop.xlane.xlu0 %1482
        %v1484 = vadd.f32 %v1436, %v1438
        %1485 = vadd.xlane.f32.xlu0 %v1484
        %v1486 = vpop.xlane.xlu0 %1485
        %v1487 = vrcp.pop %v1441
        %v1488 = vrcp.pop %v1444
        %v1489 = vrcp.pop %v1447
        %v1490 = vrcp.pop %v1450
        %v1491 = vrcp.pop %v1453
        %v1492 = vrcp.pop %v1456
        %v1493 = vrcp.pop %v1459
        %v1494 = vrcp.pop %v1462
        %v1495 = vrcp.pop %v1465
        %v1496 = vrcp.pop %v1468
        %v1497 = vrcp.pop %v1471
        %v1498 = vrcp.pop %v1474
        %v1499 = vrcp.pop %v1477
        %v1500 = vrcp.pop %v1480
        %v1501 = vrcp.pop %v1483
        %v1502 = vrcp.pop %v1486
        %v1503 = vmul.f32 %v1376, %v1487
        %v1504 = vmul.f32 %v1378, %v1487
        %v1505 = vmul.f32 %v1380, %v1488
        %v1506 = vmul.f32 %v1382, %v1488
        %v1507 = vmul.f32 %v1384, %v1489
        %v1508 = vmul.f32 %v1386, %v1489
        %v1509 = vmul.f32 %v1388, %v1490
        %v1510 = vmul.f32 %v1390, %v1490
        %v1511 = vmul.f32 %v1392, %v1491
        %v1512 = vmul.f32 %v1394, %v1491
        %v1513 = vmul.f32 %v1396, %v1492
        %v1514 = vmul.f32 %v1398, %v1492
        %v1515 = vmul.f32 %v1400, %v1493
        %v1516 = vmul.f32 %v1402, %v1493
        %v1517 = vmul.f32 %v1404, %v1494
        %v1518 = vmul.f32 %v1406, %v1494
        %v1519 = vmul.f32 %v1408, %v1495
        %v1520 = vmul.f32 %v1410, %v1495
        %v1521 = vmul.f32 %v1412, %v1496
        %v1522 = vmul.f32 %v1414, %v1496
        %v1523 = vmul.f32 %v1416, %v1497
        %v1524 = vmul.f32 %v1418, %v1497
        %v1525 = vmul.f32 %v1420, %v1498
        %v1526 = vmul.f32 %v1422, %v1498
        %v1527 = vmul.f32 %v1424, %v1499
        %v1528 = vmul.f32 %v1426, %v1499
        %v1529 = vmul.f32 %v1428, %v1500
        %v1530 = vmul.f32 %v1430, %v1500
        %v1531 = vmul.f32 %v1432, %v1501
        %v1532 = vmul.f32 %v1434, %v1501
        %v1533 = vmul.f32 %v1436, %v1502
        %v1534 = vmul.f32 %v1438, %v1502
        %1535 = vrot.lane.b32.xlu0 %v779, 96
        %v1536 = vpop.permute.xlu0 %1535
        %1537 = vrot.lane.b32.xlu0 %v784, 96
        %v1538 = vpop.permute.xlu0 %1537
        %1539 = vrot.lane.b32.xlu0 %v789, 96
        %v1540 = vpop.permute.xlu0 %1539
        %1541 = vrot.lane.b32.xlu0 %v794, 96
        %v1542 = vpop.permute.xlu0 %1541
        %1543 = vrot.lane.b32.xlu0 %v799, 96
        %v1544 = vpop.permute.xlu0 %1543
        %1545 = vrot.lane.b32.xlu0 %v804, 96
        %v1546 = vpop.permute.xlu0 %1545
        %1547 = vrot.lane.b32.xlu0 %v809, 96
        %v1548 = vpop.permute.xlu0 %1547
        %1549 = vrot.lane.b32.xlu0 %v814, 96
        %v1550 = vpop.permute.xlu0 %1549
        %1551 = vrot.lane.b32.xlu0 %v819, 96
        %v1552 = vpop.permute.xlu0 %1551
        %1553 = vrot.lane.b32.xlu0 %v824, 96
        %v1554 = vpop.permute.xlu0 %1553
        %1555 = vrot.lane.b32.xlu0 %v829, 96
        %v1556 = vpop.permute.xlu0 %1555
        %1557 = vrot.lane.b32.xlu0 %v834, 96
        %v1558 = vpop.permute.xlu0 %1557
        %1559 = vrot.lane.b32.xlu0 %v839, 96
        %v1560 = vpop.permute.xlu0 %1559
        %1561 = vrot.lane.b32.xlu0 %v844, 96
        %v1562 = vpop.permute.xlu0 %1561
        %1563 = vrot.lane.b32.xlu0 %v849, 96
        %v1564 = vpop.permute.xlu0 %1563
        %1565 = vrot.lane.b32.xlu0 %v854, 96
        %v1566 = vpop.permute.xlu0 %1565
        %1567 = vrot.lane.b32.xlu0 %v859, 96
        %v1568 = vpop.permute.xlu0 %1567
        %1569 = vrot.lane.b32.xlu0 %v864, 96
        %v1570 = vpop.permute.xlu0 %1569
        %1571 = vrot.lane.b32.xlu0 %v869, 96
        %v1572 = vpop.permute.xlu0 %1571
        %1573 = vrot.lane.b32.xlu0 %v874, 96
        %v1574 = vpop.permute.xlu0 %1573
        %1575 = vrot.lane.b32.xlu0 %v879, 96
        %v1576 = vpop.permute.xlu0 %1575
        %1577 = vrot.lane.b32.xlu0 %v884, 96
        %v1578 = vpop.permute.xlu0 %1577
        %1579 = vrot.lane.b32.xlu0 %v889, 96
        %v1580 = vpop.permute.xlu0 %1579
        %1581 = vrot.lane.b32.xlu0 %v894, 96
        %v1582 = vpop.permute.xlu0 %1581
        %1583 = vrot.lane.b32.xlu0 %v899, 96
        %v1584 = vpop.permute.xlu0 %1583
        %1585 = vrot.lane.b32.xlu0 %v904, 96
        %v1586 = vpop.permute.xlu0 %1585
        %1587 = vrot.lane.b32.xlu0 %v909, 96
        %v1588 = vpop.permute.xlu0 %1587
        %1589 = vrot.lane.b32.xlu0 %v914, 96
        %v1590 = vpop.permute.xlu0 %1589
        %1591 = vrot.lane.b32.xlu0 %v919, 96
        %v1592 = vpop.permute.xlu0 %1591
        %1593 = vrot.lane.b32.xlu0 %v924, 96
        %v1594 = vpop.permute.xlu0 %1593
        %1595 = vrot.lane.b32.xlu0 %v929, 96
        %v1596 = vpop.permute.xlu0 %1595
        %1597 = vrot.lane.b32.xlu0 %v934, 96
        %v1598 = vpop.permute.xlu0 %1597
        %1631 = vmatprep.subr.mxu0 0.0
        %1632 = vmatpush1.msra.mxu0 %v1566
        %1633 = vmatprep.subr.mxu0 0.0
        %1634 = vmatpush1.msra.mxu0 %v1564
        %1635 = vmatprep.subr.mxu0 0.0
        %1636 = vmatpush1.msra.mxu0 %v1562
        %1637 = vmatprep.subr.mxu0 0.0
        %1638 = vmatpush1.msra.mxu0 %v1560
        %1639 = vmatprep.subr.mxu0 0.0
        %1640 = vmatpush1.msra.mxu0 %v1558
        %1641 = vmatprep.subr.mxu0 0.0
        %1642 = vmatpush1.msra.mxu0 %v1556
        %1643 = vmatprep.subr.mxu0 0.0
        %1644 = vmatpush1.msra.mxu0 %v1554
        %1645 = vmatprep.subr.mxu0 0.0
        %1646 = vmatpush1.msra.mxu0 %v1552
        %1647 = vmatprep.subr.mxu0 0.0
        %1648 = vmatpush1.msra.mxu0 %v1550
        %1649 = vmatprep.subr.mxu0 0.0
        %1650 = vmatpush1.msra.mxu0 %v1548
        %1651 = vmatprep.subr.mxu0 0.0
        %1652 = vmatpush1.msra.mxu0 %v1546
        %1653 = vmatprep.subr.mxu0 0.0
        %1654 = vmatpush1.msra.mxu0 %v1544
        %1655 = vmatprep.subr.mxu0 0.0
        %1656 = vmatpush1.msra.mxu0 %v1542
        %1657 = vmatprep.subr.mxu0 0.0
        %1658 = vmatpush1.msra.mxu0 %v1540
        %1659 = vmatprep.subr.mxu0 0.0
        %1660 = vmatpush1.msra.mxu0 %v1538
        %1661 = vmatprep.subr.mxu0 0.0
        %1662 = vmatpush1.msra.mxu0 %v1536
        %1663 = vmatprep.subr.mxu0 0.0
        %1664 = vmatpush2.msra.mxu0 %v1598
        %1665 = vmatprep.subr.mxu0 0.0
        %1666 = vmatpush2.msra.mxu0 %v1596
        %1667 = vmatprep.subr.mxu0 0.0
        %1668 = vmatpush2.msra.mxu0 %v1594
        %1669 = vmatprep.subr.mxu0 0.0
        %1670 = vmatpush2.msra.mxu0 %v1592
        %1671 = vmatprep.subr.mxu0 0.0
        %1672 = vmatpush2.msra.mxu0 %v1590
        %1673 = vmatprep.subr.mxu0 0.0
        %1674 = vmatpush2.msra.mxu0 %v1588
        %1675 = vmatprep.subr.mxu0 0.0
        %1676 = vmatpush2.msra.mxu0 %v1586
        %1677 = vmatprep.subr.mxu0 0.0
        %1678 = vmatpush2.msra.mxu0 %v1584
        %1679 = vmatprep.subr.mxu0 0.0
        %1680 = vmatpush2.msra.mxu0 %v1582
        %1681 = vmatprep.subr.mxu0 0.0
        %1682 = vmatpush2.msra.mxu0 %v1580
        %1683 = vmatprep.subr.mxu0 0.0
        %1684 = vmatpush2.msra.mxu0 %v1578
        %1685 = vmatprep.subr.mxu0 0.0
        %1686 = vmatpush2.msra.mxu0 %v1576
        %1687 = vmatprep.subr.mxu0 0.0
        %1688 = vmatpush2.msra.mxu0 %v1574
        %1689 = vmatprep.subr.mxu0 0.0
        %1690 = vmatpush2.msra.mxu0 %v1572
        %1691 = vmatprep.subr.mxu0 0.0
        %1692 = vmatpush2.msra.mxu0 %v1570
        %1693 = vmatprep.subr.mxu0 0.0
        %1694 = vmatpush2.msra.mxu0 %v1568
        %1695 = vmatprep.mubr.f32.mxu0 %v1504
        %1696 = vmatmul.mubr.f32.gmra.mxu0 %v1503
        %v1697 = vpop.f32.mrf.mxu0
        %v1698 = vadd.f32 0.0, %v1697
        %v1699 = vpop.f32.mrf.mxu0
        %1700 = vmatprep.mubr.f32.mxu0 %v1506
        %1701 = vmatmul.mubr.f32.gmra.mxu0 %v1505
        %v1702 = vpop.f32.mrf.mxu0
        %v1703 = vadd.f32 0.0, %v1702
        %v1704 = vpop.f32.mrf.mxu0
        %1705 = vmatprep.mubr.f32.mxu0 %v1508
        %1706 = vmatmul.mubr.f32.gmra.mxu0 %v1507
        %v1707 = vpop.f32.mrf.mxu0
        %v1708 = vadd.f32 0.0, %v1707
        %v1709 = vpop.f32.mrf.mxu0
        %1710 = vmatprep.mubr.f32.mxu0 %v1510
        %1711 = vmatmul.mubr.f32.gmra.mxu0 %v1509
        %v1712 = vpop.f32.mrf.mxu0
        %v1713 = vadd.f32 0.0, %v1712
        %v1714 = vpop.f32.mrf.mxu0
        %1715 = vmatprep.mubr.f32.mxu0 %v1512
        %1716 = vmatmul.mubr.f32.gmra.mxu0 %v1511
        %v1717 = vpop.f32.mrf.mxu0
        %v1718 = vadd.f32 0.0, %v1717
        %v1719 = vpop.f32.mrf.mxu0
        %1720 = vmatprep.mubr.f32.mxu0 %v1514
        %1721 = vmatmul.mubr.f32.gmra.mxu0 %v1513
        %v1722 = vpop.f32.mrf.mxu0
        %v1723 = vadd.f32 0.0, %v1722
        %v1724 = vpop.f32.mrf.mxu0
        %1725 = vmatprep.mubr.f32.mxu0 %v1516
        %1726 = vmatmul.mubr.f32.gmra.mxu0 %v1515
        %v1727 = vpop.f32.mrf.mxu0
        %v1728 = vadd.f32 0.0, %v1727
        %v1729 = vpop.f32.mrf.mxu0
        %1730 = vmatprep.mubr.f32.mxu0 %v1518
        %1731 = vmatmul.mubr.f32.gmra.mxu0 %v1517
        %v1732 = vpop.f32.mrf.mxu0
        %v1733 = vadd.f32 0.0, %v1732
        %v1734 = vpop.f32.mrf.mxu0
        %1735 = vmatprep.mubr.f32.mxu0 %v1520
        %1736 = vmatmul.mubr.f32.gmra.mxu0 %v1519
        %v1737 = vpop.f32.mrf.mxu0
        %v1738 = vadd.f32 0.0, %v1737
        %v1739 = vpop.f32.mrf.mxu0
        %1740 = vmatprep.mubr.f32.mxu0 %v1522
        %1741 = vmatmul.mubr.f32.gmra.mxu0 %v1521
        %v1742 = vpop.f32.mrf.mxu0
        %v1743 = vadd.f32 0.0, %v1742
        %v1744 = vpop.f32.mrf.mxu0
        %1745 = vmatprep.mubr.f32.mxu0 %v1524
        %1746 = vmatmul.mubr.f32.gmra.mxu0 %v1523
        %v1747 = vpop.f32.mrf.mxu0
        %v1748 = vadd.f32 0.0, %v1747
        %v1749 = vpop.f32.mrf.mxu0
        %1750 = vmatprep.mubr.f32.mxu0 %v1526
        %1751 = vmatmul.mubr.f32.gmra.mxu0 %v1525
        %v1752 = vpop.f32.mrf.mxu0
        %v1753 = vadd.f32 0.0, %v1752
        %v1754 = vpop.f32.mrf.mxu0
        %1755 = vmatprep.mubr.f32.mxu0 %v1528
        %1756 = vmatmul.mubr.f32.gmra.mxu0 %v1527
        %v1757 = vpop.f32.mrf.mxu0
        %v1758 = vadd.f32 0.0, %v1757
        %v1759 = vpop.f32.mrf.mxu0
        %1760 = vmatprep.mubr.f32.mxu0 %v1530
        %1761 = vmatmul.mubr.f32.gmra.mxu0 %v1529
        %v1762 = vpop.f32.mrf.mxu0
        %v1763 = vadd.f32 0.0, %v1762
        %v1764 = vpop.f32.mrf.mxu0
        %1765 = vmatprep.mubr.f32.mxu0 %v1532
        %1766 = vmatmul.mubr.f32.gmra.mxu0 %v1531
        %v1767 = vpop.f32.mrf.mxu0
        %v1768 = vadd.f32 0.0, %v1767
        %v1769 = vpop.f32.mrf.mxu0
        %1770 = vmatprep.mubr.f32.mxu0 %v1534
        %1771 = vmatmul.mubr.f32.gmra.mxu0 %v1533
        %v1772 = vpop.f32.mrf.mxu0
        %v1773 = vadd.f32 0.0, %v1772
        %v1774 = vpop.f32.mrf.mxu0
        %1775 = vdwg.mxu0
        %s1776 = scalar_lea.vmem %s288, 128 [#allocation2]
        %v1777 = vld [vmem:[%s1776] sm:$0xff]
        %v1778 = vld [vmem:[%s1776 + $0x8] sm:$0xff]
        %v1779 = vld [vmem:[%s1776 + $0x10] sm:$0xff]
        %v1780 = vld [vmem:[%s1776 + $0x18] sm:$0xff]
        %v1781 = vld [vmem:[%s1776 + $0x20] sm:$0xff]
        %v1782 = vld [vmem:[%s1776 + $0x28] sm:$0xff]
        %v1783 = vld [vmem:[%s1776 + $0x30] sm:$0xff]
        %v1784 = vld [vmem:[%s1776 + $0x38] sm:$0xff]
        %v1785 = vld [vmem:[%s1776 + $0x40] sm:$0xff]
        %v1786 = vld [vmem:[%s1776 + $0x48] sm:$0xff]
        %v1787 = vld [vmem:[%s1776 + $0x50] sm:$0xff]
        %v1788 = vld [vmem:[%s1776 + $0x58] sm:$0xff]
        %v1789 = vld [vmem:[%s1776 + $0x60] sm:$0xff]
        %v1790 = vld [vmem:[%s1776 + $0x68] sm:$0xff]
        %v1791 = vld [vmem:[%s1776 + $0x70] sm:$0xff]
        %v1792 = vld [vmem:[%s1776 + $0x78] sm:$0xff]
        %v1793 = vunpack.c.l.bf16 %v1777
        %v1794 = vunpack.c.h.bf16 %v1777
        %v1795 = vunpack.c.l.bf16 %v1778
        %v1796 = vunpack.c.h.bf16 %v1778
        %v1797 = vunpack.c.l.bf16 %v1779
        %v1798 = vunpack.c.h.bf16 %v1779
        %v1799 = vunpack.c.l.bf16 %v1780
        %v1800 = vunpack.c.h.bf16 %v1780
        %v1801 = vunpack.c.l.bf16 %v1781
        %v1802 = vunpack.c.h.bf16 %v1781
        %v1803 = vunpack.c.l.bf16 %v1782
        %v1804 = vunpack.c.h.bf16 %v1782
        %v1805 = vunpack.c.l.bf16 %v1783
        %v1806 = vunpack.c.h.bf16 %v1783
        %v1807 = vunpack.c.l.bf16 %v1784
        %v1808 = vunpack.c.h.bf16 %v1784
        %v1809 = vunpack.c.l.bf16 %v1785
        %v1810 = vunpack.c.h.bf16 %v1785
        %v1811 = vunpack.c.l.bf16 %v1786
        %v1812 = vunpack.c.h.bf16 %v1786
        %v1813 = vunpack.c.l.bf16 %v1787
        %v1814 = vunpack.c.h.bf16 %v1787
        %v1815 = vunpack.c.l.bf16 %v1788
        %v1816 = vunpack.c.h.bf16 %v1788
        %v1817 = vunpack.c.l.bf16 %v1789
        %v1818 = vunpack.c.h.bf16 %v1789
        %v1819 = vunpack.c.l.bf16 %v1790
        %v1820 = vunpack.c.h.bf16 %v1790
        %v1821 = vunpack.c.l.bf16 %v1791
        %v1822 = vunpack.c.h.bf16 %v1791
        %v1823 = vunpack.c.l.bf16 %v1792
        %v1824 = vunpack.c.h.bf16 %v1792
        %1825 = vrot.lane.b32.xlu0 %v519, 120
        %v1826 = vpop.permute.xlu0 %1825
        %1827 = vrot.lane.b32.xlu0 %v524, 120
        %v1828 = vpop.permute.xlu0 %1827
        %1829 = vrot.lane.b32.xlu0 %v529, 120
        %v1830 = vpop.permute.xlu0 %1829
        %1831 = vrot.lane.b32.xlu0 %v534, 120
        %v1832 = vpop.permute.xlu0 %1831
        %1833 = vrot.lane.b32.xlu0 %v539, 120
        %v1834 = vpop.permute.xlu0 %1833
        %1835 = vrot.lane.b32.xlu0 %v544, 120
        %v1836 = vpop.permute.xlu0 %1835
        %1837 = vrot.lane.b32.xlu0 %v549, 120
        %v1838 = vpop.permute.xlu0 %1837
        %1839 = vrot.lane.b32.xlu0 %v554, 120
        %v1840 = vpop.permute.xlu0 %1839
        %1841 = vrot.lane.b32.xlu0 %v559, 120
        %v1842 = vpop.permute.xlu0 %1841
        %1843 = vrot.lane.b32.xlu0 %v564, 120
        %v1844 = vpop.permute.xlu0 %1843
        %1845 = vrot.lane.b32.xlu0 %v569, 120
        %v1846 = vpop.permute.xlu0 %1845
        %1847 = vrot.lane.b32.xlu0 %v574, 120
        %v1848 = vpop.permute.xlu0 %1847
        %1849 = vrot.lane.b32.xlu0 %v579, 120
        %v1850 = vpop.permute.xlu0 %1849
        %1851 = vrot.lane.b32.xlu0 %v584, 120
        %v1852 = vpop.permute.xlu0 %1851
        %1853 = vrot.lane.b32.xlu0 %v589, 120
        %v1854 = vpop.permute.xlu0 %1853
        %1855 = vrot.lane.b32.xlu0 %v594, 120
        %v1856 = vpop.permute.xlu0 %1855
        %1857 = vrot.lane.b32.xlu0 %v779, 120
        %v1858 = vpop.permute.xlu0 %1857
        %1859 = vrot.lane.b32.xlu0 %v784, 120
        %v1860 = vpop.permute.xlu0 %1859
        %1861 = vrot.lane.b32.xlu0 %v789, 120
        %v1862 = vpop.permute.xlu0 %1861
        %1863 = vrot.lane.b32.xlu0 %v794, 120
        %v1864 = vpop.permute.xlu0 %1863
        %1865 = vrot.lane.b32.xlu0 %v799, 120
        %v1866 = vpop.permute.xlu0 %1865
        %1867 = vrot.lane.b32.xlu0 %v804, 120
        %v1868 = vpop.permute.xlu0 %1867
        %1869 = vrot.lane.b32.xlu0 %v809, 120
        %v1870 = vpop.permute.xlu0 %1869
        %1871 = vrot.lane.b32.xlu0 %v814, 120
        %v1872 = vpop.permute.xlu0 %1871
        %1873 = vrot.lane.b32.xlu0 %v819, 120
        %v1874 = vpop.permute.xlu0 %1873
        %1875 = vrot.lane.b32.xlu0 %v824, 120
        %v1876 = vpop.permute.xlu0 %1875
        %1877 = vrot.lane.b32.xlu0 %v829, 120
        %v1878 = vpop.permute.xlu0 %1877
        %1879 = vrot.lane.b32.xlu0 %v834, 120
        %v1880 = vpop.permute.xlu0 %1879
        %1881 = vrot.lane.b32.xlu0 %v839, 120
        %v1882 = vpop.permute.xlu0 %1881
        %1883 = vrot.lane.b32.xlu0 %v844, 120
        %v1884 = vpop.permute.xlu0 %1883
        %1885 = vrot.lane.b32.xlu0 %v849, 120
        %v1886 = vpop.permute.xlu0 %1885
        %1887 = vrot.lane.b32.xlu0 %v854, 120
        %v1888 = vpop.permute.xlu0 %1887
        %1889 = vrot.lane.b32.xlu0 %v859, 120
        %v1890 = vpop.permute.xlu0 %1889
        %1891 = vrot.lane.b32.xlu0 %v864, 120
        %v1892 = vpop.permute.xlu0 %1891
        %1893 = vrot.lane.b32.xlu0 %v869, 120
        %v1894 = vpop.permute.xlu0 %1893
        %1895 = vrot.lane.b32.xlu0 %v874, 120
        %v1896 = vpop.permute.xlu0 %1895
        %1897 = vrot.lane.b32.xlu0 %v879, 120
        %v1898 = vpop.permute.xlu0 %1897
        %1899 = vrot.lane.b32.xlu0 %v884, 120
        %v1900 = vpop.permute.xlu0 %1899
        %1901 = vrot.lane.b32.xlu0 %v889, 120
        %v1902 = vpop.permute.xlu0 %1901
        %1903 = vrot.lane.b32.xlu0 %v894, 120
        %v1904 = vpop.permute.xlu0 %1903
        %1905 = vrot.lane.b32.xlu0 %v899, 120
        %v1906 = vpop.permute.xlu0 %1905
        %1907 = vrot.lane.b32.xlu0 %v904, 120
        %v1908 = vpop.permute.xlu0 %1907
        %1909 = vrot.lane.b32.xlu0 %v909, 120
        %v1910 = vpop.permute.xlu0 %1909
        %1911 = vrot.lane.b32.xlu0 %v914, 120
        %v1912 = vpop.permute.xlu0 %1911
        %1913 = vrot.lane.b32.xlu0 %v919, 120
        %v1914 = vpop.permute.xlu0 %1913
        %1915 = vrot.lane.b32.xlu0 %v924, 120
        %v1916 = vpop.permute.xlu0 %1915
        %1917 = vrot.lane.b32.xlu0 %v929, 120
        %v1918 = vpop.permute.xlu0 %1917
        %1919 = vrot.lane.b32.xlu0 %v934, 120
        %v1920 = vpop.permute.xlu0 %1919
        %v1921 = vsel %vm989, %v1826, 0
        %v1923 = vsel %vm989, %v1828, 0
        %v1925 = vsel %vm989, %v1830, 0
        %v1927 = vsel %vm989, %v1832, 0
        %v1929 = vsel %vm989, %v1834, 0
        %v1931 = vsel %vm989, %v1836, 0
        %v1933 = vsel %vm989, %v1838, 0
        %v1935 = vsel %vm989, %v1840, 0
        %v1937 = vsel %vm989, %v1842, 0
        %v1939 = vsel %vm989, %v1844, 0
        %v1941 = vsel %vm989, %v1846, 0
        %v1943 = vsel %vm989, %v1848, 0
        %v1945 = vsel %vm989, %v1850, 0
        %v1947 = vsel %vm989, %v1852, 0
        %v1949 = vsel %vm989, %v1854, 0
        %v1951 = vsel %vm989, %v1856, 0
        %v1953 = vsel %vm989, %v1858, 0
        %v1955 = vsel %vm989, %v1860, 0
        %v1957 = vsel %vm989, %v1862, 0
        %v1959 = vsel %vm989, %v1864, 0
        %v1961 = vsel %vm989, %v1866, 0
        %v1963 = vsel %vm989, %v1868, 0
        %v1965 = vsel %vm989, %v1870, 0
        %v1967 = vsel %vm989, %v1872, 0
        %v1969 = vsel %vm989, %v1874, 0
        %v1971 = vsel %vm989, %v1876, 0
        %v1973 = vsel %vm989, %v1878, 0
        %v1975 = vsel %vm989, %v1880, 0
        %v1977 = vsel %vm989, %v1882, 0
        %v1979 = vsel %vm989, %v1884, 0
        %v1981 = vsel %vm989, %v1886, 0
        %v1983 = vsel %vm989, %v1888, 0
        %v1985 = vsel %vm989, %v1890, 0
        %v1987 = vsel %vm989, %v1892, 0
        %v1989 = vsel %vm989, %v1894, 0
        %v1991 = vsel %vm989, %v1896, 0
        %v1993 = vsel %vm989, %v1898, 0
        %v1995 = vsel %vm989, %v1900, 0
        %v1997 = vsel %vm989, %v1902, 0
        %v1999 = vsel %vm989, %v1904, 0
        %v2001 = vsel %vm989, %v1906, 0
        %v2003 = vsel %vm989, %v1908, 0
        %v2005 = vsel %vm989, %v1910, 0
        %v2007 = vsel %vm989, %v1912, 0
        %v2009 = vsel %vm989, %v1914, 0
        %v2011 = vsel %vm989, %v1916, 0
        %v2013 = vsel %vm989, %v1918, 0
        %v2015 = vsel %vm989, %v1920, 0
        %2017 = vmatprep.subr.mxu0 0.0
        %2018 = vmatpush1.xpose.msra.mxu0 %v1983
        %2019 = vmatprep.subr.mxu0 0.0
        %2020 = vmatpush1.xpose.msra.mxu0 %v1981
        %2021 = vmatprep.subr.mxu0 0.0
        %2022 = vmatpush1.xpose.msra.mxu0 %v1979
        %2023 = vmatprep.subr.mxu0 0.0
        %2024 = vmatpush1.xpose.msra.mxu0 %v1977
        %2025 = vmatprep.subr.mxu0 0.0
        %2026 = vmatpush1.xpose.msra.mxu0 %v1975
        %2027 = vmatprep.subr.mxu0 0.0
        %2028 = vmatpush1.xpose.msra.mxu0 %v1973
        %2029 = vmatprep.subr.mxu0 0.0
        %2030 = vmatpush1.xpose.msra.mxu0 %v1971
        %2031 = vmatprep.subr.mxu0 0.0
        %2032 = vmatpush1.xpose.msra.mxu0 %v1969
        %2033 = vmatprep.subr.mxu0 0.0
        %2034 = vmatpush1.xpose.msra.mxu0 %v1967
        %2035 = vmatprep.subr.mxu0 0.0
        %2036 = vmatpush1.xpose.msra.mxu0 %v1965
        %2037 = vmatprep.subr.mxu0 0.0
        %2038 = vmatpush1.xpose.msra.mxu0 %v1963
        %2039 = vmatprep.subr.mxu0 0.0
        %2040 = vmatpush1.xpose.msra.mxu0 %v1961
        %2041 = vmatprep.subr.mxu0 0.0
        %2042 = vmatpush1.xpose.msra.mxu0 %v1959
        %2043 = vmatprep.subr.mxu0 0.0
        %2044 = vmatpush1.xpose.msra.mxu0 %v1957
        %2045 = vmatprep.subr.mxu0 0.0
        %2046 = vmatpush1.xpose.msra.mxu0 %v1955
        %2047 = vmatprep.subr.mxu0 0.0
        %2048 = vmatpush1.xpose.msra.mxu0 %v1953
        %2049 = vmatprep.subr.mxu0 0.0
        %2050 = vmatpush2.xpose.msra.mxu0 %v2015
        %2051 = vmatprep.subr.mxu0 0.0
        %2052 = vmatpush2.xpose.msra.mxu0 %v2013
        %2053 = vmatprep.subr.mxu0 0.0
        %2054 = vmatpush2.xpose.msra.mxu0 %v2011
        %2055 = vmatprep.subr.mxu0 0.0
        %2056 = vmatpush2.xpose.msra.mxu0 %v2009
        %2057 = vmatprep.subr.mxu0 0.0
        %2058 = vmatpush2.xpose.msra.mxu0 %v2007
        %2059 = vmatprep.subr.mxu0 0.0
        %2060 = vmatpush2.xpose.msra.mxu0 %v2005
        %2061 = vmatprep.subr.mxu0 0.0
        %2062 = vmatpush2.xpose.msra.mxu0 %v2003
        %2063 = vmatprep.subr.mxu0 0.0
        %2064 = vmatpush2.xpose.msra.mxu0 %v2001
        %2065 = vmatprep.subr.mxu0 0.0
        %2066 = vmatpush2.xpose.msra.mxu0 %v1999
        %2067 = vmatprep.subr.mxu0 0.0
        %2068 = vmatpush2.xpose.msra.mxu0 %v1997
        %2069 = vmatprep.subr.mxu0 0.0
        %2070 = vmatpush2.xpose.msra.mxu0 %v1995
        %2071 = vmatprep.subr.mxu0 0.0
        %2072 = vmatpush2.xpose.msra.mxu0 %v1993
        %2073 = vmatprep.subr.mxu0 0.0
        %2074 = vmatpush2.xpose.msra.mxu0 %v1991
        %2075 = vmatprep.subr.mxu0 0.0
        %2076 = vmatpush2.xpose.msra.mxu0 %v1989
        %2077 = vmatprep.subr.mxu0 0.0
        %2078 = vmatpush2.xpose.msra.mxu0 %v1987
        %2079 = vmatprep.subr.mxu0 0.0
        %2080 = vmatpush2.xpose.msra.mxu0 %v1985
        %2081 = vmatprep.mubr.f32.mxu0 0.0
        %2082 = vmatmul.mubr.f32.gmra.mxu0 %v1921
        %v2083 = vpop.f32.mrf.mxu0
        %v2084 = vadd.f32 %v1793, %v2083
        %v2085 = vpop.f32.mrf.mxu0
        %v2086 = vadd.f32 %v1794, %v2085
        %2087 = vmatprep.mubr.f32.mxu0 0.0
        %2088 = vmatmul.mubr.f32.gmra.mxu0 %v1923
        %v2089 = vpop.f32.mrf.mxu0
        %v2090 = vadd.f32 %v1795, %v2089
        %v2091 = vpop.f32.mrf.mxu0
        %v2092 = vadd.f32 %v1796, %v2091
        %2093 = vmatprep.mubr.f32.mxu0 0.0
        %2094 = vmatmul.mubr.f32.gmra.mxu0 %v1925
        %v2095 = vpop.f32.mrf.mxu0
        %v2096 = vadd.f32 %v1797, %v2095
        %v2097 = vpop.f32.mrf.mxu0
        %v2098 = vadd.f32 %v1798, %v2097
        %2099 = vmatprep.mubr.f32.mxu0 0.0
        %2100 = vmatmul.mubr.f32.gmra.mxu0 %v1927
        %v2101 = vpop.f32.mrf.mxu0
        %v2102 = vadd.f32 %v1799, %v2101
        %v2103 = vpop.f32.mrf.mxu0
        %v2104 = vadd.f32 %v1800, %v2103
        %2105 = vmatprep.mubr.f32.mxu0 0.0
        %2106 = vmatmul.mubr.f32.gmra.mxu0 %v1929
        %v2107 = vpop.f32.mrf.mxu0
        %v2108 = vadd.f32 %v1801, %v2107
        %v2109 = vpop.f32.mrf.mxu0
        %v2110 = vadd.f32 %v1802, %v2109
        %2111 = vmatprep.mubr.f32.mxu0 0.0
        %2112 = vmatmul.mubr.f32.gmra.mxu0 %v1931
        %v2113 = vpop.f32.mrf.mxu0
        %v2114 = vadd.f32 %v1803, %v2113
        %v2115 = vpop.f32.mrf.mxu0
        %v2116 = vadd.f32 %v1804, %v2115
        %2117 = vmatprep.mubr.f32.mxu0 0.0
        %2118 = vmatmul.mubr.f32.gmra.mxu0 %v1933
        %v2119 = vpop.f32.mrf.mxu0
        %v2120 = vadd.f32 %v1805, %v2119
        %v2121 = vpop.f32.mrf.mxu0
        %v2122 = vadd.f32 %v1806, %v2121
        %2123 = vmatprep.mubr.f32.mxu0 0.0
        %2124 = vmatmul.mubr.f32.gmra.mxu0 %v1935
        %v2125 = vpop.f32.mrf.mxu0
        %v2126 = vadd.f32 %v1807, %v2125
        %v2127 = vpop.f32.mrf.mxu0
        %v2128 = vadd.f32 %v1808, %v2127
        %2129 = vmatprep.mubr.f32.mxu0 0.0
        %2130 = vmatmul.mubr.f32.gmra.mxu0 %v1937
        %v2131 = vpop.f32.mrf.mxu0
        %v2132 = vadd.f32 %v1809, %v2131
        %v2133 = vpop.f32.mrf.mxu0
        %v2134 = vadd.f32 %v1810, %v2133
        %2135 = vmatprep.mubr.f32.mxu0 0.0
        %2136 = vmatmul.mubr.f32.gmra.mxu0 %v1939
        %v2137 = vpop.f32.mrf.mxu0
        %v2138 = vadd.f32 %v1811, %v2137
        %v2139 = vpop.f32.mrf.mxu0
        %v2140 = vadd.f32 %v1812, %v2139
        %2141 = vmatprep.mubr.f32.mxu0 0.0
        %2142 = vmatmul.mubr.f32.gmra.mxu0 %v1941
        %v2143 = vpop.f32.mrf.mxu0
        %v2144 = vadd.f32 %v1813, %v2143
        %v2145 = vpop.f32.mrf.mxu0
        %v2146 = vadd.f32 %v1814, %v2145
        %2147 = vmatprep.mubr.f32.mxu0 0.0
        %2148 = vmatmul.mubr.f32.gmra.mxu0 %v1943
        %v2149 = vpop.f32.mrf.mxu0
        %v2150 = vadd.f32 %v1815, %v2149
        %v2151 = vpop.f32.mrf.mxu0
        %v2152 = vadd.f32 %v1816, %v2151
        %2153 = vmatprep.mubr.f32.mxu0 0.0
        %2154 = vmatmul.mubr.f32.gmra.mxu0 %v1945
        %v2155 = vpop.f32.mrf.mxu0
        %v2156 = vadd.f32 %v1817, %v2155
        %v2157 = vpop.f32.mrf.mxu0
        %v2158 = vadd.f32 %v1818, %v2157
        %2159 = vmatprep.mubr.f32.mxu0 0.0
        %2160 = vmatmul.mubr.f32.gmra.mxu0 %v1947
        %v2161 = vpop.f32.mrf.mxu0
        %v2162 = vadd.f32 %v1819, %v2161
        %v2163 = vpop.f32.mrf.mxu0
        %v2164 = vadd.f32 %v1820, %v2163
        %2165 = vmatprep.mubr.f32.mxu0 0.0
        %2166 = vmatmul.mubr.f32.gmra.mxu0 %v1949
        %v2167 = vpop.f32.mrf.mxu0
        %v2168 = vadd.f32 %v1821, %v2167
        %v2169 = vpop.f32.mrf.mxu0
        %v2170 = vadd.f32 %v1822, %v2169
        %2171 = vmatprep.mubr.f32.mxu0 0.0
        %2172 = vmatmul.mubr.f32.gmra.mxu0 %v1951
        %v2173 = vpop.f32.mrf.mxu0
        %v2174 = vadd.f32 %v1823, %v2173
        %v2175 = vpop.f32.mrf.mxu0
        %v2176 = vadd.f32 %v1824, %v2175
        %2177 = vdwg.mxu0
        %v2178 = vmax.f32 %v2084, %v2086
        %2179 = vmax.xlane.f32.xlu0 %v2178
        %v2180 = vpop.xlane.xlu0 %2179
        %v2181 = vmax.f32 %v2090, %v2092
        %2182 = vmax.xlane.f32.xlu0 %v2181
        %v2183 = vpop.xlane.xlu0 %2182
        %v2184 = vmax.f32 %v2096, %v2098
        %2185 = vmax.xlane.f32.xlu0 %v2184
        %v2186 = vpop.xlane.xlu0 %2185
        %v2187 = vmax.f32 %v2102, %v2104
        %2188 = vmax.xlane.f32.xlu0 %v2187
        %v2189 = vpop.xlane.xlu0 %2188
        %v2190 = vmax.f32 %v2108, %v2110
        %2191 = vmax.xlane.f32.xlu0 %v2190
        %v2192 = vpop.xlane.xlu0 %2191
        %v2193 = vmax.f32 %v2114, %v2116
        %2194 = vmax.xlane.f32.xlu0 %v2193
        %v2195 = vpop.xlane.xlu0 %2194
        %v2196 = vmax.f32 %v2120, %v2122
        %2197 = vmax.xlane.f32.xlu0 %v2196
        %v2198 = vpop.xlane.xlu0 %2197
        %v2199 = vmax.f32 %v2126, %v2128
        %2200 = vmax.xlane.f32.xlu0 %v2199
        %v2201 = vpop.xlane.xlu0 %2200
        %v2202 = vmax.f32 %v2132, %v2134
        %2203 = vmax.xlane.f32.xlu0 %v2202
        %v2204 = vpop.xlane.xlu0 %2203
        %v2205 = vmax.f32 %v2138, %v2140
        %2206 = vmax.xlane.f32.xlu0 %v2205
        %v2207 = vpop.xlane.xlu0 %2206
        %v2208 = vmax.f32 %v2144, %v2146
        %2209 = vmax.xlane.f32.xlu0 %v2208
        %v2210 = vpop.xlane.xlu0 %2209
        %v2211 = vmax.f32 %v2150, %v2152
        %2212 = vmax.xlane.f32.xlu0 %v2211
        %v2213 = vpop.xlane.xlu0 %2212
        %v2214 = vmax.f32 %v2156, %v2158
        %2215 = vmax.xlane.f32.xlu0 %v2214
        %v2216 = vpop.xlane.xlu0 %2215
        %v2217 = vmax.f32 %v2162, %v2164
        %2218 = vmax.xlane.f32.xlu0 %v2217
        %v2219 = vpop.xlane.xlu0 %2218
        %v2220 = vmax.f32 %v2168, %v2170
        %2221 = vmax.xlane.f32.xlu0 %v2220
        %v2222 = vpop.xlane.xlu0 %2221
        %v2223 = vmax.f32 %v2174, %v2176
        %2224 = vmax.xlane.f32.xlu0 %v2223
        %v2225 = vpop.xlane.xlu0 %2224
        %v2226 = vsub.f32 %v2084, %v2180
        %v2227 = vsub.f32 %v2086, %v2180
        %v2228 = vsub.f32 %v2090, %v2183
        %v2229 = vsub.f32 %v2092, %v2183
        %v2230 = vsub.f32 %v2096, %v2186
        %v2231 = vsub.f32 %v2098, %v2186
        %v2232 = vsub.f32 %v2102, %v2189
        %v2233 = vsub.f32 %v2104, %v2189
        %v2234 = vsub.f32 %v2108, %v2192
        %v2235 = vsub.f32 %v2110, %v2192
        %v2236 = vsub.f32 %v2114, %v2195
        %v2237 = vsub.f32 %v2116, %v2195
        %v2238 = vsub.f32 %v2120, %v2198
        %v2239 = vsub.f32 %v2122, %v2198
        %v2240 = vsub.f32 %v2126, %v2201
        %v2241 = vsub.f32 %v2128, %v2201
        %v2242 = vsub.f32 %v2132, %v2204
        %v2243 = vsub.f32 %v2134, %v2204
        %v2244 = vsub.f32 %v2138, %v2207
        %v2245 = vsub.f32 %v2140, %v2207
        %v2246 = vsub.f32 %v2144, %v2210
        %v2247 = vsub.f32 %v2146, %v2210
        %v2248 = vsub.f32 %v2150, %v2213
        %v2249 = vsub.f32 %v2152, %v2213
        %v2250 = vsub.f32 %v2156, %v2216
        %v2251 = vsub.f32 %v2158, %v2216
        %v2252 = vsub.f32 %v2162, %v2219
        %v2253 = vsub.f32 %v2164, %v2219
        %v2254 = vsub.f32 %v2168, %v2222
        %v2255 = vsub.f32 %v2170, %v2222
        %v2256 = vsub.f32 %v2174, %v2225
        %v2257 = vsub.f32 %v2176, %v2225
        %v2258 = vmul.f32 %v2226, 1.442695
        %v2259 = vpow.pop %v2258
        %v2260 = vmul.f32 %v2227, 1.442695
        %v2261 = vpow.pop %v2260
        %v2262 = vmul.f32 %v2228, 1.442695
        %v2263 = vpow.pop %v2262
        %v2264 = vmul.f32 %v2229, 1.442695
        %v2265 = vpow.pop %v2264
        %v2266 = vmul.f32 %v2230, 1.442695
        %v2267 = vpow.pop %v2266
        %v2268 = vmul.f32 %v2231, 1.442695
        %v2269 = vpow.pop %v2268
        %v2270 = vmul.f32 %v2232, 1.442695
        %v2271 = vpow.pop %v2270
        %v2272 = vmul.f32 %v2233, 1.442695
        %v2273 = vpow.pop %v2272
        %v2274 = vmul.f32 %v2234, 1.442695
        %v2275 = vpow.pop %v2274
        %v2276 = vmul.f32 %v2235, 1.442695
        %v2277 = vpow.pop %v2276
        %v2278 = vmul.f32 %v2236, 1.442695
        %v2279 = vpow.pop %v2278
        %v2280 = vmul.f32 %v2237, 1.442695
        %v2281 = vpow.pop %v2280
        %v2282 = vmul.f32 %v2238, 1.442695
        %v2283 = vpow.pop %v2282
        %v2284 = vmul.f32 %v2239, 1.442695
        %v2285 = vpow.pop %v2284
        %v2286 = vmul.f32 %v2240, 1.442695
        %v2287 = vpow.pop %v2286
        %v2288 = vmul.f32 %v2241, 1.442695
        %v2289 = vpow.pop %v2288
        %v2290 = vmul.f32 %v2242, 1.442695
        %v2291 = vpow.pop %v2290
        %v2292 = vmul.f32 %v2243, 1.442695
        %v2293 = vpow.pop %v2292
        %v2294 = vmul.f32 %v2244, 1.442695
        %v2295 = vpow.pop %v2294
        %v2296 = vmul.f32 %v2245, 1.442695
        %v2297 = vpow.pop %v2296
        %v2298 = vmul.f32 %v2246, 1.442695
        %v2299 = vpow.pop %v2298
        %v2300 = vmul.f32 %v2247, 1.442695
        %v2301 = vpow.pop %v2300
        %v2302 = vmul.f32 %v2248, 1.442695
        %v2303 = vpow.pop %v2302
        %v2304 = vmul.f32 %v2249, 1.442695
        %v2305 = vpow.pop %v2304
        %v2306 = vmul.f32 %v2250, 1.442695
        %v2307 = vpow.pop %v2306
        %v2308 = vmul.f32 %v2251, 1.442695
        %v2309 = vpow.pop %v2308
        %v2310 = vmul.f32 %v2252, 1.442695
        %v2311 = vpow.pop %v2310
        %v2312 = vmul.f32 %v2253, 1.442695
        %v2313 = vpow.pop %v2312
        %v2314 = vmul.f32 %v2254, 1.442695
        %v2315 = vpow.pop %v2314
        %v2316 = vmul.f32 %v2255, 1.442695
        %v2317 = vpow.pop %v2316
        %v2318 = vmul.f32 %v2256, 1.442695
        %v2319 = vpow.pop %v2318
        %v2320 = vmul.f32 %v2257, 1.442695
        %v2321 = vpow.pop %v2320
        %v2322 = vadd.f32 %v2259, %v2261
        %2323 = vadd.xlane.f32.xlu0 %v2322
        %v2324 = vpop.xlane.xlu0 %2323
        %v2325 = vadd.f32 %v2263, %v2265
        %2326 = vadd.xlane.f32.xlu0 %v2325
        %v2327 = vpop.xlane.xlu0 %2326
        %v2328 = vadd.f32 %v2267, %v2269
        %2329 = vadd.xlane.f32.xlu0 %v2328
        %v2330 = vpop.xlane.xlu0 %2329
        %v2331 = vadd.f32 %v2271, %v2273
        %2332 = vadd.xlane.f32.xlu0 %v2331
        %v2333 = vpop.xlane.xlu0 %2332
        %v2334 = vadd.f32 %v2275, %v2277
        %2335 = vadd.xlane.f32.xlu0 %v2334
        %v2336 = vpop.xlane.xlu0 %2335
        %v2337 = vadd.f32 %v2279, %v2281
        %2338 = vadd.xlane.f32.xlu0 %v2337
        %v2339 = vpop.xlane.xlu0 %2338
        %v2340 = vadd.f32 %v2283, %v2285
        %2341 = vadd.xlane.f32.xlu0 %v2340
        %v2342 = vpop.xlane.xlu0 %2341
        %v2343 = vadd.f32 %v2287, %v2289
        %2344 = vadd.xlane.f32.xlu0 %v2343
        %v2345 = vpop.xlane.xlu0 %2344
        %v2346 = vadd.f32 %v2291, %v2293
        %2347 = vadd.xlane.f32.xlu0 %v2346
        %v2348 = vpop.xlane.xlu0 %2347
        %v2349 = vadd.f32 %v2295, %v2297
        %2350 = vadd.xlane.f32.xlu0 %v2349
        %v2351 = vpop.xlane.xlu0 %2350
        %v2352 = vadd.f32 %v2299, %v2301
        %2353 = vadd.xlane.f32.xlu0 %v2352
        %v2354 = vpop.xlane.xlu0 %2353
        %v2355 = vadd.f32 %v2303, %v2305
        %2356 = vadd.xlane.f32.xlu0 %v2355
        %v2357 = vpop.xlane.xlu0 %2356
        %v2358 = vadd.f32 %v2307, %v2309
        %2359 = vadd.xlane.f32.xlu0 %v2358
        %v2360 = vpop.xlane.xlu0 %2359
        %v2361 = vadd.f32 %v2311, %v2313
        %2362 = vadd.xlane.f32.xlu0 %v2361
        %v2363 = vpop.xlane.xlu0 %2362
        %v2364 = vadd.f32 %v2315, %v2317
        %2365 = vadd.xlane.f32.xlu0 %v2364
        %v2366 = vpop.xlane.xlu0 %2365
        %v2367 = vadd.f32 %v2319, %v2321
        %2368 = vadd.xlane.f32.xlu0 %v2367
        %v2369 = vpop.xlane.xlu0 %2368
        %v2370 = vrcp.pop %v2324
        %v2371 = vrcp.pop %v2327
        %v2372 = vrcp.pop %v2330
        %v2373 = vrcp.pop %v2333
        %v2374 = vrcp.pop %v2336
        %v2375 = vrcp.pop %v2339
        %v2376 = vrcp.pop %v2342
        %v2377 = vrcp.pop %v2345
        %v2378 = vrcp.pop %v2348
        %v2379 = vrcp.pop %v2351
        %v2380 = vrcp.pop %v2354
        %v2381 = vrcp.pop %v2357
        %v2382 = vrcp.pop %v2360
        %v2383 = vrcp.pop %v2363
        %v2384 = vrcp.pop %v2366
        %v2385 = vrcp.pop %v2369
        %v2386 = vmul.f32 %v2259, %v2370
        %v2387 = vmul.f32 %v2261, %v2370
        %v2388 = vmul.f32 %v2263, %v2371
        %v2389 = vmul.f32 %v2265, %v2371
        %v2390 = vmul.f32 %v2267, %v2372
        %v2391 = vmul.f32 %v2269, %v2372
        %v2392 = vmul.f32 %v2271, %v2373
        %v2393 = vmul.f32 %v2273, %v2373
        %v2394 = vmul.f32 %v2275, %v2374
        %v2395 = vmul.f32 %v2277, %v2374
        %v2396 = vmul.f32 %v2279, %v2375
        %v2397 = vmul.f32 %v2281, %v2375
        %v2398 = vmul.f32 %v2283, %v2376
        %v2399 = vmul.f32 %v2285, %v2376
        %v2400 = vmul.f32 %v2287, %v2377
        %v2401 = vmul.f32 %v2289, %v2377
        %v2402 = vmul.f32 %v2291, %v2378
        %v2403 = vmul.f32 %v2293, %v2378
        %v2404 = vmul.f32 %v2295, %v2379
        %v2405 = vmul.f32 %v2297, %v2379
        %v2406 = vmul.f32 %v2299, %v2380
        %v2407 = vmul.f32 %v2301, %v2380
        %v2408 = vmul.f32 %v2303, %v2381
        %v2409 = vmul.f32 %v2305, %v2381
        %v2410 = vmul.f32 %v2307, %v2382
        %v2411 = vmul.f32 %v2309, %v2382
        %v2412 = vmul.f32 %v2311, %v2383
        %v2413 = vmul.f32 %v2313, %v2383
        %v2414 = vmul.f32 %v2315, %v2384
        %v2415 = vmul.f32 %v2317, %v2384
        %v2416 = vmul.f32 %v2319, %v2385
        %v2417 = vmul.f32 %v2321, %v2385
        %2418 = vrot.lane.b32.xlu0 %v779, 88
        %v2419 = vpop.permute.xlu0 %2418
        %2420 = vrot.lane.b32.xlu0 %v784, 88
        %v2421 = vpop.permute.xlu0 %2420
        %2422 = vrot.lane.b32.xlu0 %v789, 88
        %v2423 = vpop.permute.xlu0 %2422
        %2424 = vrot.lane.b32.xlu0 %v794, 88
        %v2425 = vpop.permute.xlu0 %2424
        %2426 = vrot.lane.b32.xlu0 %v799, 88
        %v2427 = vpop.permute.xlu0 %2426
        %2428 = vrot.lane.b32.xlu0 %v804, 88
        %v2429 = vpop.permute.xlu0 %2428
        %2430 = vrot.lane.b32.xlu0 %v809, 88
        %v2431 = vpop.permute.xlu0 %2430
        %2432 = vrot.lane.b32.xlu0 %v814, 88
        %v2433 = vpop.permute.xlu0 %2432
        %2434 = vrot.lane.b32.xlu0 %v819, 88
        %v2435 = vpop.permute.xlu0 %2434
        %2436 = vrot.lane.b32.xlu0 %v824, 88
        %v2437 = vpop.permute.xlu0 %2436
        %2438 = vrot.lane.b32.xlu0 %v829, 88
        %v2439 = vpop.permute.xlu0 %2438
        %2440 = vrot.lane.b32.xlu0 %v834, 88
        %v2441 = vpop.permute.xlu0 %2440
        %2442 = vrot.lane.b32.xlu0 %v839, 88
        %v2443 = vpop.permute.xlu0 %2442
        %2444 = vrot.lane.b32.xlu0 %v844, 88
        %v2445 = vpop.permute.xlu0 %2444
        %2446 = vrot.lane.b32.xlu0 %v849, 88
        %v2447 = vpop.permute.xlu0 %2446
        %2448 = vrot.lane.b32.xlu0 %v854, 88
        %v2449 = vpop.permute.xlu0 %2448
        %2450 = vrot.lane.b32.xlu0 %v859, 88
        %v2451 = vpop.permute.xlu0 %2450
        %2452 = vrot.lane.b32.xlu0 %v864, 88
        %v2453 = vpop.permute.xlu0 %2452
        %2454 = vrot.lane.b32.xlu0 %v869, 88
        %v2455 = vpop.permute.xlu0 %2454
        %2456 = vrot.lane.b32.xlu0 %v874, 88
        %v2457 = vpop.permute.xlu0 %2456
        %2458 = vrot.lane.b32.xlu0 %v879, 88
        %v2459 = vpop.permute.xlu0 %2458
        %2460 = vrot.lane.b32.xlu0 %v884, 88
        %v2461 = vpop.permute.xlu0 %2460
        %2462 = vrot.lane.b32.xlu0 %v889, 88
        %v2463 = vpop.permute.xlu0 %2462
        %2464 = vrot.lane.b32.xlu0 %v894, 88
        %v2465 = vpop.permute.xlu0 %2464
        %2466 = vrot.lane.b32.xlu0 %v899, 88
        %v2467 = vpop.permute.xlu0 %2466
        %2468 = vrot.lane.b32.xlu0 %v904, 88
        %v2469 = vpop.permute.xlu0 %2468
        %2470 = vrot.lane.b32.xlu0 %v909, 88
        %v2471 = vpop.permute.xlu0 %2470
        %2472 = vrot.lane.b32.xlu0 %v914, 88
        %v2473 = vpop.permute.xlu0 %2472
        %2474 = vrot.lane.b32.xlu0 %v919, 88
        %v2475 = vpop.permute.xlu0 %2474
        %2476 = vrot.lane.b32.xlu0 %v924, 88
        %v2477 = vpop.permute.xlu0 %2476
        %2478 = vrot.lane.b32.xlu0 %v929, 88
        %v2479 = vpop.permute.xlu0 %2478
        %2480 = vrot.lane.b32.xlu0 %v934, 88
        %v2481 = vpop.permute.xlu0 %2480
        %2514 = vmatprep.subr.mxu0 0.0
        %2515 = vmatpush1.msra.mxu0 %v2449
        %2516 = vmatprep.subr.mxu0 0.0
        %2517 = vmatpush1.msra.mxu0 %v2447
        %2518 = vmatprep.subr.mxu0 0.0
        %2519 = vmatpush1.msra.mxu0 %v2445
        %2520 = vmatprep.subr.mxu0 0.0
        %2521 = vmatpush1.msra.mxu0 %v2443
        %2522 = vmatprep.subr.mxu0 0.0
        %2523 = vmatpush1.msra.mxu0 %v2441
        %2524 = vmatprep.subr.mxu0 0.0
        %2525 = vmatpush1.msra.mxu0 %v2439
        %2526 = vmatprep.subr.mxu0 0.0
        %2527 = vmatpush1.msra.mxu0 %v2437
        %2528 = vmatprep.subr.mxu0 0.0
        %2529 = vmatpush1.msra.mxu0 %v2435
        %2530 = vmatprep.subr.mxu0 0.0
        %2531 = vmatpush1.msra.mxu0 %v2433
        %2532 = vmatprep.subr.mxu0 0.0
        %2533 = vmatpush1.msra.mxu0 %v2431
        %2534 = vmatprep.subr.mxu0 0.0
        %2535 = vmatpush1.msra.mxu0 %v2429
        %2536 = vmatprep.subr.mxu0 0.0
        %2537 = vmatpush1.msra.mxu0 %v2427
        %2538 = vmatprep.subr.mxu0 0.0
        %2539 = vmatpush1.msra.mxu0 %v2425
        %2540 = vmatprep.subr.mxu0 0.0
        %2541 = vmatpush1.msra.mxu0 %v2423
        %2542 = vmatprep.subr.mxu0 0.0
        %2543 = vmatpush1.msra.mxu0 %v2421
        %2544 = vmatprep.subr.mxu0 0.0
        %2545 = vmatpush1.msra.mxu0 %v2419
        %2546 = vmatprep.subr.mxu0 0.0
        %2547 = vmatpush2.msra.mxu0 %v2481
        %2548 = vmatprep.subr.mxu0 0.0
        %2549 = vmatpush2.msra.mxu0 %v2479
        %2550 = vmatprep.subr.mxu0 0.0
        %2551 = vmatpush2.msra.mxu0 %v2477
        %2552 = vmatprep.subr.mxu0 0.0
        %2553 = vmatpush2.msra.mxu0 %v2475
        %2554 = vmatprep.subr.mxu0 0.0
        %2555 = vmatpush2.msra.mxu0 %v2473
        %2556 = vmatprep.subr.mxu0 0.0
        %2557 = vmatpush2.msra.mxu0 %v2471
        %2558 = vmatprep.subr.mxu0 0.0
        %2559 = vmatpush2.msra.mxu0 %v2469
        %2560 = vmatprep.subr.mxu0 0.0
        %2561 = vmatpush2.msra.mxu0 %v2467
        %2562 = vmatprep.subr.mxu0 0.0
        %2563 = vmatpush2.msra.mxu0 %v2465
        %2564 = vmatprep.subr.mxu0 0.0
        %2565 = vmatpush2.msra.mxu0 %v2463
        %2566 = vmatprep.subr.mxu0 0.0
        %2567 = vmatpush2.msra.mxu0 %v2461
        %2568 = vmatprep.subr.mxu0 0.0
        %2569 = vmatpush2.msra.mxu0 %v2459
        %2570 = vmatprep.subr.mxu0 0.0
        %2571 = vmatpush2.msra.mxu0 %v2457
        %2572 = vmatprep.subr.mxu0 0.0
        %2573 = vmatpush2.msra.mxu0 %v2455
        %2574 = vmatprep.subr.mxu0 0.0
        %2575 = vmatpush2.msra.mxu0 %v2453
        %2576 = vmatprep.subr.mxu0 0.0
        %2577 = vmatpush2.msra.mxu0 %v2451
        %2578 = vmatprep.mubr.f32.mxu0 %v2387
        %2579 = vmatmul.mubr.f32.gmra.mxu0 %v2386
        %v2580 = vpop.f32.mrf.mxu0
        %v2581 = vadd.f32 0.0, %v2580
        %v2582 = vpop.f32.mrf.mxu0
        %2583 = vmatprep.mubr.f32.mxu0 %v2389
        %2584 = vmatmul.mubr.f32.gmra.mxu0 %v2388
        %v2585 = vpop.f32.mrf.mxu0
        %v2586 = vadd.f32 0.0, %v2585
        %v2587 = vpop.f32.mrf.mxu0
        %2588 = vmatprep.mubr.f32.mxu0 %v2391
        %2589 = vmatmul.mubr.f32.gmra.mxu0 %v2390
        %v2590 = vpop.f32.mrf.mxu0
        %v2591 = vadd.f32 0.0, %v2590
        %v2592 = vpop.f32.mrf.mxu0
        %2593 = vmatprep.mubr.f32.mxu0 %v2393
        %2594 = vmatmul.mubr.f32.gmra.mxu0 %v2392
        %v2595 = vpop.f32.mrf.mxu0
        %v2596 = vadd.f32 0.0, %v2595
        %v2597 = vpop.f32.mrf.mxu0
        %2598 = vmatprep.mubr.f32.mxu0 %v2395
        %2599 = vmatmul.mubr.f32.gmra.mxu0 %v2394
        %v2600 = vpop.f32.mrf.mxu0
        %v2601 = vadd.f32 0.0, %v2600
        %v2602 = vpop.f32.mrf.mxu0
        %2603 = vmatprep.mubr.f32.mxu0 %v2397
        %2604 = vmatmul.mubr.f32.gmra.mxu0 %v2396
        %v2605 = vpop.f32.mrf.mxu0
        %v2606 = vadd.f32 0.0, %v2605
        %v2607 = vpop.f32.mrf.mxu0
        %2608 = vmatprep.mubr.f32.mxu0 %v2399
        %2609 = vmatmul.mubr.f32.gmra.mxu0 %v2398
        %v2610 = vpop.f32.mrf.mxu0
        %v2611 = vadd.f32 0.0, %v2610
        %v2612 = vpop.f32.mrf.mxu0
        %2613 = vmatprep.mubr.f32.mxu0 %v2401
        %2614 = vmatmul.mubr.f32.gmra.mxu0 %v2400
        %v2615 = vpop.f32.mrf.mxu0
        %v2616 = vadd.f32 0.0, %v2615
        %v2617 = vpop.f32.mrf.mxu0
        %2618 = vmatprep.mubr.f32.mxu0 %v2403
        %2619 = vmatmul.mubr.f32.gmra.mxu0 %v2402
        %v2620 = vpop.f32.mrf.mxu0
        %v2621 = vadd.f32 0.0, %v2620
        %v2622 = vpop.f32.mrf.mxu0
        %2623 = vmatprep.mubr.f32.mxu0 %v2405
        %2624 = vmatmul.mubr.f32.gmra.mxu0 %v2404
        %v2625 = vpop.f32.mrf.mxu0
        %v2626 = vadd.f32 0.0, %v2625
        %v2627 = vpop.f32.mrf.mxu0
        %2628 = vmatprep.mubr.f32.mxu0 %v2407
        %2629 = vmatmul.mubr.f32.gmra.mxu0 %v2406
        %v2630 = vpop.f32.mrf.mxu0
        %v2631 = vadd.f32 0.0, %v2630
        %v2632 = vpop.f32.mrf.mxu0
        %2633 = vmatprep.mubr.f32.mxu0 %v2409
        %2634 = vmatmul.mubr.f32.gmra.mxu0 %v2408
        %v2635 = vpop.f32.mrf.mxu0
        %v2636 = vadd.f32 0.0, %v2635
        %v2637 = vpop.f32.mrf.mxu0
        %2638 = vmatprep.mubr.f32.mxu0 %v2411
        %2639 = vmatmul.mubr.f32.gmra.mxu0 %v2410
        %v2640 = vpop.f32.mrf.mxu0
        %v2641 = vadd.f32 0.0, %v2640
        %v2642 = vpop.f32.mrf.mxu0
        %2643 = vmatprep.mubr.f32.mxu0 %v2413
        %2644 = vmatmul.mubr.f32.gmra.mxu0 %v2412
        %v2645 = vpop.f32.mrf.mxu0
        %v2646 = vadd.f32 0.0, %v2645
        %v2647 = vpop.f32.mrf.mxu0
        %2648 = vmatprep.mubr.f32.mxu0 %v2415
        %2649 = vmatmul.mubr.f32.gmra.mxu0 %v2414
        %v2650 = vpop.f32.mrf.mxu0
        %v2651 = vadd.f32 0.0, %v2650
        %v2652 = vpop.f32.mrf.mxu0
        %2653 = vmatprep.mubr.f32.mxu0 %v2417
        %2654 = vmatmul.mubr.f32.gmra.mxu0 %v2416
        %v2655 = vpop.f32.mrf.mxu0
        %v2656 = vadd.f32 0.0, %v2655
        %v2657 = vpop.f32.mrf.mxu0
        %2658 = vdwg.mxu0
        %v2660 = vsel %vm989, %v2581, 0
        %v2663 = vsel %vm989, %v2586, 0
        %v2666 = vsel %vm989, %v2591, 0
        %v2669 = vsel %vm989, %v2596, 0
        %v2672 = vsel %vm989, %v2601, 0
        %v2675 = vsel %vm989, %v2606, 0
        %v2678 = vsel %vm989, %v2611, 0
        %v2681 = vsel %vm989, %v2616, 0
        %v2684 = vsel %vm989, %v2621, 0
        %v2687 = vsel %vm989, %v2626, 0
        %v2690 = vsel %vm989, %v2631, 0
        %v2693 = vsel %vm989, %v2636, 0
        %v2696 = vsel %vm989, %v2641, 0
        %v2699 = vsel %vm989, %v2646, 0
        %v2702 = vsel %vm989, %v2651, 0
        %v2705 = vsel %vm989, %v2656, 0
        %2707 = vmatprep.subr.mxu0 0.0
        %2708 = vmatpush1.msra.mxu0 0.0
        %2709 = vmatprep.subr.mxu0 0.0
        %2710 = vmatpush1.msra.mxu0 0.0
        %2711 = vmatprep.subr.mxu0 0.0
        %2712 = vmatpush1.msra.mxu0 0.0
        %2713 = vmatprep.subr.mxu0 0.0
        %2714 = vmatpush1.msra.mxu0 0.0
        %2715 = vmatprep.subr.mxu0 0.0
        %2716 = vmatpush1.msra.mxu0 0.0
        %2717 = vmatprep.subr.mxu0 0.0
        %2718 = vmatpush1.msra.mxu0 0.0
        %2719 = vmatprep.subr.mxu0 0.0
        %2720 = vmatpush1.msra.mxu0 0.0
        %2721 = vmatprep.subr.mxu0 0.0
        %2722 = vmatpush1.msra.mxu0 0.0
        %2723 = vmatprep.subr.mxu0 0.0
        %2724 = vmatpush1.msra.mxu0 0.0
        %2725 = vmatprep.subr.mxu0 0.0
        %2726 = vmatpush1.msra.mxu0 0.0
        %2727 = vmatprep.subr.mxu0 0.0
        %2728 = vmatpush1.msra.mxu0 0.0
        %2729 = vmatprep.subr.mxu0 0.0
        %2730 = vmatpush1.msra.mxu0 0.0
        %2731 = vmatprep.subr.mxu0 0.0
        %2732 = vmatpush1.msra.mxu0 0.0
        %2733 = vmatprep.subr.mxu0 0.0
        %2734 = vmatpush1.msra.mxu0 0.0
        %2735 = vmatprep.subr.mxu0 0.0
        %2736 = vmatpush1.msra.mxu0 0.0
        %2737 = vmatprep.subr.mxu0 0.0
        %2738 = vmatpush1.msra.mxu0 %v938
        %2739 = vmatprep.subr.mxu0 0.0
        %2740 = vmatpush2.msra.mxu0 0.0
        %2741 = vmatprep.subr.mxu0 0.0
        %2742 = vmatpush2.msra.mxu0 0.0
        %2743 = vmatprep.subr.mxu0 0.0
        %2744 = vmatpush2.msra.mxu0 0.0
        %2745 = vmatprep.subr.mxu0 0.0
        %2746 = vmatpush2.msra.mxu0 0.0
        %2747 = vmatprep.subr.mxu0 0.0
        %2748 = vmatpush2.msra.mxu0 0.0
        %2749 = vmatprep.subr.mxu0 0.0
        %2750 = vmatpush2.msra.mxu0 0.0
        %2751 = vmatprep.subr.mxu0 0.0
        %2752 = vmatpush2.msra.mxu0 0.0
        %2753 = vmatprep.subr.mxu0 0.0
        %2754 = vmatpush2.msra.mxu0 0.0
        %2755 = vmatprep.subr.mxu0 0.0
        %2756 = vmatpush2.msra.mxu0 0.0
        %2757 = vmatprep.subr.mxu0 0.0
        %2758 = vmatpush2.msra.mxu0 0.0
        %2759 = vmatprep.subr.mxu0 0.0
        %2760 = vmatpush2.msra.mxu0 0.0
        %2761 = vmatprep.subr.mxu0 0.0
        %2762 = vmatpush2.msra.mxu0 0.0
        %2763 = vmatprep.subr.mxu0 0.0
        %2764 = vmatpush2.msra.mxu0 0.0
        %2765 = vmatprep.subr.mxu0 0.0
        %2766 = vmatpush2.msra.mxu0 0.0
        %2767 = vmatprep.subr.mxu0 0.0
        %2768 = vmatpush2.msra.mxu0 0.0
        %2769 = vmatprep.subr.mxu0 0.0
        %2770 = vmatpush2.msra.mxu0 0.0
        %2771 = vmatprep.mubr.f32.mxu0 0.0
        %2772 = vmatmul.mubr.f32.gmra.mxu0 %v2660
        %v2773 = vpop.f32.mrf.mxu0
        %v2774 = vadd.f32 0.0, %v2773
        %v2775 = vpop.f32.mrf.mxu0
        %2776 = vmatprep.mubr.f32.mxu0 0.0
        %2777 = vmatmul.mubr.f32.gmra.mxu0 %v2663
        %v2778 = vpop.f32.mrf.mxu0
        %v2779 = vadd.f32 0.0, %v2778
        %v2780 = vpop.f32.mrf.mxu0
        %2781 = vmatprep.mubr.f32.mxu0 0.0
        %2782 = vmatmul.mubr.f32.gmra.mxu0 %v2666
        %v2783 = vpop.f32.mrf.mxu0
        %v2784 = vadd.f32 0.0, %v2783
        %v2785 = vpop.f32.mrf.mxu0
        %2786 = vmatprep.mubr.f32.mxu0 0.0
        %2787 = vmatmul.mubr.f32.gmra.mxu0 %v2669
        %v2788 = vpop.f32.mrf.mxu0
        %v2789 = vadd.f32 0.0, %v2788
        %v2790 = vpop.f32.mrf.mxu0
        %2791 = vmatprep.mubr.f32.mxu0 0.0
        %2792 = vmatmul.mubr.f32.gmra.mxu0 %v2672
        %v2793 = vpop.f32.mrf.mxu0
        %v2794 = vadd.f32 0.0, %v2793
        %v2795 = vpop.f32.mrf.mxu0
        %2796 = vmatprep.mubr.f32.mxu0 0.0
        %2797 = vmatmul.mubr.f32.gmra.mxu0 %v2675
        %v2798 = vpop.f32.mrf.mxu0
        %v2799 = vadd.f32 0.0, %v2798
        %v2800 = vpop.f32.mrf.mxu0
        %2801 = vmatprep.mubr.f32.mxu0 0.0
        %2802 = vmatmul.mubr.f32.gmra.mxu0 %v2678
        %v2803 = vpop.f32.mrf.mxu0
        %v2804 = vadd.f32 0.0, %v2803
        %v2805 = vpop.f32.mrf.mxu0
        %2806 = vmatprep.mubr.f32.mxu0 0.0
        %2807 = vmatmul.mubr.f32.gmra.mxu0 %v2681
        %v2808 = vpop.f32.mrf.mxu0
        %v2809 = vadd.f32 0.0, %v2808
        %v2810 = vpop.f32.mrf.mxu0
        %2811 = vmatprep.mubr.f32.mxu0 0.0
        %2812 = vmatmul.mubr.f32.gmra.mxu0 %v2684
        %v2813 = vpop.f32.mrf.mxu0
        %v2814 = vadd.f32 0.0, %v2813
        %v2815 = vpop.f32.mrf.mxu0
        %2816 = vmatprep.mubr.f32.mxu0 0.0
        %2817 = vmatmul.mubr.f32.gmra.mxu0 %v2687
        %v2818 = vpop.f32.mrf.mxu0
        %v2819 = vadd.f32 0.0, %v2818
        %v2820 = vpop.f32.mrf.mxu0
        %2821 = vmatprep.mubr.f32.mxu0 0.0
        %2822 = vmatmul.mubr.f32.gmra.mxu0 %v2690
        %v2823 = vpop.f32.mrf.mxu0
        %v2824 = vadd.f32 0.0, %v2823
        %v2825 = vpop.f32.mrf.mxu0
        %2826 = vmatprep.mubr.f32.mxu0 0.0
        %2827 = vmatmul.mubr.f32.gmra.mxu0 %v2693
        %v2828 = vpop.f32.mrf.mxu0
        %v2829 = vadd.f32 0.0, %v2828
        %v2830 = vpop.f32.mrf.mxu0
        %2831 = vmatprep.mubr.f32.mxu0 0.0
        %2832 = vmatmul.mubr.f32.gmra.mxu0 %v2696
        %v2833 = vpop.f32.mrf.mxu0
        %v2834 = vadd.f32 0.0, %v2833
        %v2835 = vpop.f32.mrf.mxu0
        %2836 = vmatprep.mubr.f32.mxu0 0.0
        %2837 = vmatmul.mubr.f32.gmra.mxu0 %v2699
        %v2838 = vpop.f32.mrf.mxu0
        %v2839 = vadd.f32 0.0, %v2838
        %v2840 = vpop.f32.mrf.mxu0
        %2841 = vmatprep.mubr.f32.mxu0 0.0
        %2842 = vmatmul.mubr.f32.gmra.mxu0 %v2702
        %v2843 = vpop.f32.mrf.mxu0
        %v2844 = vadd.f32 0.0, %v2843
        %v2845 = vpop.f32.mrf.mxu0
        %2846 = vmatprep.mubr.f32.mxu0 0.0
        %2847 = vmatmul.mubr.f32.gmra.mxu0 %v2705
        %v2848 = vpop.f32.mrf.mxu0
        %v2849 = vadd.f32 0.0, %v2848
        %v2850 = vpop.f32.mrf.mxu0
        %2851 = vdwg.mxu0
        %v2853 = vsel %vm989, %v1698, 0
        %v2856 = vsel %vm989, %v1703, 0
        %v2859 = vsel %vm989, %v1708, 0
        %v2862 = vsel %vm989, %v1713, 0
        %v2865 = vsel %vm989, %v1718, 0
        %v2868 = vsel %vm989, %v1723, 0
        %v2871 = vsel %vm989, %v1728, 0
        %v2874 = vsel %vm989, %v1733, 0
        %v2877 = vsel %vm989, %v1738, 0
        %v2880 = vsel %vm989, %v1743, 0
        %v2883 = vsel %vm989, %v1748, 0
        %v2886 = vsel %vm989, %v1753, 0
        %v2889 = vsel %vm989, %v1758, 0
        %v2892 = vsel %vm989, %v1763, 0
        %v2895 = vsel %vm989, %v1768, 0
        %v2898 = vsel %vm989, %v1773, 0
        %2900 = vmatprep.subr.mxu0 0.0
        %2901 = vmatpush1.msra.mxu0 0.0
        %2902 = vmatprep.subr.mxu0 0.0
        %2903 = vmatpush1.msra.mxu0 0.0
        %2904 = vmatprep.subr.mxu0 0.0
        %2905 = vmatpush1.msra.mxu0 0.0
        %2906 = vmatprep.subr.mxu0 0.0
        %2907 = vmatpush1.msra.mxu0 0.0
        %2908 = vmatprep.subr.mxu0 0.0
        %2909 = vmatpush1.msra.mxu0 0.0
        %2910 = vmatprep.subr.mxu0 0.0
        %2911 = vmatpush1.msra.mxu0 0.0
        %2912 = vmatprep.subr.mxu0 0.0
        %2913 = vmatpush1.msra.mxu0 0.0
        %2914 = vmatprep.subr.mxu0 0.0
        %2915 = vmatpush1.msra.mxu0 0.0
        %2916 = vmatprep.subr.mxu0 0.0
        %2917 = vmatpush1.msra.mxu0 0.0
        %2918 = vmatprep.subr.mxu0 0.0
        %2919 = vmatpush1.msra.mxu0 0.0
        %2920 = vmatprep.subr.mxu0 0.0
        %2921 = vmatpush1.msra.mxu0 0.0
        %2922 = vmatprep.subr.mxu0 0.0
        %2923 = vmatpush1.msra.mxu0 0.0
        %2924 = vmatprep.subr.mxu0 0.0
        %2925 = vmatpush1.msra.mxu0 0.0
        %2926 = vmatprep.subr.mxu0 0.0
        %2927 = vmatpush1.msra.mxu0 0.0
        %2928 = vmatprep.subr.mxu0 0.0
        %2929 = vmatpush1.msra.mxu0 0.0
        %2930 = vmatprep.subr.mxu0 0.0
        %2931 = vmatpush1.msra.mxu0 %v937
        %2932 = vmatprep.subr.mxu0 0.0
        %2933 = vmatpush2.msra.mxu0 0.0
        %2934 = vmatprep.subr.mxu0 0.0
        %2935 = vmatpush2.msra.mxu0 0.0
        %2936 = vmatprep.subr.mxu0 0.0
        %2937 = vmatpush2.msra.mxu0 0.0
        %2938 = vmatprep.subr.mxu0 0.0
        %2939 = vmatpush2.msra.mxu0 0.0
        %2940 = vmatprep.subr.mxu0 0.0
        %2941 = vmatpush2.msra.mxu0 0.0
        %2942 = vmatprep.subr.mxu0 0.0
        %2943 = vmatpush2.msra.mxu0 0.0
        %2944 = vmatprep.subr.mxu0 0.0
        %2945 = vmatpush2.msra.mxu0 0.0
        %2946 = vmatprep.subr.mxu0 0.0
        %2947 = vmatpush2.msra.mxu0 0.0
        %2948 = vmatprep.subr.mxu0 0.0
        %2949 = vmatpush2.msra.mxu0 0.0
        %2950 = vmatprep.subr.mxu0 0.0
        %2951 = vmatpush2.msra.mxu0 0.0
        %2952 = vmatprep.subr.mxu0 0.0
        %2953 = vmatpush2.msra.mxu0 0.0
        %2954 = vmatprep.subr.mxu0 0.0
        %2955 = vmatpush2.msra.mxu0 0.0
        %2956 = vmatprep.subr.mxu0 0.0
        %2957 = vmatpush2.msra.mxu0 0.0
        %2958 = vmatprep.subr.mxu0 0.0
        %2959 = vmatpush2.msra.mxu0 0.0
        %2960 = vmatprep.subr.mxu0 0.0
        %2961 = vmatpush2.msra.mxu0 0.0
        %2962 = vmatprep.subr.mxu0 0.0
        %2963 = vmatpush2.msra.mxu0 0.0
        %2964 = vmatprep.mubr.f32.mxu0 0.0
        %2965 = vmatmul.mubr.f32.gmra.mxu0 %v2853
        %v2966 = vpop.f32.mrf.mxu0
        %v2967 = vadd.f32 %v2774, %v2966
        %v2968 = vpop.f32.mrf.mxu0
        %2969 = vmatprep.mubr.f32.mxu0 0.0
        %2970 = vmatmul.mubr.f32.gmra.mxu0 %v2856
        %v2971 = vpop.f32.mrf.mxu0
        %v2972 = vadd.f32 %v2779, %v2971
        %v2973 = vpop.f32.mrf.mxu0
        %2974 = vmatprep.mubr.f32.mxu0 0.0
        %2975 = vmatmul.mubr.f32.gmra.mxu0 %v2859
        %v2976 = vpop.f32.mrf.mxu0
        %v2977 = vadd.f32 %v2784, %v2976
        %v2978 = vpop.f32.mrf.mxu0
        %2979 = vmatprep.mubr.f32.mxu0 0.0
        %2980 = vmatmul.mubr.f32.gmra.mxu0 %v2862
        %v2981 = vpop.f32.mrf.mxu0
        %v2982 = vadd.f32 %v2789, %v2981
        %v2983 = vpop.f32.mrf.mxu0
        %2984 = vmatprep.mubr.f32.mxu0 0.0
        %2985 = vmatmul.mubr.f32.gmra.mxu0 %v2865
        %v2986 = vpop.f32.mrf.mxu0
        %v2987 = vadd.f32 %v2794, %v2986
        %v2988 = vpop.f32.mrf.mxu0
        %2989 = vmatprep.mubr.f32.mxu0 0.0
        %2990 = vmatmul.mubr.f32.gmra.mxu0 %v2868
        %v2991 = vpop.f32.mrf.mxu0
        %v2992 = vadd.f32 %v2799, %v2991
        %v2993 = vpop.f32.mrf.mxu0
        %2994 = vmatprep.mubr.f32.mxu0 0.0
        %2995 = vmatmul.mubr.f32.gmra.mxu0 %v2871
        %v2996 = vpop.f32.mrf.mxu0
        %v2997 = vadd.f32 %v2804, %v2996
        %v2998 = vpop.f32.mrf.mxu0
        %2999 = vmatprep.mubr.f32.mxu0 0.0
        %3000 = vmatmul.mubr.f32.gmra.mxu0 %v2874
        %v3001 = vpop.f32.mrf.mxu0
        %v3002 = vadd.f32 %v2809, %v3001
        %v3003 = vpop.f32.mrf.mxu0
        %3004 = vmatprep.mubr.f32.mxu0 0.0
        %3005 = vmatmul.mubr.f32.gmra.mxu0 %v2877
        %v3006 = vpop.f32.mrf.mxu0
        %v3007 = vadd.f32 %v2814, %v3006
        %v3008 = vpop.f32.mrf.mxu0
        %3009 = vmatprep.mubr.f32.mxu0 0.0
        %3010 = vmatmul.mubr.f32.gmra.mxu0 %v2880
        %v3011 = vpop.f32.mrf.mxu0
        %v3012 = vadd.f32 %v2819, %v3011
        %v3013 = vpop.f32.mrf.mxu0
        %3014 = vmatprep.mubr.f32.mxu0 0.0
        %3015 = vmatmul.mubr.f32.gmra.mxu0 %v2883
        %v3016 = vpop.f32.mrf.mxu0
        %v3017 = vadd.f32 %v2824, %v3016
        %v3018 = vpop.f32.mrf.mxu0
        %3019 = vmatprep.mubr.f32.mxu0 0.0
        %3020 = vmatmul.mubr.f32.gmra.mxu0 %v2886
        %v3021 = vpop.f32.mrf.mxu0
        %v3022 = vadd.f32 %v2829, %v3021
        %v3023 = vpop.f32.mrf.mxu0
        %3024 = vmatprep.mubr.f32.mxu0 0.0
        %3025 = vmatmul.mubr.f32.gmra.mxu0 %v2889
        %v3026 = vpop.f32.mrf.mxu0
        %v3027 = vadd.f32 %v2834, %v3026
        %v3028 = vpop.f32.mrf.mxu0
        %3029 = vmatprep.mubr.f32.mxu0 0.0
        %3030 = vmatmul.mubr.f32.gmra.mxu0 %v2892
        %v3031 = vpop.f32.mrf.mxu0
        %v3032 = vadd.f32 %v2839, %v3031
        %v3033 = vpop.f32.mrf.mxu0
        %3034 = vmatprep.mubr.f32.mxu0 0.0
        %3035 = vmatmul.mubr.f32.gmra.mxu0 %v2895
        %v3036 = vpop.f32.mrf.mxu0
        %v3037 = vadd.f32 %v2844, %v3036
        %v3038 = vpop.f32.mrf.mxu0
        %3039 = vmatprep.mubr.f32.mxu0 0.0
        %3040 = vmatmul.mubr.f32.gmra.mxu0 %v2898
        %v3041 = vpop.f32.mrf.mxu0
        %v3042 = vadd.f32 %v2849, %v3041
        %v3043 = vpop.f32.mrf.mxu0
        %3044 = vdwg.mxu0
        %s3045 = scalar_lea.vmem %s288, 256 [#allocation2]
        %v3046 = vld [vmem:[%s3045] sm:$0xff]
        %v3047 = vld [vmem:[%s3045 + $0x8] sm:$0xff]
        %v3048 = vld [vmem:[%s3045 + $0x10] sm:$0xff]
        %v3049 = vld [vmem:[%s3045 + $0x18] sm:$0xff]
        %v3050 = vld [vmem:[%s3045 + $0x20] sm:$0xff]
        %v3051 = vld [vmem:[%s3045 + $0x28] sm:$0xff]
        %v3052 = vld [vmem:[%s3045 + $0x30] sm:$0xff]
        %v3053 = vld [vmem:[%s3045 + $0x38] sm:$0xff]
        %v3054 = vld [vmem:[%s3045 + $0x40] sm:$0xff]
        %v3055 = vld [vmem:[%s3045 + $0x48] sm:$0xff]
        %v3056 = vld [vmem:[%s3045 + $0x50] sm:$0xff]
        %v3057 = vld [vmem:[%s3045 + $0x58] sm:$0xff]
        %v3058 = vld [vmem:[%s3045 + $0x60] sm:$0xff]
        %v3059 = vld [vmem:[%s3045 + $0x68] sm:$0xff]
        %v3060 = vld [vmem:[%s3045 + $0x70] sm:$0xff]
        %v3061 = vld [vmem:[%s3045 + $0x78] sm:$0xff]
        %v3062 = vunpack.c.l.bf16 %v3046
        %v3063 = vunpack.c.h.bf16 %v3046
        %v3064 = vunpack.c.l.bf16 %v3047
        %v3065 = vunpack.c.h.bf16 %v3047
        %v3066 = vunpack.c.l.bf16 %v3048
        %v3067 = vunpack.c.h.bf16 %v3048
        %v3068 = vunpack.c.l.bf16 %v3049
        %v3069 = vunpack.c.h.bf16 %v3049
        %v3070 = vunpack.c.l.bf16 %v3050
        %v3071 = vunpack.c.h.bf16 %v3050
        %v3072 = vunpack.c.l.bf16 %v3051
        %v3073 = vunpack.c.h.bf16 %v3051
        %v3074 = vunpack.c.l.bf16 %v3052
        %v3075 = vunpack.c.h.bf16 %v3052
        %v3076 = vunpack.c.l.bf16 %v3053
        %v3077 = vunpack.c.h.bf16 %v3053
        %v3078 = vunpack.c.l.bf16 %v3054
        %v3079 = vunpack.c.h.bf16 %v3054
        %v3080 = vunpack.c.l.bf16 %v3055
        %v3081 = vunpack.c.h.bf16 %v3055
        %v3082 = vunpack.c.l.bf16 %v3056
        %v3083 = vunpack.c.h.bf16 %v3056
        %v3084 = vunpack.c.l.bf16 %v3057
        %v3085 = vunpack.c.h.bf16 %v3057
        %v3086 = vunpack.c.l.bf16 %v3058
        %v3087 = vunpack.c.h.bf16 %v3058
        %v3088 = vunpack.c.l.bf16 %v3059
        %v3089 = vunpack.c.h.bf16 %v3059
        %v3090 = vunpack.c.l.bf16 %v3060
        %v3091 = vunpack.c.h.bf16 %v3060
        %v3092 = vunpack.c.l.bf16 %v3061
        %v3093 = vunpack.c.h.bf16 %v3061
        %3094 = vrot.lane.b32.xlu0 %v519, 112
        %v3095 = vpop.permute.xlu0 %3094
        %3096 = vrot.lane.b32.xlu0 %v524, 112
        %v3097 = vpop.permute.xlu0 %3096
        %3098 = vrot.lane.b32.xlu0 %v529, 112
        %v3099 = vpop.permute.xlu0 %3098
        %3100 = vrot.lane.b32.xlu0 %v534, 112
        %v3101 = vpop.permute.xlu0 %3100
        %3102 = vrot.lane.b32.xlu0 %v539, 112
        %v3103 = vpop.permute.xlu0 %3102
        %3104 = vrot.lane.b32.xlu0 %v544, 112
        %v3105 = vpop.permute.xlu0 %3104
        %3106 = vrot.lane.b32.xlu0 %v549, 112
        %v3107 = vpop.permute.xlu0 %3106
        %3108 = vrot.lane.b32.xlu0 %v554, 112
        %v3109 = vpop.permute.xlu0 %3108
        %3110 = vrot.lane.b32.xlu0 %v559, 112
        %v3111 = vpop.permute.xlu0 %3110
        %3112 = vrot.lane.b32.xlu0 %v564, 112
        %v3113 = vpop.permute.xlu0 %3112
        %3114 = vrot.lane.b32.xlu0 %v569, 112
        %v3115 = vpop.permute.xlu0 %3114
        %3116 = vrot.lane.b32.xlu0 %v574, 112
        %v3117 = vpop.permute.xlu0 %3116
        %3118 = vrot.lane.b32.xlu0 %v579, 112
        %v3119 = vpop.permute.xlu0 %3118
        %3120 = vrot.lane.b32.xlu0 %v584, 112
        %v3121 = vpop.permute.xlu0 %3120
        %3122 = vrot.lane.b32.xlu0 %v589, 112
        %v3123 = vpop.permute.xlu0 %3122
        %3124 = vrot.lane.b32.xlu0 %v594, 112
        %v3125 = vpop.permute.xlu0 %3124
        %3126 = vrot.lane.b32.xlu0 %v779, 112
        %v3127 = vpop.permute.xlu0 %3126
        %3128 = vrot.lane.b32.xlu0 %v784, 112
        %v3129 = vpop.permute.xlu0 %3128
        %3130 = vrot.lane.b32.xlu0 %v789, 112
        %v3131 = vpop.permute.xlu0 %3130
        %3132 = vrot.lane.b32.xlu0 %v794, 112
        %v3133 = vpop.permute.xlu0 %3132
        %3134 = vrot.lane.b32.xlu0 %v799, 112
        %v3135 = vpop.permute.xlu0 %3134
        %3136 = vrot.lane.b32.xlu0 %v804, 112
        %v3137 = vpop.permute.xlu0 %3136
        %3138 = vrot.lane.b32.xlu0 %v809, 112
        %v3139 = vpop.permute.xlu0 %3138
        %3140 = vrot.lane.b32.xlu0 %v814, 112
        %v3141 = vpop.permute.xlu0 %3140
        %3142 = vrot.lane.b32.xlu0 %v819, 112
        %v3143 = vpop.permute.xlu0 %3142
        %3144 = vrot.lane.b32.xlu0 %v824, 112
        %v3145 = vpop.permute.xlu0 %3144
        %3146 = vrot.lane.b32.xlu0 %v829, 112
        %v3147 = vpop.permute.xlu0 %3146
        %3148 = vrot.lane.b32.xlu0 %v834, 112
        %v3149 = vpop.permute.xlu0 %3148
        %3150 = vrot.lane.b32.xlu0 %v839, 112
        %v3151 = vpop.permute.xlu0 %3150
        %3152 = vrot.lane.b32.xlu0 %v844, 112
        %v3153 = vpop.permute.xlu0 %3152
        %3154 = vrot.lane.b32.xlu0 %v849, 112
        %v3155 = vpop.permute.xlu0 %3154
        %3156 = vrot.lane.b32.xlu0 %v854, 112
        %v3157 = vpop.permute.xlu0 %3156
        %3158 = vrot.lane.b32.xlu0 %v859, 112
        %v3159 = vpop.permute.xlu0 %3158
        %3160 = vrot.lane.b32.xlu0 %v864, 112
        %v3161 = vpop.permute.xlu0 %3160
        %3162 = vrot.lane.b32.xlu0 %v869, 112
        %v3163 = vpop.permute.xlu0 %3162
        %3164 = vrot.lane.b32.xlu0 %v874, 112
        %v3165 = vpop.permute.xlu0 %3164
        %3166 = vrot.lane.b32.xlu0 %v879, 112
        %v3167 = vpop.permute.xlu0 %3166
        %3168 = vrot.lane.b32.xlu0 %v884, 112
        %v3169 = vpop.permute.xlu0 %3168
        %3170 = vrot.lane.b32.xlu0 %v889, 112
        %v3171 = vpop.permute.xlu0 %3170
        %3172 = vrot.lane.b32.xlu0 %v894, 112
        %v3173 = vpop.permute.xlu0 %3172
        %3174 = vrot.lane.b32.xlu0 %v899, 112
        %v3175 = vpop.permute.xlu0 %3174
        %3176 = vrot.lane.b32.xlu0 %v904, 112
        %v3177 = vpop.permute.xlu0 %3176
        %3178 = vrot.lane.b32.xlu0 %v909, 112
        %v3179 = vpop.permute.xlu0 %3178
        %3180 = vrot.lane.b32.xlu0 %v914, 112
        %v3181 = vpop.permute.xlu0 %3180
        %3182 = vrot.lane.b32.xlu0 %v919, 112
        %v3183 = vpop.permute.xlu0 %3182
        %3184 = vrot.lane.b32.xlu0 %v924, 112
        %v3185 = vpop.permute.xlu0 %3184
        %3186 = vrot.lane.b32.xlu0 %v929, 112
        %v3187 = vpop.permute.xlu0 %3186
        %3188 = vrot.lane.b32.xlu0 %v934, 112
        %v3189 = vpop.permute.xlu0 %3188
        %v3190 = vsel %vm989, %v3095, 0
        %v3192 = vsel %vm989, %v3097, 0
        %v3194 = vsel %vm989, %v3099, 0
        %v3196 = vsel %vm989, %v3101, 0
        %v3198 = vsel %vm989, %v3103, 0
        %v3200 = vsel %vm989, %v3105, 0
        %v3202 = vsel %vm989, %v3107, 0
        %v3204 = vsel %vm989, %v3109, 0
        %v3206 = vsel %vm989, %v3111, 0
        %v3208 = vsel %vm989, %v3113, 0
        %v3210 = vsel %vm989, %v3115, 0
        %v3212 = vsel %vm989, %v3117, 0
        %v3214 = vsel %vm989, %v3119, 0
        %v3216 = vsel %vm989, %v3121, 0
        %v3218 = vsel %vm989, %v3123, 0
        %v3220 = vsel %vm989, %v3125, 0
        %v3222 = vsel %vm989, %v3127, 0
        %v3224 = vsel %vm989, %v3129, 0
        %v3226 = vsel %vm989, %v3131, 0
        %v3228 = vsel %vm989, %v3133, 0
        %v3230 = vsel %vm989, %v3135, 0
        %v3232 = vsel %vm989, %v3137, 0
        %v3234 = vsel %vm989, %v3139, 0
        %v3236 = vsel %vm989, %v3141, 0
        %v3238 = vsel %vm989, %v3143, 0
        %v3240 = vsel %vm989, %v3145, 0
        %v3242 = vsel %vm989, %v3147, 0
        %v3244 = vsel %vm989, %v3149, 0
        %v3246 = vsel %vm989, %v3151, 0
        %v3248 = vsel %vm989, %v3153, 0
        %v3250 = vsel %vm989, %v3155, 0
        %v3252 = vsel %vm989, %v3157, 0
        %v3254 = vsel %vm989, %v3159, 0
        %v3256 = vsel %vm989, %v3161, 0
        %v3258 = vsel %vm989, %v3163, 0
        %v3260 = vsel %vm989, %v3165, 0
        %v3262 = vsel %vm989, %v3167, 0
        %v3264 = vsel %vm989, %v3169, 0
        %v3266 = vsel %vm989, %v3171, 0
        %v3268 = vsel %vm989, %v3173, 0
        %v3270 = vsel %vm989, %v3175, 0
        %v3272 = vsel %vm989, %v3177, 0
        %v3274 = vsel %vm989, %v3179, 0
        %v3276 = vsel %vm989, %v3181, 0
        %v3278 = vsel %vm989, %v3183, 0
        %v3280 = vsel %vm989, %v3185, 0
        %v3282 = vsel %vm989, %v3187, 0
        %v3284 = vsel %vm989, %v3189, 0
        %3286 = vmatprep.subr.mxu0 0.0
        %3287 = vmatpush1.xpose.msra.mxu0 %v3252
        %3288 = vmatprep.subr.mxu0 0.0
        %3289 = vmatpush1.xpose.msra.mxu0 %v3250
        %3290 = vmatprep.subr.mxu0 0.0
        %3291 = vmatpush1.xpose.msra.mxu0 %v3248
        %3292 = vmatprep.subr.mxu0 0.0
        %3293 = vmatpush1.xpose.msra.mxu0 %v3246
        %3294 = vmatprep.subr.mxu0 0.0
        %3295 = vmatpush1.xpose.msra.mxu0 %v3244
        %3296 = vmatprep.subr.mxu0 0.0
        %3297 = vmatpush1.xpose.msra.mxu0 %v3242
        %3298 = vmatprep.subr.mxu0 0.0
        %3299 = vmatpush1.xpose.msra.mxu0 %v3240
        %3300 = vmatprep.subr.mxu0 0.0
        %3301 = vmatpush1.xpose.msra.mxu0 %v3238
        %3302 = vmatprep.subr.mxu0 0.0
        %3303 = vmatpush1.xpose.msra.mxu0 %v3236
        %3304 = vmatprep.subr.mxu0 0.0
        %3305 = vmatpush1.xpose.msra.mxu0 %v3234
        %3306 = vmatprep.subr.mxu0 0.0
        %3307 = vmatpush1.xpose.msra.mxu0 %v3232
        %3308 = vmatprep.subr.mxu0 0.0
        %3309 = vmatpush1.xpose.msra.mxu0 %v3230
        %3310 = vmatprep.subr.mxu0 0.0
        %3311 = vmatpush1.xpose.msra.mxu0 %v3228
        %3312 = vmatprep.subr.mxu0 0.0
        %3313 = vmatpush1.xpose.msra.mxu0 %v3226
        %3314 = vmatprep.subr.mxu0 0.0
        %3315 = vmatpush1.xpose.msra.mxu0 %v3224
        %3316 = vmatprep.subr.mxu0 0.0
        %3317 = vmatpush1.xpose.msra.mxu0 %v3222
        %3318 = vmatprep.subr.mxu0 0.0
        %3319 = vmatpush2.xpose.msra.mxu0 %v3284
        %3320 = vmatprep.subr.mxu0 0.0
        %3321 = vmatpush2.xpose.msra.mxu0 %v3282
        %3322 = vmatprep.subr.mxu0 0.0
        %3323 = vmatpush2.xpose.msra.mxu0 %v3280
        %3324 = vmatprep.subr.mxu0 0.0
        %3325 = vmatpush2.xpose.msra.mxu0 %v3278
        %3326 = vmatprep.subr.mxu0 0.0
        %3327 = vmatpush2.xpose.msra.mxu0 %v3276
        %3328 = vmatprep.subr.mxu0 0.0
        %3329 = vmatpush2.xpose.msra.mxu0 %v3274
        %3330 = vmatprep.subr.mxu0 0.0
        %3331 = vmatpush2.xpose.msra.mxu0 %v3272
        %3332 = vmatprep.subr.mxu0 0.0
        %3333 = vmatpush2.xpose.msra.mxu0 %v3270
        %3334 = vmatprep.subr.mxu0 0.0
        %3335 = vmatpush2.xpose.msra.mxu0 %v3268
        %3336 = vmatprep.subr.mxu0 0.0
        %3337 = vmatpush2.xpose.msra.mxu0 %v3266
        %3338 = vmatprep.subr.mxu0 0.0
        %3339 = vmatpush2.xpose.msra.mxu0 %v3264
        %3340 = vmatprep.subr.mxu0 0.0
        %3341 = vmatpush2.xpose.msra.mxu0 %v3262
        %3342 = vmatprep.subr.mxu0 0.0
        %3343 = vmatpush2.xpose.msra.mxu0 %v3260
        %3344 = vmatprep.subr.mxu0 0.0
        %3345 = vmatpush2.xpose.msra.mxu0 %v3258
        %3346 = vmatprep.subr.mxu0 0.0
        %3347 = vmatpush2.xpose.msra.mxu0 %v3256
        %3348 = vmatprep.subr.mxu0 0.0
        %3349 = vmatpush2.xpose.msra.mxu0 %v3254
        %3350 = vmatprep.mubr.f32.mxu0 0.0
        %3351 = vmatmul.mubr.f32.gmra.mxu0 %v3190
        %v3352 = vpop.f32.mrf.mxu0
        %v3353 = vadd.f32 %v3062, %v3352
        %v3354 = vpop.f32.mrf.mxu0
        %v3355 = vadd.f32 %v3063, %v3354
        %3356 = vmatprep.mubr.f32.mxu0 0.0
        %3357 = vmatmul.mubr.f32.gmra.mxu0 %v3192
        %v3358 = vpop.f32.mrf.mxu0
        %v3359 = vadd.f32 %v3064, %v3358
        %v3360 = vpop.f32.mrf.mxu0
        %v3361 = vadd.f32 %v3065, %v3360
        %3362 = vmatprep.mubr.f32.mxu0 0.0
        %3363 = vmatmul.mubr.f32.gmra.mxu0 %v3194
        %v3364 = vpop.f32.mrf.mxu0
        %v3365 = vadd.f32 %v3066, %v3364
        %v3366 = vpop.f32.mrf.mxu0
        %v3367 = vadd.f32 %v3067, %v3366
        %3368 = vmatprep.mubr.f32.mxu0 0.0
        %3369 = vmatmul.mubr.f32.gmra.mxu0 %v3196
        %v3370 = vpop.f32.mrf.mxu0
        %v3371 = vadd.f32 %v3068, %v3370
        %v3372 = vpop.f32.mrf.mxu0
        %v3373 = vadd.f32 %v3069, %v3372
        %3374 = vmatprep.mubr.f32.mxu0 0.0
        %3375 = vmatmul.mubr.f32.gmra.mxu0 %v3198
        %v3376 = vpop.f32.mrf.mxu0
        %v3377 = vadd.f32 %v3070, %v3376
        %v3378 = vpop.f32.mrf.mxu0
        %v3379 = vadd.f32 %v3071, %v3378
        %3380 = vmatprep.mubr.f32.mxu0 0.0
        %3381 = vmatmul.mubr.f32.gmra.mxu0 %v3200
        %v3382 = vpop.f32.mrf.mxu0
        %v3383 = vadd.f32 %v3072, %v3382
        %v3384 = vpop.f32.mrf.mxu0
        %v3385 = vadd.f32 %v3073, %v3384
        %3386 = vmatprep.mubr.f32.mxu0 0.0
        %3387 = vmatmul.mubr.f32.gmra.mxu0 %v3202
        %v3388 = vpop.f32.mrf.mxu0
        %v3389 = vadd.f32 %v3074, %v3388
        %v3390 = vpop.f32.mrf.mxu0
        %v3391 = vadd.f32 %v3075, %v3390
        %3392 = vmatprep.mubr.f32.mxu0 0.0
        %3393 = vmatmul.mubr.f32.gmra.mxu0 %v3204
        %v3394 = vpop.f32.mrf.mxu0
        %v3395 = vadd.f32 %v3076, %v3394
        %v3396 = vpop.f32.mrf.mxu0
        %v3397 = vadd.f32 %v3077, %v3396
        %3398 = vmatprep.mubr.f32.mxu0 0.0
        %3399 = vmatmul.mubr.f32.gmra.mxu0 %v3206
        %v3400 = vpop.f32.mrf.mxu0
        %v3401 = vadd.f32 %v3078, %v3400
        %v3402 = vpop.f32.mrf.mxu0
        %v3403 = vadd.f32 %v3079, %v3402
        %3404 = vmatprep.mubr.f32.mxu0 0.0
        %3405 = vmatmul.mubr.f32.gmra.mxu0 %v3208
        %v3406 = vpop.f32.mrf.mxu0
        %v3407 = vadd.f32 %v3080, %v3406
        %v3408 = vpop.f32.mrf.mxu0
        %v3409 = vadd.f32 %v3081, %v3408
        %3410 = vmatprep.mubr.f32.mxu0 0.0
        %3411 = vmatmul.mubr.f32.gmra.mxu0 %v3210
        %v3412 = vpop.f32.mrf.mxu0
        %v3413 = vadd.f32 %v3082, %v3412
        %v3414 = vpop.f32.mrf.mxu0
        %v3415 = vadd.f32 %v3083, %v3414
        %3416 = vmatprep.mubr.f32.mxu0 0.0
        %3417 = vmatmul.mubr.f32.gmra.mxu0 %v3212
        %v3418 = vpop.f32.mrf.mxu0
        %v3419 = vadd.f32 %v3084, %v3418
        %v3420 = vpop.f32.mrf.mxu0
        %v3421 = vadd.f32 %v3085, %v3420
        %3422 = vmatprep.mubr.f32.mxu0 0.0
        %3423 = vmatmul.mubr.f32.gmra.mxu0 %v3214
        %v3424 = vpop.f32.mrf.mxu0
        %v3425 = vadd.f32 %v3086, %v3424
        %v3426 = vpop.f32.mrf.mxu0
        %v3427 = vadd.f32 %v3087, %v3426
        %3428 = vmatprep.mubr.f32.mxu0 0.0
        %3429 = vmatmul.mubr.f32.gmra.mxu0 %v3216
        %v3430 = vpop.f32.mrf.mxu0
        %v3431 = vadd.f32 %v3088, %v3430
        %v3432 = vpop.f32.mrf.mxu0
        %v3433 = vadd.f32 %v3089, %v3432
        %3434 = vmatprep.mubr.f32.mxu0 0.0
        %3435 = vmatmul.mubr.f32.gmra.mxu0 %v3218
        %v3436 = vpop.f32.mrf.mxu0
        %v3437 = vadd.f32 %v3090, %v3436
        %v3438 = vpop.f32.mrf.mxu0
        %v3439 = vadd.f32 %v3091, %v3438
        %3440 = vmatprep.mubr.f32.mxu0 0.0
        %3441 = vmatmul.mubr.f32.gmra.mxu0 %v3220
        %v3442 = vpop.f32.mrf.mxu0
        %v3443 = vadd.f32 %v3092, %v3442
        %v3444 = vpop.f32.mrf.mxu0
        %v3445 = vadd.f32 %v3093, %v3444
        %3446 = vdwg.mxu0
        %v3447 = vmax.f32 %v3353, %v3355
        %3448 = vmax.xlane.f32.xlu0 %v3447
        %v3449 = vpop.xlane.xlu0 %3448
        %v3450 = vmax.f32 %v3359, %v3361
        %3451 = vmax.xlane.f32.xlu0 %v3450
        %v3452 = vpop.xlane.xlu0 %3451
        %v3453 = vmax.f32 %v3365, %v3367
        %3454 = vmax.xlane.f32.xlu0 %v3453
        %v3455 = vpop.xlane.xlu0 %3454
        %v3456 = vmax.f32 %v3371, %v3373
        %3457 = vmax.xlane.f32.xlu0 %v3456
        %v3458 = vpop.xlane.xlu0 %3457
        %v3459 = vmax.f32 %v3377, %v3379
        %3460 = vmax.xlane.f32.xlu0 %v3459
        %v3461 = vpop.xlane.xlu0 %3460
        %v3462 = vmax.f32 %v3383, %v3385
        %3463 = vmax.xlane.f32.xlu0 %v3462
        %v3464 = vpop.xlane.xlu0 %3463
        %v3465 = vmax.f32 %v3389, %v3391
        %3466 = vmax.xlane.f32.xlu0 %v3465
        %v3467 = vpop.xlane.xlu0 %3466
        %v3468 = vmax.f32 %v3395, %v3397
        %3469 = vmax.xlane.f32.xlu0 %v3468
        %v3470 = vpop.xlane.xlu0 %3469
        %v3471 = vmax.f32 %v3401, %v3403
        %3472 = vmax.xlane.f32.xlu0 %v3471
        %v3473 = vpop.xlane.xlu0 %3472
        %v3474 = vmax.f32 %v3407, %v3409
        %3475 = vmax.xlane.f32.xlu0 %v3474
        %v3476 = vpop.xlane.xlu0 %3475
        %v3477 = vmax.f32 %v3413, %v3415
        %3478 = vmax.xlane.f32.xlu0 %v3477
        %v3479 = vpop.xlane.xlu0 %3478
        %v3480 = vmax.f32 %v3419, %v3421
        %3481 = vmax.xlane.f32.xlu0 %v3480
        %v3482 = vpop.xlane.xlu0 %3481
        %v3483 = vmax.f32 %v3425, %v3427
        %3484 = vmax.xlane.f32.xlu0 %v3483
        %v3485 = vpop.xlane.xlu0 %3484
        %v3486 = vmax.f32 %v3431, %v3433
        %3487 = vmax.xlane.f32.xlu0 %v3486
        %v3488 = vpop.xlane.xlu0 %3487
        %v3489 = vmax.f32 %v3437, %v3439
        %3490 = vmax.xlane.f32.xlu0 %v3489
        %v3491 = vpop.xlane.xlu0 %3490
        %v3492 = vmax.f32 %v3443, %v3445
        %3493 = vmax.xlane.f32.xlu0 %v3492
        %v3494 = vpop.xlane.xlu0 %3493
        %v3495 = vsub.f32 %v3353, %v3449
        %v3496 = vsub.f32 %v3355, %v3449
        %v3497 = vsub.f32 %v3359, %v3452
        %v3498 = vsub.f32 %v3361, %v3452
        %v3499 = vsub.f32 %v3365, %v3455
        %v3500 = vsub.f32 %v3367, %v3455
        %v3501 = vsub.f32 %v3371, %v3458
        %v3502 = vsub.f32 %v3373, %v3458
        %v3503 = vsub.f32 %v3377, %v3461
        %v3504 = vsub.f32 %v3379, %v3461
        %v3505 = vsub.f32 %v3383, %v3464
        %v3506 = vsub.f32 %v3385, %v3464
        %v3507 = vsub.f32 %v3389, %v3467
        %v3508 = vsub.f32 %v3391, %v3467
        %v3509 = vsub.f32 %v3395, %v3470
        %v3510 = vsub.f32 %v3397, %v3470
        %v3511 = vsub.f32 %v3401, %v3473
        %v3512 = vsub.f32 %v3403, %v3473
        %v3513 = vsub.f32 %v3407, %v3476
        %v3514 = vsub.f32 %v3409, %v3476
        %v3515 = vsub.f32 %v3413, %v3479
        %v3516 = vsub.f32 %v3415, %v3479
        %v3517 = vsub.f32 %v3419, %v3482
        %v3518 = vsub.f32 %v3421, %v3482
        %v3519 = vsub.f32 %v3425, %v3485
        %v3520 = vsub.f32 %v3427, %v3485
        %v3521 = vsub.f32 %v3431, %v3488
        %v3522 = vsub.f32 %v3433, %v3488
        %v3523 = vsub.f32 %v3437, %v3491
        %v3524 = vsub.f32 %v3439, %v3491
        %v3525 = vsub.f32 %v3443, %v3494
        %v3526 = vsub.f32 %v3445, %v3494
        %v3527 = vmul.f32 %v3495, 1.442695
        %v3528 = vpow.pop %v3527
        %v3529 = vmul.f32 %v3496, 1.442695
        %v3530 = vpow.pop %v3529
        %v3531 = vmul.f32 %v3497, 1.442695
        %v3532 = vpow.pop %v3531
        %v3533 = vmul.f32 %v3498, 1.442695
        %v3534 = vpow.pop %v3533
        %v3535 = vmul.f32 %v3499, 1.442695
        %v3536 = vpow.pop %v3535
        %v3537 = vmul.f32 %v3500, 1.442695
        %v3538 = vpow.pop %v3537
        %v3539 = vmul.f32 %v3501, 1.442695
        %v3540 = vpow.pop %v3539
        %v3541 = vmul.f32 %v3502, 1.442695
        %v3542 = vpow.pop %v3541
        %v3543 = vmul.f32 %v3503, 1.442695
        %v3544 = vpow.pop %v3543
        %v3545 = vmul.f32 %v3504, 1.442695
        %v3546 = vpow.pop %v3545
        %v3547 = vmul.f32 %v3505, 1.442695
        %v3548 = vpow.pop %v3547
        %v3549 = vmul.f32 %v3506, 1.442695
        %v3550 = vpow.pop %v3549
        %v3551 = vmul.f32 %v3507, 1.442695
        %v3552 = vpow.pop %v3551
        %v3553 = vmul.f32 %v3508, 1.442695
        %v3554 = vpow.pop %v3553
        %v3555 = vmul.f32 %v3509, 1.442695
        %v3556 = vpow.pop %v3555
        %v3557 = vmul.f32 %v3510, 1.442695
        %v3558 = vpow.pop %v3557
        %v3559 = vmul.f32 %v3511, 1.442695
        %v3560 = vpow.pop %v3559
        %v3561 = vmul.f32 %v3512, 1.442695
        %v3562 = vpow.pop %v3561
        %v3563 = vmul.f32 %v3513, 1.442695
        %v3564 = vpow.pop %v3563
        %v3565 = vmul.f32 %v3514, 1.442695
        %v3566 = vpow.pop %v3565
        %v3567 = vmul.f32 %v3515, 1.442695
        %v3568 = vpow.pop %v3567
        %v3569 = vmul.f32 %v3516, 1.442695
        %v3570 = vpow.pop %v3569
        %v3571 = vmul.f32 %v3517, 1.442695
        %v3572 = vpow.pop %v3571
        %v3573 = vmul.f32 %v3518, 1.442695
        %v3574 = vpow.pop %v3573
        %v3575 = vmul.f32 %v3519, 1.442695
        %v3576 = vpow.pop %v3575
        %v3577 = vmul.f32 %v3520, 1.442695
        %v3578 = vpow.pop %v3577
        %v3579 = vmul.f32 %v3521, 1.442695
        %v3580 = vpow.pop %v3579
        %v3581 = vmul.f32 %v3522, 1.442695
        %v3582 = vpow.pop %v3581
        %v3583 = vmul.f32 %v3523, 1.442695
        %v3584 = vpow.pop %v3583
        %v3585 = vmul.f32 %v3524, 1.442695
        %v3586 = vpow.pop %v3585
        %v3587 = vmul.f32 %v3525, 1.442695
        %v3588 = vpow.pop %v3587
        %v3589 = vmul.f32 %v3526, 1.442695
        %v3590 = vpow.pop %v3589
        %v3591 = vadd.f32 %v3528, %v3530
        %3592 = vadd.xlane.f32.xlu0 %v3591
        %v3593 = vpop.xlane.xlu0 %3592
        %v3594 = vadd.f32 %v3532, %v3534
        %3595 = vadd.xlane.f32.xlu0 %v3594
        %v3596 = vpop.xlane.xlu0 %3595
        %v3597 = vadd.f32 %v3536, %v3538
        %3598 = vadd.xlane.f32.xlu0 %v3597
        %v3599 = vpop.xlane.xlu0 %3598
        %v3600 = vadd.f32 %v3540, %v3542
        %3601 = vadd.xlane.f32.xlu0 %v3600
        %v3602 = vpop.xlane.xlu0 %3601
        %v3603 = vadd.f32 %v3544, %v3546
        %3604 = vadd.xlane.f32.xlu0 %v3603
        %v3605 = vpop.xlane.xlu0 %3604
        %v3606 = vadd.f32 %v3548, %v3550
        %3607 = vadd.xlane.f32.xlu0 %v3606
        %v3608 = vpop.xlane.xlu0 %3607
        %v3609 = vadd.f32 %v3552, %v3554
        %3610 = vadd.xlane.f32.xlu0 %v3609
        %v3611 = vpop.xlane.xlu0 %3610
        %v3612 = vadd.f32 %v3556, %v3558
        %3613 = vadd.xlane.f32.xlu0 %v3612
        %v3614 = vpop.xlane.xlu0 %3613
        %v3615 = vadd.f32 %v3560, %v3562
        %3616 = vadd.xlane.f32.xlu0 %v3615
        %v3617 = vpop.xlane.xlu0 %3616
        %v3618 = vadd.f32 %v3564, %v3566
        %3619 = vadd.xlane.f32.xlu0 %v3618
        %v3620 = vpop.xlane.xlu0 %3619
        %v3621 = vadd.f32 %v3568, %v3570
        %3622 = vadd.xlane.f32.xlu0 %v3621
        %v3623 = vpop.xlane.xlu0 %3622
        %v3624 = vadd.f32 %v3572, %v3574
        %3625 = vadd.xlane.f32.xlu0 %v3624
        %v3626 = vpop.xlane.xlu0 %3625
        %v3627 = vadd.f32 %v3576, %v3578
        %3628 = vadd.xlane.f32.xlu0 %v3627
        %v3629 = vpop.xlane.xlu0 %3628
        %v3630 = vadd.f32 %v3580, %v3582
        %3631 = vadd.xlane.f32.xlu0 %v3630
        %v3632 = vpop.xlane.xlu0 %3631
        %v3633 = vadd.f32 %v3584, %v3586
        %3634 = vadd.xlane.f32.xlu0 %v3633
        %v3635 = vpop.xlane.xlu0 %3634
        %v3636 = vadd.f32 %v3588, %v3590
        %3637 = vadd.xlane.f32.xlu0 %v3636
        %v3638 = vpop.xlane.xlu0 %3637
        %v3639 = vrcp.pop %v3593
        %v3640 = vrcp.pop %v3596
        %v3641 = vrcp.pop %v3599
        %v3642 = vrcp.pop %v3602
        %v3643 = vrcp.pop %v3605
        %v3644 = vrcp.pop %v3608
        %v3645 = vrcp.pop %v3611
        %v3646 = vrcp.pop %v3614
        %v3647 = vrcp.pop %v3617
        %v3648 = vrcp.pop %v3620
        %v3649 = vrcp.pop %v3623
        %v3650 = vrcp.pop %v3626
        %v3651 = vrcp.pop %v3629
        %v3652 = vrcp.pop %v3632
        %v3653 = vrcp.pop %v3635
        %v3654 = vrcp.pop %v3638
        %v3655 = vmul.f32 %v3528, %v3639
        %v3656 = vmul.f32 %v3530, %v3639
        %v3657 = vmul.f32 %v3532, %v3640
        %v3658 = vmul.f32 %v3534, %v3640
        %v3659 = vmul.f32 %v3536, %v3641
        %v3660 = vmul.f32 %v3538, %v3641
        %v3661 = vmul.f32 %v3540, %v3642
        %v3662 = vmul.f32 %v3542, %v3642
        %v3663 = vmul.f32 %v3544, %v3643
        %v3664 = vmul.f32 %v3546, %v3643
        %v3665 = vmul.f32 %v3548, %v3644
        %v3666 = vmul.f32 %v3550, %v3644
        %v3667 = vmul.f32 %v3552, %v3645
        %v3668 = vmul.f32 %v3554, %v3645
        %v3669 = vmul.f32 %v3556, %v3646
        %v3670 = vmul.f32 %v3558, %v3646
        %v3671 = vmul.f32 %v3560, %v3647
        %v3672 = vmul.f32 %v3562, %v3647
        %v3673 = vmul.f32 %v3564, %v3648
        %v3674 = vmul.f32 %v3566, %v3648
        %v3675 = vmul.f32 %v3568, %v3649
        %v3676 = vmul.f32 %v3570, %v3649
        %v3677 = vmul.f32 %v3572, %v3650
        %v3678 = vmul.f32 %v3574, %v3650
        %v3679 = vmul.f32 %v3576, %v3651
        %v3680 = vmul.f32 %v3578, %v3651
        %v3681 = vmul.f32 %v3580, %v3652
        %v3682 = vmul.f32 %v3582, %v3652
        %v3683 = vmul.f32 %v3584, %v3653
        %v3684 = vmul.f32 %v3586, %v3653
        %v3685 = vmul.f32 %v3588, %v3654
        %v3686 = vmul.f32 %v3590, %v3654
        %3687 = vrot.lane.b32.xlu0 %v779, 80
        %v3688 = vpop.permute.xlu0 %3687
        %3689 = vrot.lane.b32.xlu0 %v784, 80
        %v3690 = vpop.permute.xlu0 %3689
        %3691 = vrot.lane.b32.xlu0 %v789, 80
        %v3692 = vpop.permute.xlu0 %3691
        %3693 = vrot.lane.b32.xlu0 %v794, 80
        %v3694 = vpop.permute.xlu0 %3693
        %3695 = vrot.lane.b32.xlu0 %v799, 80
        %v3696 = vpop.permute.xlu0 %3695
        %3697 = vrot.lane.b32.xlu0 %v804, 80
        %v3698 = vpop.permute.xlu0 %3697
        %3699 = vrot.lane.b32.xlu0 %v809, 80
        %v3700 = vpop.permute.xlu0 %3699
        %3701 = vrot.lane.b32.xlu0 %v814, 80
        %v3702 = vpop.permute.xlu0 %3701
        %3703 = vrot.lane.b32.xlu0 %v819, 80
        %v3704 = vpop.permute.xlu0 %3703
        %3705 = vrot.lane.b32.xlu0 %v824, 80
        %v3706 = vpop.permute.xlu0 %3705
        %3707 = vrot.lane.b32.xlu0 %v829, 80
        %v3708 = vpop.permute.xlu0 %3707
        %3709 = vrot.lane.b32.xlu0 %v834, 80
        %v3710 = vpop.permute.xlu0 %3709
        %3711 = vrot.lane.b32.xlu0 %v839, 80
        %v3712 = vpop.permute.xlu0 %3711
        %3713 = vrot.lane.b32.xlu0 %v844, 80
        %v3714 = vpop.permute.xlu0 %3713
        %3715 = vrot.lane.b32.xlu0 %v849, 80
        %v3716 = vpop.permute.xlu0 %3715
        %3717 = vrot.lane.b32.xlu0 %v854, 80
        %v3718 = vpop.permute.xlu0 %3717
        %3719 = vrot.lane.b32.xlu0 %v859, 80
        %v3720 = vpop.permute.xlu0 %3719
        %3721 = vrot.lane.b32.xlu0 %v864, 80
        %v3722 = vpop.permute.xlu0 %3721
        %3723 = vrot.lane.b32.xlu0 %v869, 80
        %v3724 = vpop.permute.xlu0 %3723
        %3725 = vrot.lane.b32.xlu0 %v874, 80
        %v3726 = vpop.permute.xlu0 %3725
        %3727 = vrot.lane.b32.xlu0 %v879, 80
        %v3728 = vpop.permute.xlu0 %3727
        %3729 = vrot.lane.b32.xlu0 %v884, 80
        %v3730 = vpop.permute.xlu0 %3729
        %3731 = vrot.lane.b32.xlu0 %v889, 80
        %v3732 = vpop.permute.xlu0 %3731
        %3733 = vrot.lane.b32.xlu0 %v894, 80
        %v3734 = vpop.permute.xlu0 %3733
        %3735 = vrot.lane.b32.xlu0 %v899, 80
        %v3736 = vpop.permute.xlu0 %3735
        %3737 = vrot.lane.b32.xlu0 %v904, 80
        %v3738 = vpop.permute.xlu0 %3737
        %3739 = vrot.lane.b32.xlu0 %v909, 80
        %v3740 = vpop.permute.xlu0 %3739
        %3741 = vrot.lane.b32.xlu0 %v914, 80
        %v3742 = vpop.permute.xlu0 %3741
        %3743 = vrot.lane.b32.xlu0 %v919, 80
        %v3744 = vpop.permute.xlu0 %3743
        %3745 = vrot.lane.b32.xlu0 %v924, 80
        %v3746 = vpop.permute.xlu0 %3745
        %3747 = vrot.lane.b32.xlu0 %v929, 80
        %v3748 = vpop.permute.xlu0 %3747
        %3749 = vrot.lane.b32.xlu0 %v934, 80
        %v3750 = vpop.permute.xlu0 %3749
        %3783 = vmatprep.subr.mxu0 0.0
        %3784 = vmatpush1.msra.mxu0 %v3718
        %3785 = vmatprep.subr.mxu0 0.0
        %3786 = vmatpush1.msra.mxu0 %v3716
        %3787 = vmatprep.subr.mxu0 0.0
        %3788 = vmatpush1.msra.mxu0 %v3714
        %3789 = vmatprep.subr.mxu0 0.0
        %3790 = vmatpush1.msra.mxu0 %v3712
        %3791 = vmatprep.subr.mxu0 0.0
        %3792 = vmatpush1.msra.mxu0 %v3710
        %3793 = vmatprep.subr.mxu0 0.0
        %3794 = vmatpush1.msra.mxu0 %v3708
        %3795 = vmatprep.subr.mxu0 0.0
        %3796 = vmatpush1.msra.mxu0 %v3706
        %3797 = vmatprep.subr.mxu0 0.0
        %3798 = vmatpush1.msra.mxu0 %v3704
        %3799 = vmatprep.subr.mxu0 0.0
        %3800 = vmatpush1.msra.mxu0 %v3702
        %3801 = vmatprep.subr.mxu0 0.0
        %3802 = vmatpush1.msra.mxu0 %v3700
        %3803 = vmatprep.subr.mxu0 0.0
        %3804 = vmatpush1.msra.mxu0 %v3698
        %3805 = vmatprep.subr.mxu0 0.0
        %3806 = vmatpush1.msra.mxu0 %v3696
        %3807 = vmatprep.subr.mxu0 0.0
        %3808 = vmatpush1.msra.mxu0 %v3694
        %3809 = vmatprep.subr.mxu0 0.0
        %3810 = vmatpush1.msra.mxu0 %v3692
        %3811 = vmatprep.subr.mxu0 0.0
        %3812 = vmatpush1.msra.mxu0 %v3690
        %3813 = vmatprep.subr.mxu0 0.0
        %3814 = vmatpush1.msra.mxu0 %v3688
        %3815 = vmatprep.subr.mxu0 0.0
        %3816 = vmatpush2.msra.mxu0 %v3750
        %3817 = vmatprep.subr.mxu0 0.0
        %3818 = vmatpush2.msra.mxu0 %v3748
        %3819 = vmatprep.subr.mxu0 0.0
        %3820 = vmatpush2.msra.mxu0 %v3746
        %3821 = vmatprep.subr.mxu0 0.0
        %3822 = vmatpush2.msra.mxu0 %v3744
        %3823 = vmatprep.subr.mxu0 0.0
        %3824 = vmatpush2.msra.mxu0 %v3742
        %3825 = vmatprep.subr.mxu0 0.0
        %3826 = vmatpush2.msra.mxu0 %v3740
        %3827 = vmatprep.subr.mxu0 0.0
        %3828 = vmatpush2.msra.mxu0 %v3738
        %3829 = vmatprep.subr.mxu0 0.0
        %3830 = vmatpush2.msra.mxu0 %v3736
        %3831 = vmatprep.subr.mxu0 0.0
        %3832 = vmatpush2.msra.mxu0 %v3734
        %3833 = vmatprep.subr.mxu0 0.0
        %3834 = vmatpush2.msra.mxu0 %v3732
        %3835 = vmatprep.subr.mxu0 0.0
        %3836 = vmatpush2.msra.mxu0 %v3730
        %3837 = vmatprep.subr.mxu0 0.0
        %3838 = vmatpush2.msra.mxu0 %v3728
        %3839 = vmatprep.subr.mxu0 0.0
        %3840 = vmatpush2.msra.mxu0 %v3726
        %3841 = vmatprep.subr.mxu0 0.0
        %3842 = vmatpush2.msra.mxu0 %v3724
        %3843 = vmatprep.subr.mxu0 0.0
        %3844 = vmatpush2.msra.mxu0 %v3722
        %3845 = vmatprep.subr.mxu0 0.0
        %3846 = vmatpush2.msra.mxu0 %v3720
        %3847 = vmatprep.mubr.f32.mxu0 %v3656
        %3848 = vmatmul.mubr.f32.gmra.mxu0 %v3655
        %v3849 = vpop.f32.mrf.mxu0
        %v3850 = vadd.f32 0.0, %v3849
        %v3851 = vpop.f32.mrf.mxu0
        %3852 = vmatprep.mubr.f32.mxu0 %v3658
        %3853 = vmatmul.mubr.f32.gmra.mxu0 %v3657
        %v3854 = vpop.f32.mrf.mxu0
        %v3855 = vadd.f32 0.0, %v3854
        %v3856 = vpop.f32.mrf.mxu0
        %3857 = vmatprep.mubr.f32.mxu0 %v3660
        %3858 = vmatmul.mubr.f32.gmra.mxu0 %v3659
        %v3859 = vpop.f32.mrf.mxu0
        %v3860 = vadd.f32 0.0, %v3859
        %v3861 = vpop.f32.mrf.mxu0
        %3862 = vmatprep.mubr.f32.mxu0 %v3662
        %3863 = vmatmul.mubr.f32.gmra.mxu0 %v3661
        %v3864 = vpop.f32.mrf.mxu0
        %v3865 = vadd.f32 0.0, %v3864
        %v3866 = vpop.f32.mrf.mxu0
        %3867 = vmatprep.mubr.f32.mxu0 %v3664
        %3868 = vmatmul.mubr.f32.gmra.mxu0 %v3663
        %v3869 = vpop.f32.mrf.mxu0
        %v3870 = vadd.f32 0.0, %v3869
        %v3871 = vpop.f32.mrf.mxu0
        %3872 = vmatprep.mubr.f32.mxu0 %v3666
        %3873 = vmatmul.mubr.f32.gmra.mxu0 %v3665
        %v3874 = vpop.f32.mrf.mxu0
        %v3875 = vadd.f32 0.0, %v3874
        %v3876 = vpop.f32.mrf.mxu0
        %3877 = vmatprep.mubr.f32.mxu0 %v3668
        %3878 = vmatmul.mubr.f32.gmra.mxu0 %v3667
        %v3879 = vpop.f32.mrf.mxu0
        %v3880 = vadd.f32 0.0, %v3879
        %v3881 = vpop.f32.mrf.mxu0
        %3882 = vmatprep.mubr.f32.mxu0 %v3670
        %3883 = vmatmul.mubr.f32.gmra.mxu0 %v3669
        %v3884 = vpop.f32.mrf.mxu0
        %v3885 = vadd.f32 0.0, %v3884
        %v3886 = vpop.f32.mrf.mxu0
        %3887 = vmatprep.mubr.f32.mxu0 %v3672
        %3888 = vmatmul.mubr.f32.gmra.mxu0 %v3671
        %v3889 = vpop.f32.mrf.mxu0
        %v3890 = vadd.f32 0.0, %v3889
        %v3891 = vpop.f32.mrf.mxu0
        %3892 = vmatprep.mubr.f32.mxu0 %v3674
        %3893 = vmatmul.mubr.f32.gmra.mxu0 %v3673
        %v3894 = vpop.f32.mrf.mxu0
        %v3895 = vadd.f32 0.0, %v3894
        %v3896 = vpop.f32.mrf.mxu0
        %3897 = vmatprep.mubr.f32.mxu0 %v3676
        %3898 = vmatmul.mubr.f32.gmra.mxu0 %v3675
        %v3899 = vpop.f32.mrf.mxu0
        %v3900 = vadd.f32 0.0, %v3899
        %v3901 = vpop.f32.mrf.mxu0
        %3902 = vmatprep.mubr.f32.mxu0 %v3678
        %3903 = vmatmul.mubr.f32.gmra.mxu0 %v3677
        %v3904 = vpop.f32.mrf.mxu0
        %v3905 = vadd.f32 0.0, %v3904
        %v3906 = vpop.f32.mrf.mxu0
        %3907 = vmatprep.mubr.f32.mxu0 %v3680
        %3908 = vmatmul.mubr.f32.gmra.mxu0 %v3679
        %v3909 = vpop.f32.mrf.mxu0
        %v3910 = vadd.f32 0.0, %v3909
        %v3911 = vpop.f32.mrf.mxu0
        %3912 = vmatprep.mubr.f32.mxu0 %v3682
        %3913 = vmatmul.mubr.f32.gmra.mxu0 %v3681
        %v3914 = vpop.f32.mrf.mxu0
        %v3915 = vadd.f32 0.0, %v3914
        %v3916 = vpop.f32.mrf.mxu0
        %3917 = vmatprep.mubr.f32.mxu0 %v3684
        %3918 = vmatmul.mubr.f32.gmra.mxu0 %v3683
        %v3919 = vpop.f32.mrf.mxu0
        %v3920 = vadd.f32 0.0, %v3919
        %v3921 = vpop.f32.mrf.mxu0
        %3922 = vmatprep.mubr.f32.mxu0 %v3686
        %3923 = vmatmul.mubr.f32.gmra.mxu0 %v3685
        %v3924 = vpop.f32.mrf.mxu0
        %v3925 = vadd.f32 0.0, %v3924
        %v3926 = vpop.f32.mrf.mxu0
        %3927 = vdwg.mxu0
        %v3929 = vsel %vm989, %v3850, 0
        %v3932 = vsel %vm989, %v3855, 0
        %v3935 = vsel %vm989, %v3860, 0
        %v3938 = vsel %vm989, %v3865, 0
        %v3941 = vsel %vm989, %v3870, 0
        %v3944 = vsel %vm989, %v3875, 0
        %v3947 = vsel %vm989, %v3880, 0
        %v3950 = vsel %vm989, %v3885, 0
        %v3953 = vsel %vm989, %v3890, 0
        %v3956 = vsel %vm989, %v3895, 0
        %v3959 = vsel %vm989, %v3900, 0
        %v3962 = vsel %vm989, %v3905, 0
        %v3965 = vsel %vm989, %v3910, 0
        %v3968 = vsel %vm989, %v3915, 0
        %v3971 = vsel %vm989, %v3920, 0
        %v3974 = vsel %vm989, %v3925, 0
        %3976 = vmatprep.subr.mxu0 0.0
        %3977 = vmatpush1.msra.mxu0 0.0
        %3978 = vmatprep.subr.mxu0 0.0
        %3979 = vmatpush1.msra.mxu0 0.0
        %3980 = vmatprep.subr.mxu0 0.0
        %3981 = vmatpush1.msra.mxu0 0.0
        %3982 = vmatprep.subr.mxu0 0.0
        %3983 = vmatpush1.msra.mxu0 0.0
        %3984 = vmatprep.subr.mxu0 0.0
        %3985 = vmatpush1.msra.mxu0 0.0
        %3986 = vmatprep.subr.mxu0 0.0
        %3987 = vmatpush1.msra.mxu0 0.0
        %3988 = vmatprep.subr.mxu0 0.0
        %3989 = vmatpush1.msra.mxu0 0.0
        %3990 = vmatprep.subr.mxu0 0.0
        %3991 = vmatpush1.msra.mxu0 0.0
        %3992 = vmatprep.subr.mxu0 0.0
        %3993 = vmatpush1.msra.mxu0 0.0
        %3994 = vmatprep.subr.mxu0 0.0
        %3995 = vmatpush1.msra.mxu0 0.0
        %3996 = vmatprep.subr.mxu0 0.0
        %3997 = vmatpush1.msra.mxu0 0.0
        %3998 = vmatprep.subr.mxu0 0.0
        %3999 = vmatpush1.msra.mxu0 0.0
        %4000 = vmatprep.subr.mxu0 0.0
        %4001 = vmatpush1.msra.mxu0 0.0
        %4002 = vmatprep.subr.mxu0 0.0
        %4003 = vmatpush1.msra.mxu0 0.0
        %4004 = vmatprep.subr.mxu0 0.0
        %4005 = vmatpush1.msra.mxu0 0.0
        %4006 = vmatprep.subr.mxu0 0.0
        %4007 = vmatpush1.msra.mxu0 %v939
        %4008 = vmatprep.subr.mxu0 0.0
        %4009 = vmatpush2.msra.mxu0 0.0
        %4010 = vmatprep.subr.mxu0 0.0
        %4011 = vmatpush2.msra.mxu0 0.0
        %4012 = vmatprep.subr.mxu0 0.0
        %4013 = vmatpush2.msra.mxu0 0.0
        %4014 = vmatprep.subr.mxu0 0.0
        %4015 = vmatpush2.msra.mxu0 0.0
        %4016 = vmatprep.subr.mxu0 0.0
        %4017 = vmatpush2.msra.mxu0 0.0
        %4018 = vmatprep.subr.mxu0 0.0
        %4019 = vmatpush2.msra.mxu0 0.0
        %4020 = vmatprep.subr.mxu0 0.0
        %4021 = vmatpush2.msra.mxu0 0.0
        %4022 = vmatprep.subr.mxu0 0.0
        %4023 = vmatpush2.msra.mxu0 0.0
        %4024 = vmatprep.subr.mxu0 0.0
        %4025 = vmatpush2.msra.mxu0 0.0
        %4026 = vmatprep.subr.mxu0 0.0
        %4027 = vmatpush2.msra.mxu0 0.0
        %4028 = vmatprep.subr.mxu0 0.0
        %4029 = vmatpush2.msra.mxu0 0.0
        %4030 = vmatprep.subr.mxu0 0.0
        %4031 = vmatpush2.msra.mxu0 0.0
        %4032 = vmatprep.subr.mxu0 0.0
        %4033 = vmatpush2.msra.mxu0 0.0
        %4034 = vmatprep.subr.mxu0 0.0
        %4035 = vmatpush2.msra.mxu0 0.0
        %4036 = vmatprep.subr.mxu0 0.0
        %4037 = vmatpush2.msra.mxu0 0.0
        %4038 = vmatprep.subr.mxu0 0.0
        %4039 = vmatpush2.msra.mxu0 0.0
        %4040 = vmatprep.mubr.f32.mxu0 0.0
        %4041 = vmatmul.mubr.f32.gmra.mxu0 %v3929
        %v4042 = vpop.f32.mrf.mxu0
        %v4043 = vadd.f32 0.0, %v4042
        %v4044 = vpop.f32.mrf.mxu0
        %4045 = vmatprep.mubr.f32.mxu0 0.0
        %4046 = vmatmul.mubr.f32.gmra.mxu0 %v3932
        %v4047 = vpop.f32.mrf.mxu0
        %v4048 = vadd.f32 0.0, %v4047
        %v4049 = vpop.f32.mrf.mxu0
        %4050 = vmatprep.mubr.f32.mxu0 0.0
        %4051 = vmatmul.mubr.f32.gmra.mxu0 %v3935
        %v4052 = vpop.f32.mrf.mxu0
        %v4053 = vadd.f32 0.0, %v4052
        %v4054 = vpop.f32.mrf.mxu0
        %4055 = vmatprep.mubr.f32.mxu0 0.0
        %4056 = vmatmul.mubr.f32.gmra.mxu0 %v3938
        %v4057 = vpop.f32.mrf.mxu0
        %v4058 = vadd.f32 0.0, %v4057
        %v4059 = vpop.f32.mrf.mxu0
        %4060 = vmatprep.mubr.f32.mxu0 0.0
        %4061 = vmatmul.mubr.f32.gmra.mxu0 %v3941
        %v4062 = vpop.f32.mrf.mxu0
        %v4063 = vadd.f32 0.0, %v4062
        %v4064 = vpop.f32.mrf.mxu0
        %4065 = vmatprep.mubr.f32.mxu0 0.0
        %4066 = vmatmul.mubr.f32.gmra.mxu0 %v3944
        %v4067 = vpop.f32.mrf.mxu0
        %v4068 = vadd.f32 0.0, %v4067
        %v4069 = vpop.f32.mrf.mxu0
        %4070 = vmatprep.mubr.f32.mxu0 0.0
        %4071 = vmatmul.mubr.f32.gmra.mxu0 %v3947
        %v4072 = vpop.f32.mrf.mxu0
        %v4073 = vadd.f32 0.0, %v4072
        %v4074 = vpop.f32.mrf.mxu0
        %4075 = vmatprep.mubr.f32.mxu0 0.0
        %4076 = vmatmul.mubr.f32.gmra.mxu0 %v3950
        %v4077 = vpop.f32.mrf.mxu0
        %v4078 = vadd.f32 0.0, %v4077
        %v4079 = vpop.f32.mrf.mxu0
        %4080 = vmatprep.mubr.f32.mxu0 0.0
        %4081 = vmatmul.mubr.f32.gmra.mxu0 %v3953
        %v4082 = vpop.f32.mrf.mxu0
        %v4083 = vadd.f32 0.0, %v4082
        %v4084 = vpop.f32.mrf.mxu0
        %4085 = vmatprep.mubr.f32.mxu0 0.0
        %4086 = vmatmul.mubr.f32.gmra.mxu0 %v3956
        %v4087 = vpop.f32.mrf.mxu0
        %v4088 = vadd.f32 0.0, %v4087
        %v4089 = vpop.f32.mrf.mxu0
        %4090 = vmatprep.mubr.f32.mxu0 0.0
        %4091 = vmatmul.mubr.f32.gmra.mxu0 %v3959
        %v4092 = vpop.f32.mrf.mxu0
        %v4093 = vadd.f32 0.0, %v4092
        %v4094 = vpop.f32.mrf.mxu0
        %4095 = vmatprep.mubr.f32.mxu0 0.0
        %4096 = vmatmul.mubr.f32.gmra.mxu0 %v3962
        %v4097 = vpop.f32.mrf.mxu0
        %v4098 = vadd.f32 0.0, %v4097
        %v4099 = vpop.f32.mrf.mxu0
        %4100 = vmatprep.mubr.f32.mxu0 0.0
        %4101 = vmatmul.mubr.f32.gmra.mxu0 %v3965
        %v4102 = vpop.f32.mrf.mxu0
        %v4103 = vadd.f32 0.0, %v4102
        %v4104 = vpop.f32.mrf.mxu0
        %4105 = vmatprep.mubr.f32.mxu0 0.0
        %4106 = vmatmul.mubr.f32.gmra.mxu0 %v3968
        %v4107 = vpop.f32.mrf.mxu0
        %v4108 = vadd.f32 0.0, %v4107
        %v4109 = vpop.f32.mrf.mxu0
        %4110 = vmatprep.mubr.f32.mxu0 0.0
        %4111 = vmatmul.mubr.f32.gmra.mxu0 %v3971
        %v4112 = vpop.f32.mrf.mxu0
        %v4113 = vadd.f32 0.0, %v4112
        %v4114 = vpop.f32.mrf.mxu0
        %4115 = vmatprep.mubr.f32.mxu0 0.0
        %4116 = vmatmul.mubr.f32.gmra.mxu0 %v3974
        %v4117 = vpop.f32.mrf.mxu0
        %v4118 = vadd.f32 0.0, %v4117
        %v4119 = vpop.f32.mrf.mxu0
        %4120 = vdwg.mxu0
        %v4121 = vadd.f32 %v2967, %v4043
        %v4122 = vadd.f32 %v2972, %v4048
        %v4123 = vadd.f32 %v2977, %v4053
        %v4124 = vadd.f32 %v2982, %v4058
        %v4125 = vadd.f32 %v2987, %v4063
        %v4126 = vadd.f32 %v2992, %v4068
        %v4127 = vadd.f32 %v2997, %v4073
        %v4128 = vadd.f32 %v3002, %v4078
        %v4129 = vadd.f32 %v3007, %v4083
        %v4130 = vadd.f32 %v3012, %v4088
        %v4131 = vadd.f32 %v3017, %v4093
        %v4132 = vadd.f32 %v3022, %v4098
        %v4133 = vadd.f32 %v3027, %v4103
        %v4134 = vadd.f32 %v3032, %v4108
        %v4135 = vadd.f32 %v3037, %v4113
        %v4136 = vadd.f32 %v3042, %v4118
        %s4137 = scalar_lea.vmem %s288, 384 [#allocation2]
        %v4138 = vld [vmem:[%s4137] sm:$0xff]
        %v4139 = vld [vmem:[%s4137 + $0x8] sm:$0xff]
        %v4140 = vld [vmem:[%s4137 + $0x10] sm:$0xff]
        %v4141 = vld [vmem:[%s4137 + $0x18] sm:$0xff]
        %v4142 = vld [vmem:[%s4137 + $0x20] sm:$0xff]
        %v4143 = vld [vmem:[%s4137 + $0x28] sm:$0xff]
        %v4144 = vld [vmem:[%s4137 + $0x30] sm:$0xff]
        %v4145 = vld [vmem:[%s4137 + $0x38] sm:$0xff]
        %v4146 = vld [vmem:[%s4137 + $0x40] sm:$0xff]
        %v4147 = vld [vmem:[%s4137 + $0x48] sm:$0xff]
        %v4148 = vld [vmem:[%s4137 + $0x50] sm:$0xff]
        %v4149 = vld [vmem:[%s4137 + $0x58] sm:$0xff]
        %v4150 = vld [vmem:[%s4137 + $0x60] sm:$0xff]
        %v4151 = vld [vmem:[%s4137 + $0x68] sm:$0xff]
        %v4152 = vld [vmem:[%s4137 + $0x70] sm:$0xff]
        %v4153 = vld [vmem:[%s4137 + $0x78] sm:$0xff]
        %v4154 = vunpack.c.l.bf16 %v4138
        %v4155 = vunpack.c.h.bf16 %v4138
        %v4156 = vunpack.c.l.bf16 %v4139
        %v4157 = vunpack.c.h.bf16 %v4139
        %v4158 = vunpack.c.l.bf16 %v4140
        %v4159 = vunpack.c.h.bf16 %v4140
        %v4160 = vunpack.c.l.bf16 %v4141
        %v4161 = vunpack.c.h.bf16 %v4141
        %v4162 = vunpack.c.l.bf16 %v4142
        %v4163 = vunpack.c.h.bf16 %v4142
        %v4164 = vunpack.c.l.bf16 %v4143
        %v4165 = vunpack.c.h.bf16 %v4143
        %v4166 = vunpack.c.l.bf16 %v4144
        %v4167 = vunpack.c.h.bf16 %v4144
        %v4168 = vunpack.c.l.bf16 %v4145
        %v4169 = vunpack.c.h.bf16 %v4145
        %v4170 = vunpack.c.l.bf16 %v4146
        %v4171 = vunpack.c.h.bf16 %v4146
        %v4172 = vunpack.c.l.bf16 %v4147
        %v4173 = vunpack.c.h.bf16 %v4147
        %v4174 = vunpack.c.l.bf16 %v4148
        %v4175 = vunpack.c.h.bf16 %v4148
        %v4176 = vunpack.c.l.bf16 %v4149
        %v4177 = vunpack.c.h.bf16 %v4149
        %v4178 = vunpack.c.l.bf16 %v4150
        %v4179 = vunpack.c.h.bf16 %v4150
        %v4180 = vunpack.c.l.bf16 %v4151
        %v4181 = vunpack.c.h.bf16 %v4151
        %v4182 = vunpack.c.l.bf16 %v4152
        %v4183 = vunpack.c.h.bf16 %v4152
        %v4184 = vunpack.c.l.bf16 %v4153
        %v4185 = vunpack.c.h.bf16 %v4153
        %4186 = vrot.lane.b32.xlu0 %v519, 104
        %v4187 = vpop.permute.xlu0 %4186
        %4188 = vrot.lane.b32.xlu0 %v524, 104
        %v4189 = vpop.permute.xlu0 %4188
        %4190 = vrot.lane.b32.xlu0 %v529, 104
        %v4191 = vpop.permute.xlu0 %4190
        %4192 = vrot.lane.b32.xlu0 %v534, 104
        %v4193 = vpop.permute.xlu0 %4192
        %4194 = vrot.lane.b32.xlu0 %v539, 104
        %v4195 = vpop.permute.xlu0 %4194
        %4196 = vrot.lane.b32.xlu0 %v544, 104
        %v4197 = vpop.permute.xlu0 %4196
        %4198 = vrot.lane.b32.xlu0 %v549, 104
        %v4199 = vpop.permute.xlu0 %4198
        %4200 = vrot.lane.b32.xlu0 %v554, 104
        %v4201 = vpop.permute.xlu0 %4200
        %4202 = vrot.lane.b32.xlu0 %v559, 104
        %v4203 = vpop.permute.xlu0 %4202
        %4204 = vrot.lane.b32.xlu0 %v564, 104
        %v4205 = vpop.permute.xlu0 %4204
        %4206 = vrot.lane.b32.xlu0 %v569, 104
        %v4207 = vpop.permute.xlu0 %4206
        %4208 = vrot.lane.b32.xlu0 %v574, 104
        %v4209 = vpop.permute.xlu0 %4208
        %4210 = vrot.lane.b32.xlu0 %v579, 104
        %v4211 = vpop.permute.xlu0 %4210
        %4212 = vrot.lane.b32.xlu0 %v584, 104
        %v4213 = vpop.permute.xlu0 %4212
        %4214 = vrot.lane.b32.xlu0 %v589, 104
        %v4215 = vpop.permute.xlu0 %4214
        %4216 = vrot.lane.b32.xlu0 %v594, 104
        %v4217 = vpop.permute.xlu0 %4216
        %4218 = vrot.lane.b32.xlu0 %v779, 104
        %v4219 = vpop.permute.xlu0 %4218
        %4220 = vrot.lane.b32.xlu0 %v784, 104
        %v4221 = vpop.permute.xlu0 %4220
        %4222 = vrot.lane.b32.xlu0 %v789, 104
        %v4223 = vpop.permute.xlu0 %4222
        %4224 = vrot.lane.b32.xlu0 %v794, 104
        %v4225 = vpop.permute.xlu0 %4224
        %4226 = vrot.lane.b32.xlu0 %v799, 104
        %v4227 = vpop.permute.xlu0 %4226
        %4228 = vrot.lane.b32.xlu0 %v804, 104
        %v4229 = vpop.permute.xlu0 %4228
        %4230 = vrot.lane.b32.xlu0 %v809, 104
        %v4231 = vpop.permute.xlu0 %4230
        %4232 = vrot.lane.b32.xlu0 %v814, 104
        %v4233 = vpop.permute.xlu0 %4232
        %4234 = vrot.lane.b32.xlu0 %v819, 104
        %v4235 = vpop.permute.xlu0 %4234
        %4236 = vrot.lane.b32.xlu0 %v824, 104
        %v4237 = vpop.permute.xlu0 %4236
        %4238 = vrot.lane.b32.xlu0 %v829, 104
        %v4239 = vpop.permute.xlu0 %4238
        %4240 = vrot.lane.b32.xlu0 %v834, 104
        %v4241 = vpop.permute.xlu0 %4240
        %4242 = vrot.lane.b32.xlu0 %v839, 104
        %v4243 = vpop.permute.xlu0 %4242
        %4244 = vrot.lane.b32.xlu0 %v844, 104
        %v4245 = vpop.permute.xlu0 %4244
        %4246 = vrot.lane.b32.xlu0 %v849, 104
        %v4247 = vpop.permute.xlu0 %4246
        %4248 = vrot.lane.b32.xlu0 %v854, 104
        %v4249 = vpop.permute.xlu0 %4248
        %4250 = vrot.lane.b32.xlu0 %v859, 104
        %v4251 = vpop.permute.xlu0 %4250
        %4252 = vrot.lane.b32.xlu0 %v864, 104
        %v4253 = vpop.permute.xlu0 %4252
        %4254 = vrot.lane.b32.xlu0 %v869, 104
        %v4255 = vpop.permute.xlu0 %4254
        %4256 = vrot.lane.b32.xlu0 %v874, 104
        %v4257 = vpop.permute.xlu0 %4256
        %4258 = vrot.lane.b32.xlu0 %v879, 104
        %v4259 = vpop.permute.xlu0 %4258
        %4260 = vrot.lane.b32.xlu0 %v884, 104
        %v4261 = vpop.permute.xlu0 %4260
        %4262 = vrot.lane.b32.xlu0 %v889, 104
        %v4263 = vpop.permute.xlu0 %4262
        %4264 = vrot.lane.b32.xlu0 %v894, 104
        %v4265 = vpop.permute.xlu0 %4264
        %4266 = vrot.lane.b32.xlu0 %v899, 104
        %v4267 = vpop.permute.xlu0 %4266
        %4268 = vrot.lane.b32.xlu0 %v904, 104
        %v4269 = vpop.permute.xlu0 %4268
        %4270 = vrot.lane.b32.xlu0 %v909, 104
        %v4271 = vpop.permute.xlu0 %4270
        %4272 = vrot.lane.b32.xlu0 %v914, 104
        %v4273 = vpop.permute.xlu0 %4272
        %4274 = vrot.lane.b32.xlu0 %v919, 104
        %v4275 = vpop.permute.xlu0 %4274
        %4276 = vrot.lane.b32.xlu0 %v924, 104
        %v4277 = vpop.permute.xlu0 %4276
        %4278 = vrot.lane.b32.xlu0 %v929, 104
        %v4279 = vpop.permute.xlu0 %4278
        %4280 = vrot.lane.b32.xlu0 %v934, 104
        %v4281 = vpop.permute.xlu0 %4280
        %v4282 = vsel %vm989, %v4187, 0
        %v4284 = vsel %vm989, %v4189, 0
        %v4286 = vsel %vm989, %v4191, 0
        %v4288 = vsel %vm989, %v4193, 0
        %v4290 = vsel %vm989, %v4195, 0
        %v4292 = vsel %vm989, %v4197, 0
        %v4294 = vsel %vm989, %v4199, 0
        %v4296 = vsel %vm989, %v4201, 0
        %v4298 = vsel %vm989, %v4203, 0
        %v4300 = vsel %vm989, %v4205, 0
        %v4302 = vsel %vm989, %v4207, 0
        %v4304 = vsel %vm989, %v4209, 0
        %v4306 = vsel %vm989, %v4211, 0
        %v4308 = vsel %vm989, %v4213, 0
        %v4310 = vsel %vm989, %v4215, 0
        %v4312 = vsel %vm989, %v4217, 0
        %v4314 = vsel %vm989, %v4219, 0
        %v4316 = vsel %vm989, %v4221, 0
        %v4318 = vsel %vm989, %v4223, 0
        %v4320 = vsel %vm989, %v4225, 0
        %v4322 = vsel %vm989, %v4227, 0
        %v4324 = vsel %vm989, %v4229, 0
        %v4326 = vsel %vm989, %v4231, 0
        %v4328 = vsel %vm989, %v4233, 0
        %v4330 = vsel %vm989, %v4235, 0
        %v4332 = vsel %vm989, %v4237, 0
        %v4334 = vsel %vm989, %v4239, 0
        %v4336 = vsel %vm989, %v4241, 0
        %v4338 = vsel %vm989, %v4243, 0
        %v4340 = vsel %vm989, %v4245, 0
        %v4342 = vsel %vm989, %v4247, 0
        %v4344 = vsel %vm989, %v4249, 0
        %v4346 = vsel %vm989, %v4251, 0
        %v4348 = vsel %vm989, %v4253, 0
        %v4350 = vsel %vm989, %v4255, 0
        %v4352 = vsel %vm989, %v4257, 0
        %v4354 = vsel %vm989, %v4259, 0
        %v4356 = vsel %vm989, %v4261, 0
        %v4358 = vsel %vm989, %v4263, 0
        %v4360 = vsel %vm989, %v4265, 0
        %v4362 = vsel %vm989, %v4267, 0
        %v4364 = vsel %vm989, %v4269, 0
        %v4366 = vsel %vm989, %v4271, 0
        %v4368 = vsel %vm989, %v4273, 0
        %v4370 = vsel %vm989, %v4275, 0
        %v4372 = vsel %vm989, %v4277, 0
        %v4374 = vsel %vm989, %v4279, 0
        %v4376 = vsel %vm989, %v4281, 0
        %4378 = vmatprep.subr.mxu0 0.0
        %4379 = vmatpush1.xpose.msra.mxu0 %v4344
        %4380 = vmatprep.subr.mxu0 0.0
        %4381 = vmatpush1.xpose.msra.mxu0 %v4342
        %4382 = vmatprep.subr.mxu0 0.0
        %4383 = vmatpush1.xpose.msra.mxu0 %v4340
        %4384 = vmatprep.subr.mxu0 0.0
        %4385 = vmatpush1.xpose.msra.mxu0 %v4338
        %4386 = vmatprep.subr.mxu0 0.0
        %4387 = vmatpush1.xpose.msra.mxu0 %v4336
        %4388 = vmatprep.subr.mxu0 0.0
        %4389 = vmatpush1.xpose.msra.mxu0 %v4334
        %4390 = vmatprep.subr.mxu0 0.0
        %4391 = vmatpush1.xpose.msra.mxu0 %v4332
        %4392 = vmatprep.subr.mxu0 0.0
        %4393 = vmatpush1.xpose.msra.mxu0 %v4330
        %4394 = vmatprep.subr.mxu0 0.0
        %4395 = vmatpush1.xpose.msra.mxu0 %v4328
        %4396 = vmatprep.subr.mxu0 0.0
        %4397 = vmatpush1.xpose.msra.mxu0 %v4326
        %4398 = vmatprep.subr.mxu0 0.0
        %4399 = vmatpush1.xpose.msra.mxu0 %v4324
        %4400 = vmatprep.subr.mxu0 0.0
        %4401 = vmatpush1.xpose.msra.mxu0 %v4322
        %4402 = vmatprep.subr.mxu0 0.0
        %4403 = vmatpush1.xpose.msra.mxu0 %v4320
        %4404 = vmatprep.subr.mxu0 0.0
        %4405 = vmatpush1.xpose.msra.mxu0 %v4318
        %4406 = vmatprep.subr.mxu0 0.0
        %4407 = vmatpush1.xpose.msra.mxu0 %v4316
        %4408 = vmatprep.subr.mxu0 0.0
        %4409 = vmatpush1.xpose.msra.mxu0 %v4314
        %4410 = vmatprep.subr.mxu0 0.0
        %4411 = vmatpush2.xpose.msra.mxu0 %v4376
        %4412 = vmatprep.subr.mxu0 0.0
        %4413 = vmatpush2.xpose.msra.mxu0 %v4374
        %4414 = vmatprep.subr.mxu0 0.0
        %4415 = vmatpush2.xpose.msra.mxu0 %v4372
        %4416 = vmatprep.subr.mxu0 0.0
        %4417 = vmatpush2.xpose.msra.mxu0 %v4370
        %4418 = vmatprep.subr.mxu0 0.0
        %4419 = vmatpush2.xpose.msra.mxu0 %v4368
        %4420 = vmatprep.subr.mxu0 0.0
        %4421 = vmatpush2.xpose.msra.mxu0 %v4366
        %4422 = vmatprep.subr.mxu0 0.0
        %4423 = vmatpush2.xpose.msra.mxu0 %v4364
        %4424 = vmatprep.subr.mxu0 0.0
        %4425 = vmatpush2.xpose.msra.mxu0 %v4362
        %4426 = vmatprep.subr.mxu0 0.0
        %4427 = vmatpush2.xpose.msra.mxu0 %v4360
        %4428 = vmatprep.subr.mxu0 0.0
        %4429 = vmatpush2.xpose.msra.mxu0 %v4358
        %4430 = vmatprep.subr.mxu0 0.0
        %4431 = vmatpush2.xpose.msra.mxu0 %v4356
        %4432 = vmatprep.subr.mxu0 0.0
        %4433 = vmatpush2.xpose.msra.mxu0 %v4354
        %4434 = vmatprep.subr.mxu0 0.0
        %4435 = vmatpush2.xpose.msra.mxu0 %v4352
        %4436 = vmatprep.subr.mxu0 0.0
        %4437 = vmatpush2.xpose.msra.mxu0 %v4350
        %4438 = vmatprep.subr.mxu0 0.0
        %4439 = vmatpush2.xpose.msra.mxu0 %v4348
        %4440 = vmatprep.subr.mxu0 0.0
        %4441 = vmatpush2.xpose.msra.mxu0 %v4346
        %4442 = vmatprep.mubr.f32.mxu0 0.0
        %4443 = vmatmul.mubr.f32.gmra.mxu0 %v4282
        %v4444 = vpop.f32.mrf.mxu0
        %v4445 = vadd.f32 %v4154, %v4444
        %v4446 = vpop.f32.mrf.mxu0
        %v4447 = vadd.f32 %v4155, %v4446
        %4448 = vmatprep.mubr.f32.mxu0 0.0
        %4449 = vmatmul.mubr.f32.gmra.mxu0 %v4284
        %v4450 = vpop.f32.mrf.mxu0
        %v4451 = vadd.f32 %v4156, %v4450
        %v4452 = vpop.f32.mrf.mxu0
        %v4453 = vadd.f32 %v4157, %v4452
        %4454 = vmatprep.mubr.f32.mxu0 0.0
        %4455 = vmatmul.mubr.f32.gmra.mxu0 %v4286
        %v4456 = vpop.f32.mrf.mxu0
        %v4457 = vadd.f32 %v4158, %v4456
        %v4458 = vpop.f32.mrf.mxu0
        %v4459 = vadd.f32 %v4159, %v4458
        %4460 = vmatprep.mubr.f32.mxu0 0.0
        %4461 = vmatmul.mubr.f32.gmra.mxu0 %v4288
        %v4462 = vpop.f32.mrf.mxu0
        %v4463 = vadd.f32 %v4160, %v4462
        %v4464 = vpop.f32.mrf.mxu0
        %v4465 = vadd.f32 %v4161, %v4464
        %4466 = vmatprep.mubr.f32.mxu0 0.0
        %4467 = vmatmul.mubr.f32.gmra.mxu0 %v4290
        %v4468 = vpop.f32.mrf.mxu0
        %v4469 = vadd.f32 %v4162, %v4468
        %v4470 = vpop.f32.mrf.mxu0
        %v4471 = vadd.f32 %v4163, %v4470
        %4472 = vmatprep.mubr.f32.mxu0 0.0
        %4473 = vmatmul.mubr.f32.gmra.mxu0 %v4292
        %v4474 = vpop.f32.mrf.mxu0
        %v4475 = vadd.f32 %v4164, %v4474
        %v4476 = vpop.f32.mrf.mxu0
        %v4477 = vadd.f32 %v4165, %v4476
        %4478 = vmatprep.mubr.f32.mxu0 0.0
        %4479 = vmatmul.mubr.f32.gmra.mxu0 %v4294
        %v4480 = vpop.f32.mrf.mxu0
        %v4481 = vadd.f32 %v4166, %v4480
        %v4482 = vpop.f32.mrf.mxu0
        %v4483 = vadd.f32 %v4167, %v4482
        %4484 = vmatprep.mubr.f32.mxu0 0.0
        %4485 = vmatmul.mubr.f32.gmra.mxu0 %v4296
        %v4486 = vpop.f32.mrf.mxu0
        %v4487 = vadd.f32 %v4168, %v4486
        %v4488 = vpop.f32.mrf.mxu0
        %v4489 = vadd.f32 %v4169, %v4488
        %4490 = vmatprep.mubr.f32.mxu0 0.0
        %4491 = vmatmul.mubr.f32.gmra.mxu0 %v4298
        %v4492 = vpop.f32.mrf.mxu0
        %v4493 = vadd.f32 %v4170, %v4492
        %v4494 = vpop.f32.mrf.mxu0
        %v4495 = vadd.f32 %v4171, %v4494
        %4496 = vmatprep.mubr.f32.mxu0 0.0
        %4497 = vmatmul.mubr.f32.gmra.mxu0 %v4300
        %v4498 = vpop.f32.mrf.mxu0
        %v4499 = vadd.f32 %v4172, %v4498
        %v4500 = vpop.f32.mrf.mxu0
        %v4501 = vadd.f32 %v4173, %v4500
        %4502 = vmatprep.mubr.f32.mxu0 0.0
        %4503 = vmatmul.mubr.f32.gmra.mxu0 %v4302
        %v4504 = vpop.f32.mrf.mxu0
        %v4505 = vadd.f32 %v4174, %v4504
        %v4506 = vpop.f32.mrf.mxu0
        %v4507 = vadd.f32 %v4175, %v4506
        %4508 = vmatprep.mubr.f32.mxu0 0.0
        %4509 = vmatmul.mubr.f32.gmra.mxu0 %v4304
        %v4510 = vpop.f32.mrf.mxu0
        %v4511 = vadd.f32 %v4176, %v4510
        %v4512 = vpop.f32.mrf.mxu0
        %v4513 = vadd.f32 %v4177, %v4512
        %4514 = vmatprep.mubr.f32.mxu0 0.0
        %4515 = vmatmul.mubr.f32.gmra.mxu0 %v4306
        %v4516 = vpop.f32.mrf.mxu0
        %v4517 = vadd.f32 %v4178, %v4516
        %v4518 = vpop.f32.mrf.mxu0
        %v4519 = vadd.f32 %v4179, %v4518
        %4520 = vmatprep.mubr.f32.mxu0 0.0
        %4521 = vmatmul.mubr.f32.gmra.mxu0 %v4308
        %v4522 = vpop.f32.mrf.mxu0
        %v4523 = vadd.f32 %v4180, %v4522
        %v4524 = vpop.f32.mrf.mxu0
        %v4525 = vadd.f32 %v4181, %v4524
        %4526 = vmatprep.mubr.f32.mxu0 0.0
        %4527 = vmatmul.mubr.f32.gmra.mxu0 %v4310
        %v4528 = vpop.f32.mrf.mxu0
        %v4529 = vadd.f32 %v4182, %v4528
        %v4530 = vpop.f32.mrf.mxu0
        %v4531 = vadd.f32 %v4183, %v4530
        %4532 = vmatprep.mubr.f32.mxu0 0.0
        %4533 = vmatmul.mubr.f32.gmra.mxu0 %v4312
        %v4534 = vpop.f32.mrf.mxu0
        %v4535 = vadd.f32 %v4184, %v4534
        %v4536 = vpop.f32.mrf.mxu0
        %v4537 = vadd.f32 %v4185, %v4536
        %4538 = vdwg.mxu0
        %v4539 = vmax.f32 %v4445, %v4447
        %4540 = vmax.xlane.f32.xlu0 %v4539
        %v4541 = vpop.xlane.xlu0 %4540
        %v4542 = vmax.f32 %v4451, %v4453
        %4543 = vmax.xlane.f32.xlu0 %v4542
        %v4544 = vpop.xlane.xlu0 %4543
        %v4545 = vmax.f32 %v4457, %v4459
        %4546 = vmax.xlane.f32.xlu0 %v4545
        %v4547 = vpop.xlane.xlu0 %4546
        %v4548 = vmax.f32 %v4463, %v4465
        %4549 = vmax.xlane.f32.xlu0 %v4548
        %v4550 = vpop.xlane.xlu0 %4549
        %v4551 = vmax.f32 %v4469, %v4471
        %4552 = vmax.xlane.f32.xlu0 %v4551
        %v4553 = vpop.xlane.xlu0 %4552
        %v4554 = vmax.f32 %v4475, %v4477
        %4555 = vmax.xlane.f32.xlu0 %v4554
        %v4556 = vpop.xlane.xlu0 %4555
        %v4557 = vmax.f32 %v4481, %v4483
        %4558 = vmax.xlane.f32.xlu0 %v4557
        %v4559 = vpop.xlane.xlu0 %4558
        %v4560 = vmax.f32 %v4487, %v4489
        %4561 = vmax.xlane.f32.xlu0 %v4560
        %v4562 = vpop.xlane.xlu0 %4561
        %v4563 = vmax.f32 %v4493, %v4495
        %4564 = vmax.xlane.f32.xlu0 %v4563
        %v4565 = vpop.xlane.xlu0 %4564
        %v4566 = vmax.f32 %v4499, %v4501
        %4567 = vmax.xlane.f32.xlu0 %v4566
        %v4568 = vpop.xlane.xlu0 %4567
        %v4569 = vmax.f32 %v4505, %v4507
        %4570 = vmax.xlane.f32.xlu0 %v4569
        %v4571 = vpop.xlane.xlu0 %4570
        %v4572 = vmax.f32 %v4511, %v4513
        %4573 = vmax.xlane.f32.xlu0 %v4572
        %v4574 = vpop.xlane.xlu0 %4573
        %v4575 = vmax.f32 %v4517, %v4519
        %4576 = vmax.xlane.f32.xlu0 %v4575
        %v4577 = vpop.xlane.xlu0 %4576
        %v4578 = vmax.f32 %v4523, %v4525
        %4579 = vmax.xlane.f32.xlu0 %v4578
        %v4580 = vpop.xlane.xlu0 %4579
        %v4581 = vmax.f32 %v4529, %v4531
        %4582 = vmax.xlane.f32.xlu0 %v4581
        %v4583 = vpop.xlane.xlu0 %4582
        %v4584 = vmax.f32 %v4535, %v4537
        %4585 = vmax.xlane.f32.xlu0 %v4584
        %v4586 = vpop.xlane.xlu0 %4585
        %v4587 = vsub.f32 %v4445, %v4541
        %v4588 = vsub.f32 %v4447, %v4541
        %v4589 = vsub.f32 %v4451, %v4544
        %v4590 = vsub.f32 %v4453, %v4544
        %v4591 = vsub.f32 %v4457, %v4547
        %v4592 = vsub.f32 %v4459, %v4547
        %v4593 = vsub.f32 %v4463, %v4550
        %v4594 = vsub.f32 %v4465, %v4550
        %v4595 = vsub.f32 %v4469, %v4553
        %v4596 = vsub.f32 %v4471, %v4553
        %v4597 = vsub.f32 %v4475, %v4556
        %v4598 = vsub.f32 %v4477, %v4556
        %v4599 = vsub.f32 %v4481, %v4559
        %v4600 = vsub.f32 %v4483, %v4559
        %v4601 = vsub.f32 %v4487, %v4562
        %v4602 = vsub.f32 %v4489, %v4562
        %v4603 = vsub.f32 %v4493, %v4565
        %v4604 = vsub.f32 %v4495, %v4565
        %v4605 = vsub.f32 %v4499, %v4568
        %v4606 = vsub.f32 %v4501, %v4568
        %v4607 = vsub.f32 %v4505, %v4571
        %v4608 = vsub.f32 %v4507, %v4571
        %v4609 = vsub.f32 %v4511, %v4574
        %v4610 = vsub.f32 %v4513, %v4574
        %v4611 = vsub.f32 %v4517, %v4577
        %v4612 = vsub.f32 %v4519, %v4577
        %v4613 = vsub.f32 %v4523, %v4580
        %v4614 = vsub.f32 %v4525, %v4580
        %v4615 = vsub.f32 %v4529, %v4583
        %v4616 = vsub.f32 %v4531, %v4583
        %v4617 = vsub.f32 %v4535, %v4586
        %v4618 = vsub.f32 %v4537, %v4586
        %v4619 = vmul.f32 %v4587, 1.442695
        %v4620 = vpow.pop %v4619
        %v4621 = vmul.f32 %v4588, 1.442695
        %v4622 = vpow.pop %v4621
        %v4623 = vmul.f32 %v4589, 1.442695
        %v4624 = vpow.pop %v4623
        %v4625 = vmul.f32 %v4590, 1.442695
        %v4626 = vpow.pop %v4625
        %v4627 = vmul.f32 %v4591, 1.442695
        %v4628 = vpow.pop %v4627
        %v4629 = vmul.f32 %v4592, 1.442695
        %v4630 = vpow.pop %v4629
        %v4631 = vmul.f32 %v4593, 1.442695
        %v4632 = vpow.pop %v4631
        %v4633 = vmul.f32 %v4594, 1.442695
        %v4634 = vpow.pop %v4633
        %v4635 = vmul.f32 %v4595, 1.442695
        %v4636 = vpow.pop %v4635
        %v4637 = vmul.f32 %v4596, 1.442695
        %v4638 = vpow.pop %v4637
        %v4639 = vmul.f32 %v4597, 1.442695
        %v4640 = vpow.pop %v4639
        %v4641 = vmul.f32 %v4598, 1.442695
        %v4642 = vpow.pop %v4641
        %v4643 = vmul.f32 %v4599, 1.442695
        %v4644 = vpow.pop %v4643
        %v4645 = vmul.f32 %v4600, 1.442695
        %v4646 = vpow.pop %v4645
        %v4647 = vmul.f32 %v4601, 1.442695
        %v4648 = vpow.pop %v4647
        %v4649 = vmul.f32 %v4602, 1.442695
        %v4650 = vpow.pop %v4649
        %v4651 = vmul.f32 %v4603, 1.442695
        %v4652 = vpow.pop %v4651
        %v4653 = vmul.f32 %v4604, 1.442695
        %v4654 = vpow.pop %v4653
        %v4655 = vmul.f32 %v4605, 1.442695
        %v4656 = vpow.pop %v4655
        %v4657 = vmul.f32 %v4606, 1.442695
        %v4658 = vpow.pop %v4657
        %v4659 = vmul.f32 %v4607, 1.442695
        %v4660 = vpow.pop %v4659
        %v4661 = vmul.f32 %v4608, 1.442695
        %v4662 = vpow.pop %v4661
        %v4663 = vmul.f32 %v4609, 1.442695
        %v4664 = vpow.pop %v4663
        %v4665 = vmul.f32 %v4610, 1.442695
        %v4666 = vpow.pop %v4665
        %v4667 = vmul.f32 %v4611, 1.442695
        %v4668 = vpow.pop %v4667
        %v4669 = vmul.f32 %v4612, 1.442695
        %v4670 = vpow.pop %v4669
        %v4671 = vmul.f32 %v4613, 1.442695
        %v4672 = vpow.pop %v4671
        %v4673 = vmul.f32 %v4614, 1.442695
        %v4674 = vpow.pop %v4673
        %v4675 = vmul.f32 %v4615, 1.442695
        %v4676 = vpow.pop %v4675
        %v4677 = vmul.f32 %v4616, 1.442695
        %v4678 = vpow.pop %v4677
        %v4679 = vmul.f32 %v4617, 1.442695
        %v4680 = vpow.pop %v4679
        %v4681 = vmul.f32 %v4618, 1.442695
        %v4682 = vpow.pop %v4681
        %v4683 = vadd.f32 %v4620, %v4622
        %4684 = vadd.xlane.f32.xlu0 %v4683
        %v4685 = vpop.xlane.xlu0 %4684
        %v4686 = vadd.f32 %v4624, %v4626
        %4687 = vadd.xlane.f32.xlu0 %v4686
        %v4688 = vpop.xlane.xlu0 %4687
        %v4689 = vadd.f32 %v4628, %v4630
        %4690 = vadd.xlane.f32.xlu0 %v4689
        %v4691 = vpop.xlane.xlu0 %4690
        %v4692 = vadd.f32 %v4632, %v4634
        %4693 = vadd.xlane.f32.xlu0 %v4692
        %v4694 = vpop.xlane.xlu0 %4693
        %v4695 = vadd.f32 %v4636, %v4638
        %4696 = vadd.xlane.f32.xlu0 %v4695
        %v4697 = vpop.xlane.xlu0 %4696
        %v4698 = vadd.f32 %v4640, %v4642
        %4699 = vadd.xlane.f32.xlu0 %v4698
        %v4700 = vpop.xlane.xlu0 %4699
        %v4701 = vadd.f32 %v4644, %v4646
        %4702 = vadd.xlane.f32.xlu0 %v4701
        %v4703 = vpop.xlane.xlu0 %4702
        %v4704 = vadd.f32 %v4648, %v4650
        %4705 = vadd.xlane.f32.xlu0 %v4704
        %v4706 = vpop.xlane.xlu0 %4705
        %v4707 = vadd.f32 %v4652, %v4654
        %4708 = vadd.xlane.f32.xlu0 %v4707
        %v4709 = vpop.xlane.xlu0 %4708
        %v4710 = vadd.f32 %v4656, %v4658
        %4711 = vadd.xlane.f32.xlu0 %v4710
        %v4712 = vpop.xlane.xlu0 %4711
        %v4713 = vadd.f32 %v4660, %v4662
        %4714 = vadd.xlane.f32.xlu0 %v4713
        %v4715 = vpop.xlane.xlu0 %4714
        %v4716 = vadd.f32 %v4664, %v4666
        %4717 = vadd.xlane.f32.xlu0 %v4716
        %v4718 = vpop.xlane.xlu0 %4717
        %v4719 = vadd.f32 %v4668, %v4670
        %4720 = vadd.xlane.f32.xlu0 %v4719
        %v4721 = vpop.xlane.xlu0 %4720
        %v4722 = vadd.f32 %v4672, %v4674
        %4723 = vadd.xlane.f32.xlu0 %v4722
        %v4724 = vpop.xlane.xlu0 %4723
        %v4725 = vadd.f32 %v4676, %v4678
        %4726 = vadd.xlane.f32.xlu0 %v4725
        %v4727 = vpop.xlane.xlu0 %4726
        %v4728 = vadd.f32 %v4680, %v4682
        %4729 = vadd.xlane.f32.xlu0 %v4728
        %v4730 = vpop.xlane.xlu0 %4729
        %v4731 = vrcp.pop %v4685
        %v4732 = vrcp.pop %v4688
        %v4733 = vrcp.pop %v4691
        %v4734 = vrcp.pop %v4694
        %v4735 = vrcp.pop %v4697
        %v4736 = vrcp.pop %v4700
        %v4737 = vrcp.pop %v4703
        %v4738 = vrcp.pop %v4706
        %v4739 = vrcp.pop %v4709
        %v4740 = vrcp.pop %v4712
        %v4741 = vrcp.pop %v4715
        %v4742 = vrcp.pop %v4718
        %v4743 = vrcp.pop %v4721
        %v4744 = vrcp.pop %v4724
        %v4745 = vrcp.pop %v4727
        %v4746 = vrcp.pop %v4730
        %v4747 = vmul.f32 %v4620, %v4731
        %v4748 = vmul.f32 %v4622, %v4731
        %v4749 = vmul.f32 %v4624, %v4732
        %v4750 = vmul.f32 %v4626, %v4732
        %v4751 = vmul.f32 %v4628, %v4733
        %v4752 = vmul.f32 %v4630, %v4733
        %v4753 = vmul.f32 %v4632, %v4734
        %v4754 = vmul.f32 %v4634, %v4734
        %v4755 = vmul.f32 %v4636, %v4735
        %v4756 = vmul.f32 %v4638, %v4735
        %v4757 = vmul.f32 %v4640, %v4736
        %v4758 = vmul.f32 %v4642, %v4736
        %v4759 = vmul.f32 %v4644, %v4737
        %v4760 = vmul.f32 %v4646, %v4737
        %v4761 = vmul.f32 %v4648, %v4738
        %v4762 = vmul.f32 %v4650, %v4738
        %v4763 = vmul.f32 %v4652, %v4739
        %v4764 = vmul.f32 %v4654, %v4739
        %v4765 = vmul.f32 %v4656, %v4740
        %v4766 = vmul.f32 %v4658, %v4740
        %v4767 = vmul.f32 %v4660, %v4741
        %v4768 = vmul.f32 %v4662, %v4741
        %v4769 = vmul.f32 %v4664, %v4742
        %v4770 = vmul.f32 %v4666, %v4742
        %v4771 = vmul.f32 %v4668, %v4743
        %v4772 = vmul.f32 %v4670, %v4743
        %v4773 = vmul.f32 %v4672, %v4744
        %v4774 = vmul.f32 %v4674, %v4744
        %v4775 = vmul.f32 %v4676, %v4745
        %v4776 = vmul.f32 %v4678, %v4745
        %v4777 = vmul.f32 %v4680, %v4746
        %v4778 = vmul.f32 %v4682, %v4746
        %4779 = vrot.lane.b32.xlu0 %v779, 72
        %v4780 = vpop.permute.xlu0 %4779
        %4781 = vrot.lane.b32.xlu0 %v784, 72
        %v4782 = vpop.permute.xlu0 %4781
        %4783 = vrot.lane.b32.xlu0 %v789, 72
        %v4784 = vpop.permute.xlu0 %4783
        %4785 = vrot.lane.b32.xlu0 %v794, 72
        %v4786 = vpop.permute.xlu0 %4785
        %4787 = vrot.lane.b32.xlu0 %v799, 72
        %v4788 = vpop.permute.xlu0 %4787
        %4789 = vrot.lane.b32.xlu0 %v804, 72
        %v4790 = vpop.permute.xlu0 %4789
        %4791 = vrot.lane.b32.xlu0 %v809, 72
        %v4792 = vpop.permute.xlu0 %4791
        %4793 = vrot.lane.b32.xlu0 %v814, 72
        %v4794 = vpop.permute.xlu0 %4793
        %4795 = vrot.lane.b32.xlu0 %v819, 72
        %v4796 = vpop.permute.xlu0 %4795
        %4797 = vrot.lane.b32.xlu0 %v824, 72
        %v4798 = vpop.permute.xlu0 %4797
        %4799 = vrot.lane.b32.xlu0 %v829, 72
        %v4800 = vpop.permute.xlu0 %4799
        %4801 = vrot.lane.b32.xlu0 %v834, 72
        %v4802 = vpop.permute.xlu0 %4801
        %4803 = vrot.lane.b32.xlu0 %v839, 72
        %v4804 = vpop.permute.xlu0 %4803
        %4805 = vrot.lane.b32.xlu0 %v844, 72
        %v4806 = vpop.permute.xlu0 %4805
        %4807 = vrot.lane.b32.xlu0 %v849, 72
        %v4808 = vpop.permute.xlu0 %4807
        %4809 = vrot.lane.b32.xlu0 %v854, 72
        %v4810 = vpop.permute.xlu0 %4809
        %4811 = vrot.lane.b32.xlu0 %v859, 72
        %v4812 = vpop.permute.xlu0 %4811
        %4813 = vrot.lane.b32.xlu0 %v864, 72
        %v4814 = vpop.permute.xlu0 %4813
        %4815 = vrot.lane.b32.xlu0 %v869, 72
        %v4816 = vpop.permute.xlu0 %4815
        %4817 = vrot.lane.b32.xlu0 %v874, 72
        %v4818 = vpop.permute.xlu0 %4817
        %4819 = vrot.lane.b32.xlu0 %v879, 72
        %v4820 = vpop.permute.xlu0 %4819
        %4821 = vrot.lane.b32.xlu0 %v884, 72
        %v4822 = vpop.permute.xlu0 %4821
        %4823 = vrot.lane.b32.xlu0 %v889, 72
        %v4824 = vpop.permute.xlu0 %4823
        %4825 = vrot.lane.b32.xlu0 %v894, 72
        %v4826 = vpop.permute.xlu0 %4825
        %4827 = vrot.lane.b32.xlu0 %v899, 72
        %v4828 = vpop.permute.xlu0 %4827
        %4829 = vrot.lane.b32.xlu0 %v904, 72
        %v4830 = vpop.permute.xlu0 %4829
        %4831 = vrot.lane.b32.xlu0 %v909, 72
        %v4832 = vpop.permute.xlu0 %4831
        %4833 = vrot.lane.b32.xlu0 %v914, 72
        %v4834 = vpop.permute.xlu0 %4833
        %4835 = vrot.lane.b32.xlu0 %v919, 72
        %v4836 = vpop.permute.xlu0 %4835
        %4837 = vrot.lane.b32.xlu0 %v924, 72
        %v4838 = vpop.permute.xlu0 %4837
        %4839 = vrot.lane.b32.xlu0 %v929, 72
        %v4840 = vpop.permute.xlu0 %4839
        %4841 = vrot.lane.b32.xlu0 %v934, 72
        %v4842 = vpop.permute.xlu0 %4841
        %4875 = vmatprep.subr.mxu0 0.0
        %4876 = vmatpush1.msra.mxu0 %v4810
        %4877 = vmatprep.subr.mxu0 0.0
        %4878 = vmatpush1.msra.mxu0 %v4808
        %4879 = vmatprep.subr.mxu0 0.0
        %4880 = vmatpush1.msra.mxu0 %v4806
        %4881 = vmatprep.subr.mxu0 0.0
        %4882 = vmatpush1.msra.mxu0 %v4804
        %4883 = vmatprep.subr.mxu0 0.0
        %4884 = vmatpush1.msra.mxu0 %v4802
        %4885 = vmatprep.subr.mxu0 0.0
        %4886 = vmatpush1.msra.mxu0 %v4800
        %4887 = vmatprep.subr.mxu0 0.0
        %4888 = vmatpush1.msra.mxu0 %v4798
        %4889 = vmatprep.subr.mxu0 0.0
        %4890 = vmatpush1.msra.mxu0 %v4796
        %4891 = vmatprep.subr.mxu0 0.0
        %4892 = vmatpush1.msra.mxu0 %v4794
        %4893 = vmatprep.subr.mxu0 0.0
        %4894 = vmatpush1.msra.mxu0 %v4792
        %4895 = vmatprep.subr.mxu0 0.0
        %4896 = vmatpush1.msra.mxu0 %v4790
        %4897 = vmatprep.subr.mxu0 0.0
        %4898 = vmatpush1.msra.mxu0 %v4788
        %4899 = vmatprep.subr.mxu0 0.0
        %4900 = vmatpush1.msra.mxu0 %v4786
        %4901 = vmatprep.subr.mxu0 0.0
        %4902 = vmatpush1.msra.mxu0 %v4784
        %4903 = vmatprep.subr.mxu0 0.0
        %4904 = vmatpush1.msra.mxu0 %v4782
        %4905 = vmatprep.subr.mxu0 0.0
        %4906 = vmatpush1.msra.mxu0 %v4780
        %4907 = vmatprep.subr.mxu0 0.0
        %4908 = vmatpush2.msra.mxu0 %v4842
        %4909 = vmatprep.subr.mxu0 0.0
        %4910 = vmatpush2.msra.mxu0 %v4840
        %4911 = vmatprep.subr.mxu0 0.0
        %4912 = vmatpush2.msra.mxu0 %v4838
        %4913 = vmatprep.subr.mxu0 0.0
        %4914 = vmatpush2.msra.mxu0 %v4836
        %4915 = vmatprep.subr.mxu0 0.0
        %4916 = vmatpush2.msra.mxu0 %v4834
        %4917 = vmatprep.subr.mxu0 0.0
        %4918 = vmatpush2.msra.mxu0 %v4832
        %4919 = vmatprep.subr.mxu0 0.0
        %4920 = vmatpush2.msra.mxu0 %v4830
        %4921 = vmatprep.subr.mxu0 0.0
        %4922 = vmatpush2.msra.mxu0 %v4828
        %4923 = vmatprep.subr.mxu0 0.0
        %4924 = vmatpush2.msra.mxu0 %v4826
        %4925 = vmatprep.subr.mxu0 0.0
        %4926 = vmatpush2.msra.mxu0 %v4824
        %4927 = vmatprep.subr.mxu0 0.0
        %4928 = vmatpush2.msra.mxu0 %v4822
        %4929 = vmatprep.subr.mxu0 0.0
        %4930 = vmatpush2.msra.mxu0 %v4820
        %4931 = vmatprep.subr.mxu0 0.0
        %4932 = vmatpush2.msra.mxu0 %v4818
        %4933 = vmatprep.subr.mxu0 0.0
        %4934 = vmatpush2.msra.mxu0 %v4816
        %4935 = vmatprep.subr.mxu0 0.0
        %4936 = vmatpush2.msra.mxu0 %v4814
        %4937 = vmatprep.subr.mxu0 0.0
        %4938 = vmatpush2.msra.mxu0 %v4812
        %4939 = vmatprep.mubr.f32.mxu0 %v4748
        %4940 = vmatmul.mubr.f32.gmra.mxu0 %v4747
        %v4941 = vpop.f32.mrf.mxu0
        %v4942 = vadd.f32 0.0, %v4941
        %v4943 = vpop.f32.mrf.mxu0
        %4944 = vmatprep.mubr.f32.mxu0 %v4750
        %4945 = vmatmul.mubr.f32.gmra.mxu0 %v4749
        %v4946 = vpop.f32.mrf.mxu0
        %v4947 = vadd.f32 0.0, %v4946
        %v4948 = vpop.f32.mrf.mxu0
        %4949 = vmatprep.mubr.f32.mxu0 %v4752
        %4950 = vmatmul.mubr.f32.gmra.mxu0 %v4751
        %v4951 = vpop.f32.mrf.mxu0
        %v4952 = vadd.f32 0.0, %v4951
        %v4953 = vpop.f32.mrf.mxu0
        %4954 = vmatprep.mubr.f32.mxu0 %v4754
        %4955 = vmatmul.mubr.f32.gmra.mxu0 %v4753
        %v4956 = vpop.f32.mrf.mxu0
        %v4957 = vadd.f32 0.0, %v4956
        %v4958 = vpop.f32.mrf.mxu0
        %4959 = vmatprep.mubr.f32.mxu0 %v4756
        %4960 = vmatmul.mubr.f32.gmra.mxu0 %v4755
        %v4961 = vpop.f32.mrf.mxu0
        %v4962 = vadd.f32 0.0, %v4961
        %v4963 = vpop.f32.mrf.mxu0
        %4964 = vmatprep.mubr.f32.mxu0 %v4758
        %4965 = vmatmul.mubr.f32.gmra.mxu0 %v4757
        %v4966 = vpop.f32.mrf.mxu0
        %v4967 = vadd.f32 0.0, %v4966
        %v4968 = vpop.f32.mrf.mxu0
        %4969 = vmatprep.mubr.f32.mxu0 %v4760
        %4970 = vmatmul.mubr.f32.gmra.mxu0 %v4759
        %v4971 = vpop.f32.mrf.mxu0
        %v4972 = vadd.f32 0.0, %v4971
        %v4973 = vpop.f32.mrf.mxu0
        %4974 = vmatprep.mubr.f32.mxu0 %v4762
        %4975 = vmatmul.mubr.f32.gmra.mxu0 %v4761
        %v4976 = vpop.f32.mrf.mxu0
        %v4977 = vadd.f32 0.0, %v4976
        %v4978 = vpop.f32.mrf.mxu0
        %4979 = vmatprep.mubr.f32.mxu0 %v4764
        %4980 = vmatmul.mubr.f32.gmra.mxu0 %v4763
        %v4981 = vpop.f32.mrf.mxu0
        %v4982 = vadd.f32 0.0, %v4981
        %v4983 = vpop.f32.mrf.mxu0
        %4984 = vmatprep.mubr.f32.mxu0 %v4766
        %4985 = vmatmul.mubr.f32.gmra.mxu0 %v4765
        %v4986 = vpop.f32.mrf.mxu0
        %v4987 = vadd.f32 0.0, %v4986
        %v4988 = vpop.f32.mrf.mxu0
        %4989 = vmatprep.mubr.f32.mxu0 %v4768
        %4990 = vmatmul.mubr.f32.gmra.mxu0 %v4767
        %v4991 = vpop.f32.mrf.mxu0
        %v4992 = vadd.f32 0.0, %v4991
        %v4993 = vpop.f32.mrf.mxu0
        %4994 = vmatprep.mubr.f32.mxu0 %v4770
        %4995 = vmatmul.mubr.f32.gmra.mxu0 %v4769
        %v4996 = vpop.f32.mrf.mxu0
        %v4997 = vadd.f32 0.0, %v4996
        %v4998 = vpop.f32.mrf.mxu0
        %4999 = vmatprep.mubr.f32.mxu0 %v4772
        %5000 = vmatmul.mubr.f32.gmra.mxu0 %v4771
        %v5001 = vpop.f32.mrf.mxu0
        %v5002 = vadd.f32 0.0, %v5001
        %v5003 = vpop.f32.mrf.mxu0
        %5004 = vmatprep.mubr.f32.mxu0 %v4774
        %5005 = vmatmul.mubr.f32.gmra.mxu0 %v4773
        %v5006 = vpop.f32.mrf.mxu0
        %v5007 = vadd.f32 0.0, %v5006
        %v5008 = vpop.f32.mrf.mxu0
        %5009 = vmatprep.mubr.f32.mxu0 %v4776
        %5010 = vmatmul.mubr.f32.gmra.mxu0 %v4775
        %v5011 = vpop.f32.mrf.mxu0
        %v5012 = vadd.f32 0.0, %v5011
        %v5013 = vpop.f32.mrf.mxu0
        %5014 = vmatprep.mubr.f32.mxu0 %v4778
        %5015 = vmatmul.mubr.f32.gmra.mxu0 %v4777
        %v5016 = vpop.f32.mrf.mxu0
        %v5017 = vadd.f32 0.0, %v5016
        %v5018 = vpop.f32.mrf.mxu0
        %5019 = vdwg.mxu0
        %v5021 = vsel %vm989, %v4942, 0
        %v5024 = vsel %vm989, %v4947, 0
        %v5027 = vsel %vm989, %v4952, 0
        %v5030 = vsel %vm989, %v4957, 0
        %v5033 = vsel %vm989, %v4962, 0
        %v5036 = vsel %vm989, %v4967, 0
        %v5039 = vsel %vm989, %v4972, 0
        %v5042 = vsel %vm989, %v4977, 0
        %v5045 = vsel %vm989, %v4982, 0
        %v5048 = vsel %vm989, %v4987, 0
        %v5051 = vsel %vm989, %v4992, 0
        %v5054 = vsel %vm989, %v4997, 0
        %v5057 = vsel %vm989, %v5002, 0
        %v5060 = vsel %vm989, %v5007, 0
        %v5063 = vsel %vm989, %v5012, 0
        %v5066 = vsel %vm989, %v5017, 0
        %5068 = vmatprep.subr.mxu0 0.0
        %5069 = vmatpush1.msra.mxu0 0.0
        %5070 = vmatprep.subr.mxu0 0.0
        %5071 = vmatpush1.msra.mxu0 0.0
        %5072 = vmatprep.subr.mxu0 0.0
        %5073 = vmatpush1.msra.mxu0 0.0
        %5074 = vmatprep.subr.mxu0 0.0
        %5075 = vmatpush1.msra.mxu0 0.0
        %5076 = vmatprep.subr.mxu0 0.0
        %5077 = vmatpush1.msra.mxu0 0.0
        %5078 = vmatprep.subr.mxu0 0.0
        %5079 = vmatpush1.msra.mxu0 0.0
        %5080 = vmatprep.subr.mxu0 0.0
        %5081 = vmatpush1.msra.mxu0 0.0
        %5082 = vmatprep.subr.mxu0 0.0
        %5083 = vmatpush1.msra.mxu0 0.0
        %5084 = vmatprep.subr.mxu0 0.0
        %5085 = vmatpush1.msra.mxu0 0.0
        %5086 = vmatprep.subr.mxu0 0.0
        %5087 = vmatpush1.msra.mxu0 0.0
        %5088 = vmatprep.subr.mxu0 0.0
        %5089 = vmatpush1.msra.mxu0 0.0
        %5090 = vmatprep.subr.mxu0 0.0
        %5091 = vmatpush1.msra.mxu0 0.0
        %5092 = vmatprep.subr.mxu0 0.0
        %5093 = vmatpush1.msra.mxu0 0.0
        %5094 = vmatprep.subr.mxu0 0.0
        %5095 = vmatpush1.msra.mxu0 0.0
        %5096 = vmatprep.subr.mxu0 0.0
        %5097 = vmatpush1.msra.mxu0 0.0
        %5098 = vmatprep.subr.mxu0 0.0
        %5099 = vmatpush1.msra.mxu0 %v940
        %5100 = vmatprep.subr.mxu0 0.0
        %5101 = vmatpush2.msra.mxu0 0.0
        %5102 = vmatprep.subr.mxu0 0.0
        %5103 = vmatpush2.msra.mxu0 0.0
        %5104 = vmatprep.subr.mxu0 0.0
        %5105 = vmatpush2.msra.mxu0 0.0
        %5106 = vmatprep.subr.mxu0 0.0
        %5107 = vmatpush2.msra.mxu0 0.0
        %5108 = vmatprep.subr.mxu0 0.0
        %5109 = vmatpush2.msra.mxu0 0.0
        %5110 = vmatprep.subr.mxu0 0.0
        %5111 = vmatpush2.msra.mxu0 0.0
        %5112 = vmatprep.subr.mxu0 0.0
        %5113 = vmatpush2.msra.mxu0 0.0
        %5114 = vmatprep.subr.mxu0 0.0
        %5115 = vmatpush2.msra.mxu0 0.0
        %5116 = vmatprep.subr.mxu0 0.0
        %5117 = vmatpush2.msra.mxu0 0.0
        %5118 = vmatprep.subr.mxu0 0.0
        %5119 = vmatpush2.msra.mxu0 0.0
        %5120 = vmatprep.subr.mxu0 0.0
        %5121 = vmatpush2.msra.mxu0 0.0
        %5122 = vmatprep.subr.mxu0 0.0
        %5123 = vmatpush2.msra.mxu0 0.0
        %5124 = vmatprep.subr.mxu0 0.0
        %5125 = vmatpush2.msra.mxu0 0.0
        %5126 = vmatprep.subr.mxu0 0.0
        %5127 = vmatpush2.msra.mxu0 0.0
        %5128 = vmatprep.subr.mxu0 0.0
        %5129 = vmatpush2.msra.mxu0 0.0
        %5130 = vmatprep.subr.mxu0 0.0
        %5131 = vmatpush2.msra.mxu0 0.0
        %5132 = vmatprep.mubr.f32.mxu0 0.0
        %5133 = vmatmul.mubr.f32.gmra.mxu0 %v5021
        %v5134 = vpop.f32.mrf.mxu0
        %v5135 = vadd.f32 0.0, %v5134
        %v5136 = vpop.f32.mrf.mxu0
        %5137 = vmatprep.mubr.f32.mxu0 0.0
        %5138 = vmatmul.mubr.f32.gmra.mxu0 %v5024
        %v5139 = vpop.f32.mrf.mxu0
        %v5140 = vadd.f32 0.0, %v5139
        %v5141 = vpop.f32.mrf.mxu0
        %5142 = vmatprep.mubr.f32.mxu0 0.0
        %5143 = vmatmul.mubr.f32.gmra.mxu0 %v5027
        %v5144 = vpop.f32.mrf.mxu0
        %v5145 = vadd.f32 0.0, %v5144
        %v5146 = vpop.f32.mrf.mxu0
        %5147 = vmatprep.mubr.f32.mxu0 0.0
        %5148 = vmatmul.mubr.f32.gmra.mxu0 %v5030
        %v5149 = vpop.f32.mrf.mxu0
        %v5150 = vadd.f32 0.0, %v5149
        %v5151 = vpop.f32.mrf.mxu0
        %5152 = vmatprep.mubr.f32.mxu0 0.0
        %5153 = vmatmul.mubr.f32.gmra.mxu0 %v5033
        %v5154 = vpop.f32.mrf.mxu0
        %v5155 = vadd.f32 0.0, %v5154
        %v5156 = vpop.f32.mrf.mxu0
        %5157 = vmatprep.mubr.f32.mxu0 0.0
        %5158 = vmatmul.mubr.f32.gmra.mxu0 %v5036
        %v5159 = vpop.f32.mrf.mxu0
        %v5160 = vadd.f32 0.0, %v5159
        %v5161 = vpop.f32.mrf.mxu0
        %5162 = vmatprep.mubr.f32.mxu0 0.0
        %5163 = vmatmul.mubr.f32.gmra.mxu0 %v5039
        %v5164 = vpop.f32.mrf.mxu0
        %v5165 = vadd.f32 0.0, %v5164
        %v5166 = vpop.f32.mrf.mxu0
        %5167 = vmatprep.mubr.f32.mxu0 0.0
        %5168 = vmatmul.mubr.f32.gmra.mxu0 %v5042
        %v5169 = vpop.f32.mrf.mxu0
        %v5170 = vadd.f32 0.0, %v5169
        %v5171 = vpop.f32.mrf.mxu0
        %5172 = vmatprep.mubr.f32.mxu0 0.0
        %5173 = vmatmul.mubr.f32.gmra.mxu0 %v5045
        %v5174 = vpop.f32.mrf.mxu0
        %v5175 = vadd.f32 0.0, %v5174
        %v5176 = vpop.f32.mrf.mxu0
        %5177 = vmatprep.mubr.f32.mxu0 0.0
        %5178 = vmatmul.mubr.f32.gmra.mxu0 %v5048
        %v5179 = vpop.f32.mrf.mxu0
        %v5180 = vadd.f32 0.0, %v5179
        %v5181 = vpop.f32.mrf.mxu0
        %5182 = vmatprep.mubr.f32.mxu0 0.0
        %5183 = vmatmul.mubr.f32.gmra.mxu0 %v5051
        %v5184 = vpop.f32.mrf.mxu0
        %v5185 = vadd.f32 0.0, %v5184
        %v5186 = vpop.f32.mrf.mxu0
        %5187 = vmatprep.mubr.f32.mxu0 0.0
        %5188 = vmatmul.mubr.f32.gmra.mxu0 %v5054
        %v5189 = vpop.f32.mrf.mxu0
        %v5190 = vadd.f32 0.0, %v5189
        %v5191 = vpop.f32.mrf.mxu0
        %5192 = vmatprep.mubr.f32.mxu0 0.0
        %5193 = vmatmul.mubr.f32.gmra.mxu0 %v5057
        %v5194 = vpop.f32.mrf.mxu0
        %v5195 = vadd.f32 0.0, %v5194
        %v5196 = vpop.f32.mrf.mxu0
        %5197 = vmatprep.mubr.f32.mxu0 0.0
        %5198 = vmatmul.mubr.f32.gmra.mxu0 %v5060
        %v5199 = vpop.f32.mrf.mxu0
        %v5200 = vadd.f32 0.0, %v5199
        %v5201 = vpop.f32.mrf.mxu0
        %5202 = vmatprep.mubr.f32.mxu0 0.0
        %5203 = vmatmul.mubr.f32.gmra.mxu0 %v5063
        %v5204 = vpop.f32.mrf.mxu0
        %v5205 = vadd.f32 0.0, %v5204
        %v5206 = vpop.f32.mrf.mxu0
        %5207 = vmatprep.mubr.f32.mxu0 0.0
        %5208 = vmatmul.mubr.f32.gmra.mxu0 %v5066
        %v5209 = vpop.f32.mrf.mxu0
        %v5210 = vadd.f32 0.0, %v5209
        %v5211 = vpop.f32.mrf.mxu0
        %5212 = vdwg.mxu0
        %v5213 = vadd.f32 %v4121, %v5135
        %v5214 = vadd.f32 %v4122, %v5140
        %v5215 = vadd.f32 %v4123, %v5145
        %v5216 = vadd.f32 %v4124, %v5150
        %v5217 = vadd.f32 %v4125, %v5155
        %v5218 = vadd.f32 %v4126, %v5160
        %v5219 = vadd.f32 %v4127, %v5165
        %v5220 = vadd.f32 %v4128, %v5170
        %v5221 = vadd.f32 %v4129, %v5175
        %v5222 = vadd.f32 %v4130, %v5180
        %v5223 = vadd.f32 %v4131, %v5185
        %v5224 = vadd.f32 %v4132, %v5190
        %v5225 = vadd.f32 %v4133, %v5195
        %v5226 = vadd.f32 %v4134, %v5200
        %v5227 = vadd.f32 %v4135, %v5205
        %v5228 = vadd.f32 %v4136, %v5210
        %v5229 = vld [vmem:[%s4] sm:$0x1]
        %v5231 = vlaneseq
        %v5232 = vshrl.u32 %v5231, 7
        %v5233 = vsub.s32 0, %v5232
        %v5234 = vrot.slane %v5229, %v5233
        %v5236 = vadd.f32 %v5213, %v5234
        %v5237 = vadd.f32 %v5214, %v5234
        %v5238 = vadd.f32 %v5215, %v5234
        %v5239 = vadd.f32 %v5216, %v5234
        %v5240 = vadd.f32 %v5217, %v5234
        %v5241 = vadd.f32 %v5218, %v5234
        %v5242 = vadd.f32 %v5219, %v5234
        %v5243 = vadd.f32 %v5220, %v5234
        %v5244 = vadd.f32 %v5221, %v5234
        %v5245 = vadd.f32 %v5222, %v5234
        %v5246 = vadd.f32 %v5223, %v5234
        %v5247 = vadd.f32 %v5224, %v5234
        %v5248 = vadd.f32 %v5225, %v5234
        %v5249 = vadd.f32 %v5226, %v5234
        %v5250 = vadd.f32 %v5227, %v5234
        %v5251 = vadd.f32 %v5228, %v5234
        %5252 = vst.msk [vmem:[%s340] sm:$0xff] %vm403, %v5236
        %5253 = vst.msk [vmem:[%s340 + $0x8] sm:$0xff] %vm403, %v5237
        %5254 = vst.msk [vmem:[%s340 + $0x10] sm:$0xff] %vm403, %v5238
        %5255 = vst.msk [vmem:[%s340 + $0x18] sm:$0xff] %vm403, %v5239
        %5256 = vst.msk [vmem:[%s340 + $0x20] sm:$0xff] %vm403, %v5240
        %5257 = vst.msk [vmem:[%s340 + $0x28] sm:$0xff] %vm403, %v5241
        %5258 = vst.msk [vmem:[%s340 + $0x30] sm:$0xff] %vm403, %v5242
        %5259 = vst.msk [vmem:[%s340 + $0x38] sm:$0xff] %vm403, %v5243
        %5260 = vst.msk [vmem:[%s340 + $0x40] sm:$0xff] %vm403, %v5244
        %5261 = vst.msk [vmem:[%s340 + $0x48] sm:$0xff] %vm403, %v5245
        %5262 = vst.msk [vmem:[%s340 + $0x50] sm:$0xff] %vm403, %v5246
        %5263 = vst.msk [vmem:[%s340 + $0x58] sm:$0xff] %vm403, %v5247
        %5264 = vst.msk [vmem:[%s340 + $0x60] sm:$0xff] %vm403, %v5248
        %5265 = vst.msk [vmem:[%s340 + $0x68] sm:$0xff] %vm403, %v5249
        %5266 = vst.msk [vmem:[%s340 + $0x70] sm:$0xff] %vm403, %v5250
        %5267 = vst.msk [vmem:[%s340 + $0x78] sm:$0xff] %vm403, %v5251
        %s5268 = smul.u32 16, %s24
        %p5269 = scmp.lt.s32.totalorder %s25, 1
        %s5270 = scalar_select %p5269, %s25, 1
        %p5271 = scmp.lt.s32.totalorder %s5268, 31
        %s5272 = scalar_select %p5271, %s5268, 31
        %s5273 = smul.addr %s5270, 32
        %s5274 = sadd.s32 %s5272, %s5273
        %s5275 = smul.addr %s5274, 8
        %s5276 = scalar_lea.vmem %s6, %s5275
        // Predicated region
        $region49: #{tpu_custom_call.1} parent=43 // pred_check
          %p5277 = pneg %p188
        $region50: #{tpu_custom_call.1} parent=43 // pred_check_branch
          %5279 = sbr.rel (%p5277) target = $region52
        $region51: #{tpu_custom_call.1} parent=43 // pred_region
          %s5280 = smul.u32 16, %s24
        $region52: #{tpu_custom_call.1} parent=43 // pred_fallthru
          _
      $region44: #{tpu_custom_call.1} parent=5 // pred_fallthru
        _
      %p5281 = scmp.le.s32.totalorder 2, %s15
      // Predicated region
      $region53: #{tpu_custom_call.1} parent=5 // pred_check
        %p5282 = pneg %p5281
      $region54: #{tpu_custom_call.1} parent=5 // pred_check_branch
        %5284 = sbr.rel (%p5282) target = $region56
      $region55: #{tpu_custom_call.1} parent=5 // pred_region
        %s5285 = ssub.s32 %s15, 2
        // Predicated region
        $region57: #{tpu_custom_call.1} parent=55 // pred_check
          %p5286 = pneg %p194
        $region58: #{tpu_custom_call.1} parent=55 // pred_check_branch
          %5288 = sbr.rel (%p5286) target = $region60
        $region59: #{tpu_custom_call.1} parent=55 // pred_region
          %s5289 = smul.u32 16, %s26
          %p5290 = scmp.lt.s32.totalorder %s27, 1
          %s5291 = scalar_select %p5290, %s27, 1
          %p5292 = scmp.lt.s32.totalorder %s5289, 31
          %s5293 = scalar_select %p5292, %s5289, 31
          %s5294 = smul.addr %s5291, 32
          %s5295 = sadd.s32 %s5293, %s5294
          %s5296 = smul.addr %s5295, 8
          %s5297 = scalar_lea.vmem %s6, %s5296
        $region60: #{tpu_custom_call.1} parent=55 // pred_fallthru
          _
      $region56: #{tpu_custom_call.1} parent=5 // pred_fallthru
        _
    $region6: #{tpu_custom_call.1} parent=1 // loop_footer
      %s19 = sadd.s32 1, %s15
    $region7: #{tpu_custom_call.1} parent=1 // loop_footer_branch
      %14 = sbr.rel target = $region3
    $region8: #{tpu_custom_call.1} parent=1 // loop_exit
      _
    %5298 = vsyncpa [#allocation3], 1
    %s5299 = scalar_lea.sflag [#allocation3], 1
    %5300 = vsyncpa %s5299, 1

</llo_original>
